<compile_context>
chip_gen: v6e
topology: v6e:2x2x1
jax: 0.10.0
libtpu: 0.0.40
codegen_flags: <defaults>
</compile_context>

<pallas_src>
import functools
import math

import jax
import jax.numpy as jnp
from jax import lax
from jax.experimental import pallas as pl
from jax.experimental.pallas import tpu as pltpu

# Small config consistent with CLIP(49408 vocab, 768 embed, 77 tokens, 12 heads,
# 12 layers), scaled down for a synthetic test (D kept >= 128 for lane density).
N_VOCAB = 512
N_EMBED = 128
N_TOKENS = 8
N_HEAD = 4
N_LAYERS = 3
D_HEAD = N_EMBED // N_HEAD
LN_EPS = 1e-5                       # PyTorch nn.LayerNorm default
COMPUTE_DTYPE = jnp.bfloat16        # MXU operand dtype (accumulation stays f32)


# ----------------------------------------------------------------------------
# In-kernel helpers
# ----------------------------------------------------------------------------
def _layernorm(x, gamma, beta):
    # PyTorch LayerNorm: biased variance over the last dim, all in f32.
    mean = jnp.mean(x, axis=-1, keepdims=True)
    var = jnp.mean((x - mean) ** 2, axis=-1, keepdims=True)
    return (x - mean) * lax.rsqrt(var + LN_EPS) * gamma + beta


# ----------------------------------------------------------------------------
# Fused forward kernel: one grid step = (one sequence, one transformer layer)
# ----------------------------------------------------------------------------
def clip_fwd_kernel(tok_ref,                       # SMEM (B, S) int32 (prefetch)
                    emb_ref, pos_ref,              # (V, D) f32, (S, D) f32
                    ln1_g, ln1_b, wqkv, bqkv, wo, bo,
                    ln2_g, ln2_b, w1, b1, w2, b2,
                    lnf_g, lnf_b,
                    out_ref,                       # (S, D) block of (B, S, D)
                    x_ref,                         # VMEM scratch (S, D) f32 carry
                    *, n_head):
    b = pl.program_id(0)
    l = pl.program_id(1)
    n_layers = pl.num_programs(1)
    S, D = x_ref.shape
    H = n_head
    dh = D // H
    cdt = COMPUTE_DTYPE
    scale = 1.0 / math.sqrt(dh)

    # ---- layer 0: embedding gather + position add into the activation carry --
    @pl.when(l == 0)
    def _():
        for s in range(S):                              # static, unrolled (S small)
            tok = tok_ref[b, s]                         # scalar read from SMEM
            row = emb_ref[pl.ds(tok, 1), :]             # (1, D) dynamic row gather
            x_ref[pl.ds(s, 1), :] = row + pos_ref[pl.ds(s, 1), :]

    x = x_ref[...]                                      # (S, D) f32

    # Causal additive mask; scores stay f32 so -1e30 is safe.
    rows = lax.broadcasted_iota(jnp.int32, (S, S), 0)
    cols = lax.broadcasted_iota(jnp.int32, (S, S), 1)
    mask_bias = jnp.where(cols > rows, -1e30, 0.0)      # (S, S) f32

    # ---- attention block ----------------------------------------------------
    h1 = _layernorm(x, ln1_g[...], ln1_b[...])
    qkv = jnp.dot(h1.astype(cdt), wqkv[...],
                  preferred_element_type=jnp.float32) + bqkv[...]   # (S, 3D) f32
    qkv = qkv.astype(cdt)        # cast ONCE before head slicing (halves bytes moved)

    attn = jnp.zeros((S, D), jnp.float32)
    for h in range(H):           # static head loop: lane slices only, no concats
        q_h = qkv[:, h * dh:(h + 1) * dh]               # (S, dh) bf16
        k_h = qkv[:, D + h * dh:D + (h + 1) * dh]
        v_h = qkv[:, 2 * D + h * dh:2 * D + (h + 1) * dh]
        # scores = q @ k^T (contract last dims), f32 accumulate on the MXU.
        s_h = lax.dot_general(q_h, k_h, (((1,), (1,)), ((), ())),
                              preferred_element_type=jnp.float32)   # (S, S)
        s_h = s_h * scale + mask_bias
        s_h = s_h - jnp.max(s_h, axis=-1, keepdims=True)
        p_h = jnp.exp(s_h)                                          # f32 (v5e-safe)
        p_h = p_h * pl.reciprocal(jnp.sum(p_h, axis=-1, keepdims=True), approx=True)
        ctx_h = jnp.dot(p_h.astype(cdt), v_h,
                        preferred_element_type=jnp.float32)         # (S, dh) f32
        # Head merge fused into the output projection: attn += ctx_h @ W_out[h].
        attn = attn + jnp.dot(ctx_h.astype(cdt), wo[h],
                              preferred_element_type=jnp.float32)   # (S, D)
    attn = attn + bo[...]
    x = x + attn                                                    # residual 1

    # ---- MLP block (quick GELU: x * sigmoid(1.702 x)) ------------------------
    h2 = _layernorm(x, ln2_g[...], ln2_b[...])
    m = jnp.dot(h2.astype(cdt), w1[...],
                preferred_element_type=jnp.float32) + b1[...]
    m = m * jax.nn.sigmoid(1.702 * m)       # f32 VPU/EUP (bf16 path possible on v6e/v7x)
    m = jnp.dot(m.astype(cdt), w2[...],
                preferred_element_type=jnp.float32) + b2[...]
    x = x + m                                                       # residual 2

    x_ref[...] = x                          # carry activation to the next layer step

    @pl.when(l == n_layers - 1)
    def _():
        out_ref[...] = _layernorm(x, lnf_g[...], lnf_b[...]).astype(out_ref.dtype)


# ----------------------------------------------------------------------------
# Wrapper: one pallas_call, grid = (batch, layers)
# ----------------------------------------------------------------------------
def _vmem_limit_bytes():
    # Size the scoped-VMEM limit per generation (v7x: 64 MiB physical; v5e/v6e: 128).
    try:
        cap = int(pltpu.get_tpu_info().vmem_capacity_bytes)
    except Exception:  # conservative fallback if the query is unavailable
        cap = 64 * 1024 * 1024
    return max(32 * 1024 * 1024, min((cap * 3) // 4, 96 * 1024 * 1024))


def clip_forward(tokens, params):
    tokens = tokens.astype(jnp.int32)
    B, S = tokens.shape
    D = N_EMBED
    L = N_LAYERS

    lp = params["layers_stacked"]

    def full2d(arr):
        # Layer/batch-independent input: constant block index -> DMA'd once, resident.
        return pl.BlockSpec(arr.shape, lambda b, l, tok: (0, 0))

    def per_layer(arr):
        # Stacked (L, ...) parameter: stream exactly one layer slice per inner step.
        tail = arr.shape[1:]
        if len(tail) == 2:
            return pl.BlockSpec((None,) + tail, lambda b, l, tok: (l, 0, 0))
        return pl.BlockSpec((None,) + tail, lambda b, l, tok: (l, 0, 0, 0))

    layer_keys = ("ln1_g", "ln1_b", "w_qkv", "b_qkv", "w_out", "b_out",
                  "ln2_g", "ln2_b", "w_fc1", "b_fc1", "w_fc2", "b_fc2")

    in_arrays = [params["tok_emb"], params["pos_emb"]] \
        + [lp[k] for k in layer_keys] \
        + [params["ln_f_g"], params["ln_f_b"]]
    in_specs = [full2d(params["tok_emb"]), full2d(params["pos_emb"])] \
        + [per_layer(lp[k]) for k in layer_keys] \
        + [full2d(params["ln_f_g"]), full2d(params["ln_f_b"])]

    grid_spec = pltpu.PrefetchScalarGridSpec(
        num_scalar_prefetch=1,                       # token ids -> SMEM
        grid=(B, L),
        in_specs=in_specs,
        out_specs=pl.BlockSpec((None, S, D), lambda b, l, tok: (b, 0, 0)),
        scratch_shapes=[pltpu.VMEM((S, D), jnp.float32)],   # activation carry
    )

    out = pl.pallas_call(
        functools.partial(clip_fwd_kernel, n_head=N_HEAD),
        grid_spec=grid_spec,
        out_shape=jax.ShapeDtypeStruct((B, S, D), jnp.float32),
        compiler_params=pltpu.CompilerParams(
            dimension_semantics=("parallel", "arbitrary"),
            vmem_limit_bytes=_vmem_limit_bytes(),
        ),
    )(tokens, *in_arrays)
    return out


# ----------------------------------------------------------------------------
# Deterministic parameter init (shapes from the module's __init__, values synthetic)
# ----------------------------------------------------------------------------
def init_params(key):
    D, L, H, dh = N_EMBED, N_LAYERS, N_HEAD, D_HEAD
    keys = jax.random.split(key, 10)

    def nrm(k, shape, scale=0.02):
        return jax.random.normal(k, shape, dtype=jnp.float32) * scale

    wdt = COMPUTE_DTYPE   # storage dtype for MXU weight operands
    return {
        "tok_emb": nrm(keys[0], (N_VOCAB, D)),       # f32 table (toy vocab fits VMEM)
        # PyTorch inits position_embedding to zeros; small randoms exercise the add.
        "pos_emb": nrm(keys[1], (N_TOKENS, D)),
        "ln_f_g": jnp.ones((1, D), jnp.float32),
        "ln_f_b": jnp.zeros((1, D), jnp.float32),
        "layers_stacked": {
            "ln1_g": jnp.ones((L, 1, D), jnp.float32),
            "ln1_b": jnp.zeros((L, 1, D), jnp.float32),
            "w_qkv": nrm(keys[2], (L, D, 3 * D)).astype(wdt),
            "b_qkv": nrm(keys[3], (L, 1, 3 * D)),
            # Output projection stored head-blocked: (L, H, dh, D) is just the
            # (L, D, D) matrix with its row axis split per head (offline reshape).
            "w_out": nrm(keys[4], (L, H, dh, D)).astype(wdt),
            "b_out": nrm(keys[5], (L, 1, D)),
            "ln2_g": jnp.ones((L, 1, D), jnp.float32),
            "ln2_b": jnp.zeros((L, 1, D), jnp.float32),
            "w_fc1": nrm(keys[6], (L, D, 4 * D)).astype(wdt),
            "b_fc1": nrm(keys[7], (L, 1, 4 * D)),
            "w_fc2": nrm(keys[8], (L, 4 * D, D)).astype(wdt),
            "b_fc2": nrm(keys[9], (L, 1, D)),
        },
    }


if __name__ == "__main__":
    key = jax.random.PRNGKey(0)
    pkey, tkey = jax.random.split(key)
    params = init_params(pkey)

    B = 2
    tokens = jax.random.randint(tkey, (B, N_TOKENS), 0, N_VOCAB, dtype=jnp.int32)

    out = clip_forward(tokens, params)
    out = jax.block_until_ready(out)

    assert out.shape == (B, N_TOKENS, N_EMBED), out.shape
    assert bool(jnp.all(jnp.isfinite(out)))
    print("KERNEL_OK")
</pallas_src>

<mosaic_0001>
module attributes {stable_mosaic.version = 11 : i64} {
  func.func @clip_fwd_kernel(%arg0: i32, %arg1: i32, %arg2: memref<2x8xi32, #tpu.memory_space<smem>>, %arg3: memref<512x128xf32, #tpu.memory_space<vmem>>, %arg4: memref<8x128xf32, #tpu.memory_space<vmem>>, %arg5: memref<1x1x128xf32, #tpu.memory_space<vmem>>, %arg6: memref<1x1x128xf32, #tpu.memory_space<vmem>>, %arg7: memref<1x128x384xbf16, #tpu.memory_space<vmem>>, %arg8: memref<1x1x384xf32, #tpu.memory_space<vmem>>, %arg9: memref<1x4x32x128xbf16, #tpu.memory_space<vmem>>, %arg10: memref<1x1x128xf32, #tpu.memory_space<vmem>>, %arg11: memref<1x1x128xf32, #tpu.memory_space<vmem>>, %arg12: memref<1x1x128xf32, #tpu.memory_space<vmem>>, %arg13: memref<1x128x512xbf16, #tpu.memory_space<vmem>>, %arg14: memref<1x1x512xf32, #tpu.memory_space<vmem>>, %arg15: memref<1x512x128xbf16, #tpu.memory_space<vmem>>, %arg16: memref<1x1x128xf32, #tpu.memory_space<vmem>>, %arg17: memref<1x128xf32, #tpu.memory_space<vmem>>, %arg18: memref<1x128xf32, #tpu.memory_space<vmem>>, %arg19: memref<1x8x128xf32, #tpu.memory_space<vmem>>, %arg20: memref<8x128xf32, #tpu.memory_space<vmem>>) attributes {dimension_semantics = [#tpu.dimension_semantics<parallel>, #tpu.dimension_semantics<arbitrary>], iteration_bounds = array<i64: 2, 3>, scalar_prefetch = 1 : i64, scratch_operands = 1 : i64, tpu.core_type = #tpu.core_type<tc>, window_params = [{pipeline_mode = #tpu.pipeline_mode<synchronous>, transform_indices = @transform_0, window_bounds = array<i64: 512, 128>}, {pipeline_mode = #tpu.pipeline_mode<synchronous>, transform_indices = @transform_1, window_bounds = array<i64: 8, 128>}, {transform_indices = @transform_2, window_bounds = array<i64: 1, 1, 128>}, {transform_indices = @transform_3, window_bounds = array<i64: 1, 1, 128>}, {transform_indices = @transform_4, window_bounds = array<i64: 1, 128, 384>}, {transform_indices = @transform_5, window_bounds = array<i64: 1, 1, 384>}, {transform_indices = @transform_6, window_bounds = array<i64: 1, 4, 32, 128>}, {transform_indices = @transform_7, window_bounds = array<i64: 1, 1, 128>}, {transform_indices = @transform_8, window_bounds = array<i64: 1, 1, 128>}, {transform_indices = @transform_9, window_bounds = array<i64: 1, 1, 128>}, {transform_indices = @transform_10, window_bounds = array<i64: 1, 128, 512>}, {transform_indices = @transform_11, window_bounds = array<i64: 1, 1, 512>}, {transform_indices = @transform_12, window_bounds = array<i64: 1, 512, 128>}, {transform_indices = @transform_13, window_bounds = array<i64: 1, 1, 128>}, {pipeline_mode = #tpu.pipeline_mode<synchronous>, transform_indices = @transform_14, window_bounds = array<i64: 1, 128>}, {pipeline_mode = #tpu.pipeline_mode<synchronous>, transform_indices = @transform_15, window_bounds = array<i64: 1, 128>}, {transform_indices = @transform_16, window_bounds = array<i64: 1, 8, 128>}]} {
    %c0_i32 = arith.constant 0 : i32
    %0 = arith.cmpi eq, %arg1, %c0_i32 : i32
    %1 = arith.extui %0 : i1 to i32
    %c0_i32_0 = arith.constant 0 : i32
    %2 = arith.cmpi ne, %1, %c0_i32_0 : i32
    scf.if %2 {
      %202 = arith.index_cast %arg0 : i32 to index
      %c0_92 = arith.constant 0 : index
      %203 = memref.load %arg2[%202, %c0_92] : memref<2x8xi32, #tpu.memory_space<smem>>
      %204 = arith.index_cast %203 : i32 to index
      %c0_93 = arith.constant 0 : index
      %205 = vector.load %arg3[%204, %c0_93] : memref<512x128xf32, #tpu.memory_space<vmem>>, vector<1x128xf32>
      %c0_94 = arith.constant 0 : index
      %c0_95 = arith.constant 0 : index
      %206 = vector.load %arg4[%c0_94, %c0_95] : memref<8x128xf32, #tpu.memory_space<vmem>>, vector<1x128xf32>
      %207 = arith.addf %205, %206 : vector<1x128xf32>
      %c0_96 = arith.constant 0 : index
      %c0_97 = arith.constant 0 : index
      %208 = vector.load %arg20[%c0_96, %c0_97] : memref<8x128xf32, #tpu.memory_space<vmem>>, vector<1x128xf32>
      tpu.vector_store %arg20[%c0_96, %c0_97], %207 {strides = array<i32>} : memref<8x128xf32, #tpu.memory_space<vmem>>, vector<1x128xf32>,
      %209 = arith.index_cast %arg0 : i32 to index
      %c1_98 = arith.constant 1 : index
      %210 = memref.load %arg2[%209, %c1_98] : memref<2x8xi32, #tpu.memory_space<smem>>
      %211 = arith.index_cast %210 : i32 to index
      %c0_99 = arith.constant 0 : index
      %212 = vector.load %arg3[%211, %c0_99] : memref<512x128xf32, #tpu.memory_space<vmem>>, vector<1x128xf32>
      %c1_100 = arith.constant 1 : index
      %c0_101 = arith.constant 0 : index
      %213 = vector.load %arg4[%c1_100, %c0_101] : memref<8x128xf32, #tpu.memory_space<vmem>>, vector<1x128xf32>
      %214 = arith.addf %212, %213 : vector<1x128xf32>
      %c1_102 = arith.constant 1 : index
      %c0_103 = arith.constant 0 : index
      %215 = vector.load %arg20[%c1_102, %c0_103] : memref<8x128xf32, #tpu.memory_space<vmem>>, vector<1x128xf32>
      tpu.vector_store %arg20[%c1_102, %c0_103], %214 {strides = array<i32>} : memref<8x128xf32, #tpu.memory_space<vmem>>, vector<1x128xf32>,
      %216 = arith.index_cast %arg0 : i32 to index
      %c2_104 = arith.constant 2 : index
      %217 = memref.load %arg2[%216, %c2_104] : memref<2x8xi32, #tpu.memory_space<smem>>
      %218 = arith.index_cast %217 : i32 to index
      %c0_105 = arith.constant 0 : index
      %219 = vector.load %arg3[%218, %c0_105] : memref<512x128xf32, #tpu.memory_space<vmem>>, vector<1x128xf32>
      %c2_106 = arith.constant 2 : index
      %c0_107 = arith.constant 0 : index
      %220 = vector.load %arg4[%c2_106, %c0_107] : memref<8x128xf32, #tpu.memory_space<vmem>>, vector<1x128xf32>
      %221 = arith.addf %219, %220 : vector<1x128xf32>
      %c2_108 = arith.constant 2 : index
      %c0_109 = arith.constant 0 : index
      %222 = vector.load %arg20[%c2_108, %c0_109] : memref<8x128xf32, #tpu.memory_space<vmem>>, vector<1x128xf32>
      tpu.vector_store %arg20[%c2_108, %c0_109], %221 {strides = array<i32>} : memref<8x128xf32, #tpu.memory_space<vmem>>, vector<1x128xf32>,
      %223 = arith.index_cast %arg0 : i32 to index
      %c3_110 = arith.constant 3 : index
      %224 = memref.load %arg2[%223, %c3_110] : memref<2x8xi32, #tpu.memory_space<smem>>
      %225 = arith.index_cast %224 : i32 to index
      %c0_111 = arith.constant 0 : index
      %226 = vector.load %arg3[%225, %c0_111] : memref<512x128xf32, #tpu.memory_space<vmem>>, vector<1x128xf32>
      %c3_112 = arith.constant 3 : index
      %c0_113 = arith.constant 0 : index
      %227 = vector.load %arg4[%c3_112, %c0_113] : memref<8x128xf32, #tpu.memory_space<vmem>>, vector<1x128xf32>
      %228 = arith.addf %226, %227 : vector<1x128xf32>
      %c3_114 = arith.constant 3 : index
      %c0_115 = arith.constant 0 : index
      %229 = vector.load %arg20[%c3_114, %c0_115] : memref<8x128xf32, #tpu.memory_space<vmem>>, vector<1x128xf32>
      tpu.vector_store %arg20[%c3_114, %c0_115], %228 {strides = array<i32>} : memref<8x128xf32, #tpu.memory_space<vmem>>, vector<1x128xf32>,
      %230 = arith.index_cast %arg0 : i32 to index
      %c4 = arith.constant 4 : index
      %231 = memref.load %arg2[%230, %c4] : memref<2x8xi32, #tpu.memory_space<smem>>
      %232 = arith.index_cast %231 : i32 to index
      %c0_116 = arith.constant 0 : index
      %233 = vector.load %arg3[%232, %c0_116] : memref<512x128xf32, #tpu.memory_space<vmem>>, vector<1x128xf32>
      %c4_117 = arith.constant 4 : index
      %c0_118 = arith.constant 0 : index
      %234 = vector.load %arg4[%c4_117, %c0_118] : memref<8x128xf32, #tpu.memory_space<vmem>>, vector<1x128xf32>
      %235 = arith.addf %233, %234 : vector<1x128xf32>
      %c4_119 = arith.constant 4 : index
      %c0_120 = arith.constant 0 : index
      %236 = vector.load %arg20[%c4_119, %c0_120] : memref<8x128xf32, #tpu.memory_space<vmem>>, vector<1x128xf32>
      tpu.vector_store %arg20[%c4_119, %c0_120], %235 {strides = array<i32>} : memref<8x128xf32, #tpu.memory_space<vmem>>, vector<1x128xf32>,
      %237 = arith.index_cast %arg0 : i32 to index
      %c5 = arith.constant 5 : index
      %238 = memref.load %arg2[%237, %c5] : memref<2x8xi32, #tpu.memory_space<smem>>
      %239 = arith.index_cast %238 : i32 to index
      %c0_121 = arith.constant 0 : index
      %240 = vector.load %arg3[%239, %c0_121] : memref<512x128xf32, #tpu.memory_space<vmem>>, vector<1x128xf32>
      %c5_122 = arith.constant 5 : index
      %c0_123 = arith.constant 0 : index
      %241 = vector.load %arg4[%c5_122, %c0_123] : memref<8x128xf32, #tpu.memory_space<vmem>>, vector<1x128xf32>
      %242 = arith.addf %240, %241 : vector<1x128xf32>
      %c5_124 = arith.constant 5 : index
      %c0_125 = arith.constant 0 : index
      %243 = vector.load %arg20[%c5_124, %c0_125] : memref<8x128xf32, #tpu.memory_space<vmem>>, vector<1x128xf32>
      tpu.vector_store %arg20[%c5_124, %c0_125], %242 {strides = array<i32>} : memref<8x128xf32, #tpu.memory_space<vmem>>, vector<1x128xf32>,
      %244 = arith.index_cast %arg0 : i32 to index
      %c6 = arith.constant 6 : index
      %245 = memref.load %arg2[%244, %c6] : memref<2x8xi32, #tpu.memory_space<smem>>
      %246 = arith.index_cast %245 : i32 to index
      %c0_126 = arith.constant 0 : index
      %247 = vector.load %arg3[%246, %c0_126] : memref<512x128xf32, #tpu.memory_space<vmem>>, vector<1x128xf32>
      %c6_127 = arith.constant 6 : index
      %c0_128 = arith.constant 0 : index
      %248 = vector.load %arg4[%c6_127, %c0_128] : memref<8x128xf32, #tpu.memory_space<vmem>>, vector<1x128xf32>
      %249 = arith.addf %247, %248 : vector<1x128xf32>
      %c6_129 = arith.constant 6 : index
      %c0_130 = arith.constant 0 : index
      %250 = vector.load %arg20[%c6_129, %c0_130] : memref<8x128xf32, #tpu.memory_space<vmem>>, vector<1x128xf32>
      tpu.vector_store %arg20[%c6_129, %c0_130], %249 {strides = array<i32>} : memref<8x128xf32, #tpu.memory_space<vmem>>, vector<1x128xf32>,
      %251 = arith.index_cast %arg0 : i32 to index
      %c7 = arith.constant 7 : index
      %252 = memref.load %arg2[%251, %c7] : memref<2x8xi32, #tpu.memory_space<smem>>
      %253 = arith.index_cast %252 : i32 to index
      %c0_131 = arith.constant 0 : index
      %254 = vector.load %arg3[%253, %c0_131] : memref<512x128xf32, #tpu.memory_space<vmem>>, vector<1x128xf32>
      %c7_132 = arith.constant 7 : index
      %c0_133 = arith.constant 0 : index
      %255 = vector.load %arg4[%c7_132, %c0_133] : memref<8x128xf32, #tpu.memory_space<vmem>>, vector<1x128xf32>
      %256 = arith.addf %254, %255 : vector<1x128xf32>
      %c7_134 = arith.constant 7 : index
      %c0_135 = arith.constant 0 : index
      %257 = vector.load %arg20[%c7_134, %c0_135] : memref<8x128xf32, #tpu.memory_space<vmem>>, vector<1x128xf32>
      tpu.vector_store %arg20[%c7_134, %c0_135], %256 {strides = array<i32>} : memref<8x128xf32, #tpu.memory_space<vmem>>, vector<1x128xf32>,
    } else {
    }
    %c0 = arith.constant 0 : index
    %c0_1 = arith.constant 0 : index
    %3 = vector.load %arg20[%c0, %c0_1] : memref<8x128xf32, #tpu.memory_space<vmem>>, vector<8x128xf32>
    %4 = tpu.iota {dimensions = array<i32: 0>} : vector<8x8xi32>
    %5 = tpu.iota {dimensions = array<i32: 1>} : vector<8x8xi32>
    %6 = arith.cmpi sgt, %5, %4 : vector<8x8xi32>
    %cst = arith.constant -1.000000e+30 : f32
    %cst_2 = arith.constant 0.000000e+00 : f32
    %7 = vector.broadcast %cst : f32 to vector<8x8xf32>
    %8 = vector.broadcast %cst_2 : f32 to vector<8x8xf32>
    %9 = arith.select %6, %7, %8 : vector<8x8xi1>, vector<8x8xf32>
    %c0_3 = arith.constant 0 : index
    %c0_4 = arith.constant 0 : index
    %c0_5 = arith.constant 0 : index
    %10 = vector.load %arg5[%c0_3, %c0_4, %c0_5] : memref<1x1x128xf32, #tpu.memory_space<vmem>>, vector<1x1x128xf32>
    %11 = vector.shape_cast %10 : vector<1x1x128xf32> to vector<1x128xf32>
    %c0_6 = arith.constant 0 : index
    %c0_7 = arith.constant 0 : index
    %c0_8 = arith.constant 0 : index
    %12 = vector.load %arg6[%c0_6, %c0_7, %c0_8] : memref<1x1x128xf32, #tpu.memory_space<vmem>>, vector<1x1x128xf32>
    %13 = vector.shape_cast %12 : vector<1x1x128xf32> to vector<1x128xf32>
    %cst_9 = arith.constant dense<0.000000e+00> : vector<8xf32>
    %14 = vector.multi_reduction <add>, %3, %cst_9 [1] : vector<8x128xf32> to vector<8xf32>
    %15 = vector.shape_cast %14 : vector<8xf32> to vector<8x1xf32>
    %cst_10 = arith.constant 1.280000e+02 : f32
    %16 = vector.broadcast %cst_10 : f32 to vector<8x1xf32>
    %17 = arith.divf %15, %16 : vector<8x1xf32>
    %18 = vector.broadcast %17 : vector<8x1xf32> to vector<8x128xf32>
    %19 = arith.subf %3, %18 : vector<8x128xf32>
    %20 = arith.mulf %19, %19 : vector<8x128xf32>
    %cst_11 = arith.constant dense<0.000000e+00> : vector<8xf32>
    %21 = vector.multi_reduction <add>, %20, %cst_11 [1] : vector<8x128xf32> to vector<8xf32>
    %22 = vector.shape_cast %21 : vector<8xf32> to vector<8x1xf32>
    %cst_12 = arith.constant 1.280000e+02 : f32
    %23 = vector.broadcast %cst_12 : f32 to vector<8x1xf32>
    %24 = arith.divf %22, %23 : vector<8x1xf32>
    %25 = vector.broadcast %17 : vector<8x1xf32> to vector<8x128xf32>
    %26 = arith.subf %3, %25 : vector<8x128xf32>
    %cst_13 = arith.constant 9.99999974E-6 : f32
    %27 = vector.broadcast %cst_13 : f32 to vector<8x1xf32>
    %28 = arith.addf %24, %27 : vector<8x1xf32>
    %29 = math.rsqrt %28 : vector<8x1xf32>
    %30 = vector.broadcast %29 : vector<8x1xf32> to vector<8x128xf32>
    %31 = arith.mulf %26, %30 : vector<8x128xf32>
    %32 = vector.broadcast %11 : vector<1x128xf32> to vector<8x128xf32>
    %33 = arith.mulf %31, %32 : vector<8x128xf32>
    %34 = vector.broadcast %13 : vector<1x128xf32> to vector<8x128xf32>
    %35 = arith.addf %33, %34 : vector<8x128xf32>
    %36 = arith.truncf %35 : vector<8x128xf32> to vector<8x128xbf16>
    %c0_14 = arith.constant 0 : index
    %c0_15 = arith.constant 0 : index
    %c0_16 = arith.constant 0 : index
    %37 = vector.load %arg7[%c0_14, %c0_15, %c0_16] : memref<1x128x384xbf16, #tpu.memory_space<vmem>>, vector<1x128x384xbf16>
    %38 = vector.shape_cast %37 : vector<1x128x384xbf16> to vector<128x384xbf16>
    %cst_17 = arith.constant dense<0.000000e+00> : vector<8x384xf32>
    %39 = tpu.matmul %36, %38, %cst_17 {dimension_numbers = #tpu.dot_dimension_numbers<[1], [0], [0], [1], [0, 0, 1, 1], [], []>} : vector<8x128xbf16>, vector<128x384xbf16>, vector<8x384xf32> -> vector<8x384xf32>
    %c0_18 = arith.constant 0 : index
    %c0_19 = arith.constant 0 : index
    %c0_20 = arith.constant 0 : index
    %40 = vector.load %arg8[%c0_18, %c0_19, %c0_20] : memref<1x1x384xf32, #tpu.memory_space<vmem>>, vector<1x1x384xf32>
    %41 = vector.shape_cast %40 : vector<1x1x384xf32> to vector<1x384xf32>
    %42 = vector.broadcast %41 : vector<1x384xf32> to vector<8x384xf32>
    %43 = arith.addf %39, %42 : vector<8x384xf32>
    %44 = arith.truncf %43 : vector<8x384xf32> to vector<8x384xbf16>
    %cst_21 = arith.constant 0.000000e+00 : f32
    %45 = vector.broadcast %cst_21 : f32 to vector<8x128xf32>
    %46 = vector.extract_strided_slice %44 {offsets = [0, 0], sizes = [8, 32], strides = [1, 1]} : vector<8x384xbf16> to vector<8x32xbf16>
    %47 = vector.extract_strided_slice %44 {offsets = [0, 128], sizes = [8, 32], strides = [1, 1]} : vector<8x384xbf16> to vector<8x32xbf16>
    %48 = vector.extract_strided_slice %44 {offsets = [0, 256], sizes = [8, 32], strides = [1, 1]} : vector<8x384xbf16> to vector<8x32xbf16>
    %cst_22 = arith.constant dense<0.000000e+00> : vector<8x8xf32>
    %49 = tpu.matmul %46, %47, %cst_22 {dimension_numbers = #tpu.dot_dimension_numbers<[1], [1], [0], [0], [0, 0, 1, 0], [], []>} : vector<8x32xbf16>, vector<8x32xbf16>, vector<8x8xf32> -> vector<8x8xf32>
    %cst_23 = arith.constant 0.176776692 : f32
    %50 = vector.broadcast %cst_23 : f32 to vector<8x8xf32>
    %51 = arith.mulf %49, %50 : vector<8x8xf32>
    %52 = arith.addf %51, %9 : vector<8x8xf32>
    %cst_24 = arith.constant dense<0xFF800000> : vector<8xf32>
    %53 = vector.multi_reduction <maximumf>, %52, %cst_24 [1] : vector<8x8xf32> to vector<8xf32>
    %54 = vector.shape_cast %53 : vector<8xf32> to vector<8x1xf32>
    %55 = vector.broadcast %54 : vector<8x1xf32> to vector<8x8xf32>
    %56 = arith.subf %52, %55 : vector<8x8xf32>
    %57 = math.exp %56 : vector<8x8xf32>
    %cst_25 = arith.constant dense<0.000000e+00> : vector<8xf32>
    %58 = vector.multi_reduction <add>, %57, %cst_25 [1] : vector<8x8xf32> to vector<8xf32>
    %59 = vector.shape_cast %58 : vector<8xf32> to vector<8x1xf32>
    %60 = tpu.reciprocal %59 {approx = true} : vector<8x1xf32> -> vector<8x1xf32>
    %61 = vector.broadcast %60 : vector<8x1xf32> to vector<8x8xf32>
    %62 = arith.mulf %57, %61 : vector<8x8xf32>
    %63 = arith.truncf %62 : vector<8x8xf32> to vector<8x8xbf16>
    %cst_26 = arith.constant dense<0.000000e+00> : vector<8x32xf32>
    %64 = tpu.matmul %63, %48, %cst_26 {dimension_numbers = #tpu.dot_dimension_numbers<[1], [0], [0], [1], [0, 0, 1, 1], [], []>} : vector<8x8xbf16>, vector<8x32xbf16>, vector<8x32xf32> -> vector<8x32xf32>
    %65 = arith.truncf %64 : vector<8x32xf32> to vector<8x32xbf16>
    %c0_27 = arith.constant 0 : index
    %c0_28 = arith.constant 0 : index
    %c0_29 = arith.constant 0 : index
    %c0_30 = arith.constant 0 : index
    %66 = vector.load %arg9[%c0_27, %c0_28, %c0_29, %c0_30] : memref<1x4x32x128xbf16, #tpu.memory_space<vmem>>, vector<1x1x32x128xbf16>
    %67 = vector.shape_cast %66 : vector<1x1x32x128xbf16> to vector<32x128xbf16>
    %cst_31 = arith.constant dense<0.000000e+00> : vector<8x128xf32>
    %68 = tpu.matmul %65, %67, %cst_31 {dimension_numbers = #tpu.dot_dimension_numbers<[1], [0], [0], [1], [0, 0, 1, 1], [], []>} : vector<8x32xbf16>, vector<32x128xbf16>, vector<8x128xf32> -> vector<8x128xf32>
    %69 = arith.addf %45, %68 : vector<8x128xf32>
    %70 = vector.extract_strided_slice %44 {offsets = [0, 32], sizes = [8, 32], strides = [1, 1]} : vector<8x384xbf16> to vector<8x32xbf16>
    %71 = vector.extract_strided_slice %44 {offsets = [0, 160], sizes = [8, 32], strides = [1, 1]} : vector<8x384xbf16> to vector<8x32xbf16>
    %72 = vector.extract_strided_slice %44 {offsets = [0, 288], sizes = [8, 32], strides = [1, 1]} : vector<8x384xbf16> to vector<8x32xbf16>
    %cst_32 = arith.constant dense<0.000000e+00> : vector<8x8xf32>
    %73 = tpu.matmul %70, %71, %cst_32 {dimension_numbers = #tpu.dot_dimension_numbers<[1], [1], [0], [0], [0, 0, 1, 0], [], []>} : vector<8x32xbf16>, vector<8x32xbf16>, vector<8x8xf32> -> vector<8x8xf32>
    %cst_33 = arith.constant 0.176776692 : f32
    %74 = vector.broadcast %cst_33 : f32 to vector<8x8xf32>
    %75 = arith.mulf %73, %74 : vector<8x8xf32>
    %76 = arith.addf %75, %9 : vector<8x8xf32>
    %cst_34 = arith.constant dense<0xFF800000> : vector<8xf32>
    %77 = vector.multi_reduction <maximumf>, %76, %cst_34 [1] : vector<8x8xf32> to vector<8xf32>
    %78 = vector.shape_cast %77 : vector<8xf32> to vector<8x1xf32>
    %79 = vector.broadcast %78 : vector<8x1xf32> to vector<8x8xf32>
    %80 = arith.subf %76, %79 : vector<8x8xf32>
    %81 = math.exp %80 : vector<8x8xf32>
    %cst_35 = arith.constant dense<0.000000e+00> : vector<8xf32>
    %82 = vector.multi_reduction <add>, %81, %cst_35 [1] : vector<8x8xf32> to vector<8xf32>
    %83 = vector.shape_cast %82 : vector<8xf32> to vector<8x1xf32>
    %84 = tpu.reciprocal %83 {approx = true} : vector<8x1xf32> -> vector<8x1xf32>
    %85 = vector.broadcast %84 : vector<8x1xf32> to vector<8x8xf32>
    %86 = arith.mulf %81, %85 : vector<8x8xf32>
    %87 = arith.truncf %86 : vector<8x8xf32> to vector<8x8xbf16>
    %cst_36 = arith.constant dense<0.000000e+00> : vector<8x32xf32>
    %88 = tpu.matmul %87, %72, %cst_36 {dimension_numbers = #tpu.dot_dimension_numbers<[1], [0], [0], [1], [0, 0, 1, 1], [], []>} : vector<8x8xbf16>, vector<8x32xbf16>, vector<8x32xf32> -> vector<8x32xf32>
    %89 = arith.truncf %88 : vector<8x32xf32> to vector<8x32xbf16>
    %c0_37 = arith.constant 0 : index
    %c1 = arith.constant 1 : index
    %c0_38 = arith.constant 0 : index
    %c0_39 = arith.constant 0 : index
    %90 = vector.load %arg9[%c0_37, %c1, %c0_38, %c0_39] : memref<1x4x32x128xbf16, #tpu.memory_space<vmem>>, vector<1x1x32x128xbf16>
    %91 = vector.shape_cast %90 : vector<1x1x32x128xbf16> to vector<32x128xbf16>
    %cst_40 = arith.constant dense<0.000000e+00> : vector<8x128xf32>
    %92 = tpu.matmul %89, %91, %cst_40 {dimension_numbers = #tpu.dot_dimension_numbers<[1], [0], [0], [1], [0, 0, 1, 1], [], []>} : vector<8x32xbf16>, vector<32x128xbf16>, vector<8x128xf32> -> vector<8x128xf32>
    %93 = arith.addf %69, %92 : vector<8x128xf32>
    %94 = vector.extract_strided_slice %44 {offsets = [0, 64], sizes = [8, 32], strides = [1, 1]} : vector<8x384xbf16> to vector<8x32xbf16>
    %95 = vector.extract_strided_slice %44 {offsets = [0, 192], sizes = [8, 32], strides = [1, 1]} : vector<8x384xbf16> to vector<8x32xbf16>
    %96 = vector.extract_strided_slice %44 {offsets = [0, 320], sizes = [8, 32], strides = [1, 1]} : vector<8x384xbf16> to vector<8x32xbf16>
    %cst_41 = arith.constant dense<0.000000e+00> : vector<8x8xf32>
    %97 = tpu.matmul %94, %95, %cst_41 {dimension_numbers = #tpu.dot_dimension_numbers<[1], [1], [0], [0], [0, 0, 1, 0], [], []>} : vector<8x32xbf16>, vector<8x32xbf16>, vector<8x8xf32> -> vector<8x8xf32>
    %cst_42 = arith.constant 0.176776692 : f32
    %98 = vector.broadcast %cst_42 : f32 to vector<8x8xf32>
    %99 = arith.mulf %97, %98 : vector<8x8xf32>
    %100 = arith.addf %99, %9 : vector<8x8xf32>
    %cst_43 = arith.constant dense<0xFF800000> : vector<8xf32>
    %101 = vector.multi_reduction <maximumf>, %100, %cst_43 [1] : vector<8x8xf32> to vector<8xf32>
    %102 = vector.shape_cast %101 : vector<8xf32> to vector<8x1xf32>
    %103 = vector.broadcast %102 : vector<8x1xf32> to vector<8x8xf32>
    %104 = arith.subf %100, %103 : vector<8x8xf32>
    %105 = math.exp %104 : vector<8x8xf32>
    %cst_44 = arith.constant dense<0.000000e+00> : vector<8xf32>
    %106 = vector.multi_reduction <add>, %105, %cst_44 [1] : vector<8x8xf32> to vector<8xf32>
    %107 = vector.shape_cast %106 : vector<8xf32> to vector<8x1xf32>
    %108 = tpu.reciprocal %107 {approx = true} : vector<8x1xf32> -> vector<8x1xf32>
    %109 = vector.broadcast %108 : vector<8x1xf32> to vector<8x8xf32>
    %110 = arith.mulf %105, %109 : vector<8x8xf32>
    %111 = arith.truncf %110 : vector<8x8xf32> to vector<8x8xbf16>
    %cst_45 = arith.constant dense<0.000000e+00> : vector<8x32xf32>
    %112 = tpu.matmul %111, %96, %cst_45 {dimension_numbers = #tpu.dot_dimension_numbers<[1], [0], [0], [1], [0, 0, 1, 1], [], []>} : vector<8x8xbf16>, vector<8x32xbf16>, vector<8x32xf32> -> vector<8x32xf32>
    %113 = arith.truncf %112 : vector<8x32xf32> to vector<8x32xbf16>
    %c0_46 = arith.constant 0 : index
    %c2 = arith.constant 2 : index
    %c0_47 = arith.constant 0 : index
    %c0_48 = arith.constant 0 : index
    %114 = vector.load %arg9[%c0_46, %c2, %c0_47, %c0_48] : memref<1x4x32x128xbf16, #tpu.memory_space<vmem>>, vector<1x1x32x128xbf16>
    %115 = vector.shape_cast %114 : vector<1x1x32x128xbf16> to vector<32x128xbf16>
    %cst_49 = arith.constant dense<0.000000e+00> : vector<8x128xf32>
    %116 = tpu.matmul %113, %115, %cst_49 {dimension_numbers = #tpu.dot_dimension_numbers<[1], [0], [0], [1], [0, 0, 1, 1], [], []>} : vector<8x32xbf16>, vector<32x128xbf16>, vector<8x128xf32> -> vector<8x128xf32>
    %117 = arith.addf %93, %116 : vector<8x128xf32>
    %118 = vector.extract_strided_slice %44 {offsets = [0, 96], sizes = [8, 32], strides = [1, 1]} : vector<8x384xbf16> to vector<8x32xbf16>
    %119 = vector.extract_strided_slice %44 {offsets = [0, 224], sizes = [8, 32], strides = [1, 1]} : vector<8x384xbf16> to vector<8x32xbf16>
    %120 = vector.extract_strided_slice %44 {offsets = [0, 352], sizes = [8, 32], strides = [1, 1]} : vector<8x384xbf16> to vector<8x32xbf16>
    %cst_50 = arith.constant dense<0.000000e+00> : vector<8x8xf32>
    %121 = tpu.matmul %118, %119, %cst_50 {dimension_numbers = #tpu.dot_dimension_numbers<[1], [1], [0], [0], [0, 0, 1, 0], [], []>} : vector<8x32xbf16>, vector<8x32xbf16>, vector<8x8xf32> -> vector<8x8xf32>
    %cst_51 = arith.constant 0.176776692 : f32
    %122 = vector.broadcast %cst_51 : f32 to vector<8x8xf32>
    %123 = arith.mulf %121, %122 : vector<8x8xf32>
    %124 = arith.addf %123, %9 : vector<8x8xf32>
    %cst_52 = arith.constant dense<0xFF800000> : vector<8xf32>
    %125 = vector.multi_reduction <maximumf>, %124, %cst_52 [1] : vector<8x8xf32> to vector<8xf32>
    %126 = vector.shape_cast %125 : vector<8xf32> to vector<8x1xf32>
    %127 = vector.broadcast %126 : vector<8x1xf32> to vector<8x8xf32>
    %128 = arith.subf %124, %127 : vector<8x8xf32>
    %129 = math.exp %128 : vector<8x8xf32>
    %cst_53 = arith.constant dense<0.000000e+00> : vector<8xf32>
    %130 = vector.multi_reduction <add>, %129, %cst_53 [1] : vector<8x8xf32> to vector<8xf32>
    %131 = vector.shape_cast %130 : vector<8xf32> to vector<8x1xf32>
    %132 = tpu.reciprocal %131 {approx = true} : vector<8x1xf32> -> vector<8x1xf32>
    %133 = vector.broadcast %132 : vector<8x1xf32> to vector<8x8xf32>
    %134 = arith.mulf %129, %133 : vector<8x8xf32>
    %135 = arith.truncf %134 : vector<8x8xf32> to vector<8x8xbf16>
    %cst_54 = arith.constant dense<0.000000e+00> : vector<8x32xf32>
    %136 = tpu.matmul %135, %120, %cst_54 {dimension_numbers = #tpu.dot_dimension_numbers<[1], [0], [0], [1], [0, 0, 1, 1], [], []>} : vector<8x8xbf16>, vector<8x32xbf16>, vector<8x32xf32> -> vector<8x32xf32>
    %137 = arith.truncf %136 : vector<8x32xf32> to vector<8x32xbf16>
    %c0_55 = arith.constant 0 : index
    %c3 = arith.constant 3 : index
    %c0_56 = arith.constant 0 : index
    %c0_57 = arith.constant 0 : index
    %138 = vector.load %arg9[%c0_55, %c3, %c0_56, %c0_57] : memref<1x4x32x128xbf16, #tpu.memory_space<vmem>>, vector<1x1x32x128xbf16>
    %139 = vector.shape_cast %138 : vector<1x1x32x128xbf16> to vector<32x128xbf16>
    %cst_58 = arith.constant dense<0.000000e+00> : vector<8x128xf32>
    %140 = tpu.matmul %137, %139, %cst_58 {dimension_numbers = #tpu.dot_dimension_numbers<[1], [0], [0], [1], [0, 0, 1, 1], [], []>} : vector<8x32xbf16>, vector<32x128xbf16>, vector<8x128xf32> -> vector<8x128xf32>
    %141 = arith.addf %117, %140 : vector<8x128xf32>
    %c0_59 = arith.constant 0 : index
    %c0_60 = arith.constant 0 : index
    %c0_61 = arith.constant 0 : index
    %142 = vector.load %arg10[%c0_59, %c0_60, %c0_61] : memref<1x1x128xf32, #tpu.memory_space<vmem>>, vector<1x1x128xf32>
    %143 = vector.shape_cast %142 : vector<1x1x128xf32> to vector<1x128xf32>
    %144 = vector.broadcast %143 : vector<1x128xf32> to vector<8x128xf32>
    %145 = arith.addf %141, %144 : vector<8x128xf32>
    %146 = arith.addf %3, %145 : vector<8x128xf32>
    %c0_62 = arith.constant 0 : index
    %c0_63 = arith.constant 0 : index
    %c0_64 = arith.constant 0 : index
    %147 = vector.load %arg11[%c0_62, %c0_63, %c0_64] : memref<1x1x128xf32, #tpu.memory_space<vmem>>, vector<1x1x128xf32>
    %148 = vector.shape_cast %147 : vector<1x1x128xf32> to vector<1x128xf32>
    %c0_65 = arith.constant 0 : index
    %c0_66 = arith.constant 0 : index
    %c0_67 = arith.constant 0 : index
    %149 = vector.load %arg12[%c0_65, %c0_66, %c0_67] : memref<1x1x128xf32, #tpu.memory_space<vmem>>, vector<1x1x128xf32>
    %150 = vector.shape_cast %149 : vector<1x1x128xf32> to vector<1x128xf32>
    %cst_68 = arith.constant dense<0.000000e+00> : vector<8xf32>
    %151 = vector.multi_reduction <add>, %146, %cst_68 [1] : vector<8x128xf32> to vector<8xf32>
    %152 = vector.shape_cast %151 : vector<8xf32> to vector<8x1xf32>
    %cst_69 = arith.constant 1.280000e+02 : f32
    %153 = vector.broadcast %cst_69 : f32 to vector<8x1xf32>
    %154 = arith.divf %152, %153 : vector<8x1xf32>
    %155 = vector.broadcast %154 : vector<8x1xf32> to vector<8x128xf32>
    %156 = arith.subf %146, %155 : vector<8x128xf32>
    %157 = arith.mulf %156, %156 : vector<8x128xf32>
    %cst_70 = arith.constant dense<0.000000e+00> : vector<8xf32>
    %158 = vector.multi_reduction <add>, %157, %cst_70 [1] : vector<8x128xf32> to vector<8xf32>
    %159 = vector.shape_cast %158 : vector<8xf32> to vector<8x1xf32>
    %cst_71 = arith.constant 1.280000e+02 : f32
    %160 = vector.broadcast %cst_71 : f32 to vector<8x1xf32>
    %161 = arith.divf %159, %160 : vector<8x1xf32>
    %162 = vector.broadcast %154 : vector<8x1xf32> to vector<8x128xf32>
    %163 = arith.subf %146, %162 : vector<8x128xf32>
    %cst_72 = arith.constant 9.99999974E-6 : f32
    %164 = vector.broadcast %cst_72 : f32 to vector<8x1xf32>
    %165 = arith.addf %161, %164 : vector<8x1xf32>
    %166 = math.rsqrt %165 : vector<8x1xf32>
    %167 = vector.broadcast %166 : vector<8x1xf32> to vector<8x128xf32>
    %168 = arith.mulf %163, %167 : vector<8x128xf32>
    %169 = vector.broadcast %148 : vector<1x128xf32> to vector<8x128xf32>
    %170 = arith.mulf %168, %169 : vector<8x128xf32>
    %171 = vector.broadcast %150 : vector<1x128xf32> to vector<8x128xf32>
    %172 = arith.addf %170, %171 : vector<8x128xf32>
    %173 = arith.truncf %172 : vector<8x128xf32> to vector<8x128xbf16>
    %c0_73 = arith.constant 0 : index
    %c0_74 = arith.constant 0 : index
    %c0_75 = arith.constant 0 : index
    %174 = vector.load %arg13[%c0_73, %c0_74, %c0_75] : memref<1x128x512xbf16, #tpu.memory_space<vmem>>, vector<1x128x512xbf16>
    %175 = vector.shape_cast %174 : vector<1x128x512xbf16> to vector<128x512xbf16>
    %cst_76 = arith.constant dense<0.000000e+00> : vector<8x512xf32>
    %176 = tpu.matmul %173, %175, %cst_76 {dimension_numbers = #tpu.dot_dimension_numbers<[1], [0], [0], [1], [0, 0, 1, 1], [], []>} : vector<8x128xbf16>, vector<128x512xbf16>, vector<8x512xf32> -> vector<8x512xf32>
    %c0_77 = arith.constant 0 : index
    %c0_78 = arith.constant 0 : index
    %c0_79 = arith.constant 0 : index
    %177 = vector.load %arg14[%c0_77, %c0_78, %c0_79] : memref<1x1x512xf32, #tpu.memory_space<vmem>>, vector<1x1x512xf32>
    %178 = vector.shape_cast %177 : vector<1x1x512xf32> to vector<1x512xf32>
    %179 = vector.broadcast %178 : vector<1x512xf32> to vector<8x512xf32>
    %180 = arith.addf %176, %179 : vector<8x512xf32>
    %cst_80 = arith.constant 1.702000e+00 : f32
    %181 = vector.broadcast %cst_80 : f32 to vector<8x512xf32>
    %182 = arith.mulf %181, %180 : vector<8x512xf32>
    %183 = arith.negf %182 : vector<8x512xf32>
    %184 = math.exp %183 : vector<8x512xf32>
    %cst_81 = arith.constant 1.000000e+00 : f32
    %185 = vector.broadcast %cst_81 : f32 to vector<8x512xf32>
    %186 = arith.addf %185, %184 : vector<8x512xf32>
    %187 = arith.divf %185, %186 : vector<8x512xf32>
    %188 = arith.mulf %180, %187 : vector<8x512xf32>
    %189 = arith.truncf %188 : vector<8x512xf32> to vector<8x512xbf16>
    %c0_82 = arith.constant 0 : index
    %c0_83 = arith.constant 0 : index
    %c0_84 = arith.constant 0 : index
    %190 = vector.load %arg15[%c0_82, %c0_83, %c0_84] : memref<1x512x128xbf16, #tpu.memory_space<vmem>>, vector<1x512x128xbf16>
    %191 = vector.shape_cast %190 : vector<1x512x128xbf16> to vector<512x128xbf16>
    %cst_85 = arith.constant dense<0.000000e+00> : vector<8x128xf32>
    %192 = tpu.matmul %189, %191, %cst_85 {dimension_numbers = #tpu.dot_dimension_numbers<[1], [0], [0], [1], [0, 0, 1, 1], [], []>} : vector<8x512xbf16>, vector<512x128xbf16>, vector<8x128xf32> -> vector<8x128xf32>
    %c0_86 = arith.constant 0 : index
    %c0_87 = arith.constant 0 : index
    %c0_88 = arith.constant 0 : index
    %193 = vector.load %arg16[%c0_86, %c0_87, %c0_88] : memref<1x1x128xf32, #tpu.memory_space<vmem>>, vector<1x1x128xf32>
    %194 = vector.shape_cast %193 : vector<1x1x128xf32> to vector<1x128xf32>
    %195 = vector.broadcast %194 : vector<1x128xf32> to vector<8x128xf32>
    %196 = arith.addf %192, %195 : vector<8x128xf32>
    %197 = arith.addf %146, %196 : vector<8x128xf32>
    %c0_89 = arith.constant 0 : index
    %c0_90 = arith.constant 0 : index
    %198 = vector.load %arg20[%c0_89, %c0_90] : memref<8x128xf32, #tpu.memory_space<vmem>>, vector<8x128xf32>
    tpu.vector_store %arg20[%c0_89, %c0_90], %197 {strides = array<i32>} : memref<8x128xf32, #tpu.memory_space<vmem>>, vector<8x128xf32>,
    %c2_i32 = arith.constant 2 : i32
    %199 = arith.cmpi eq, %arg1, %c2_i32 : i32
    %200 = arith.extui %199 : i1 to i32
    %c0_i32_91 = arith.constant 0 : i32
    %201 = arith.cmpi ne, %200, %c0_i32_91 : i32
    scf.if %201 {
      %c0_92 = arith.constant 0 : index
      %c0_93 = arith.constant 0 : index
      %202 = vector.load %arg17[%c0_92, %c0_93] : memref<1x128xf32, #tpu.memory_space<vmem>>, vector<1x128xf32>
      %c0_94 = arith.constant 0 : index
      %c0_95 = arith.constant 0 : index
      %203 = vector.load %arg18[%c0_94, %c0_95] : memref<1x128xf32, #tpu.memory_space<vmem>>, vector<1x128xf32>
      %cst_96 = arith.constant dense<0.000000e+00> : vector<8xf32>
      %204 = vector.multi_reduction <add>, %197, %cst_96 [1] : vector<8x128xf32> to vector<8xf32>
      %205 = vector.shape_cast %204 : vector<8xf32> to vector<8x1xf32>
      %cst_97 = arith.constant 1.280000e+02 : f32
      %206 = vector.broadcast %cst_97 : f32 to vector<8x1xf32>
      %207 = arith.divf %205, %206 : vector<8x1xf32>
      %208 = vector.broadcast %207 : vector<8x1xf32> to vector<8x128xf32>
      %209 = arith.subf %197, %208 : vector<8x128xf32>
      %210 = arith.mulf %209, %209 : vector<8x128xf32>
      %cst_98 = arith.constant dense<0.000000e+00> : vector<8xf32>
      %211 = vector.multi_reduction <add>, %210, %cst_98 [1] : vector<8x128xf32> to vector<8xf32>
      %212 = vector.shape_cast %211 : vector<8xf32> to vector<8x1xf32>
      %cst_99 = arith.constant 1.280000e+02 : f32
      %213 = vector.broadcast %cst_99 : f32 to vector<8x1xf32>
      %214 = arith.divf %212, %213 : vector<8x1xf32>
      %215 = vector.broadcast %207 : vector<8x1xf32> to vector<8x128xf32>
      %216 = arith.subf %197, %215 : vector<8x128xf32>
      %cst_100 = arith.constant 9.99999974E-6 : f32
      %217 = vector.broadcast %cst_100 : f32 to vector<8x1xf32>
      %218 = arith.addf %214, %217 : vector<8x1xf32>
      %219 = math.rsqrt %218 : vector<8x1xf32>
      %220 = vector.broadcast %219 : vector<8x1xf32> to vector<8x128xf32>
      %221 = arith.mulf %216, %220 : vector<8x128xf32>
      %222 = vector.broadcast %202 : vector<1x128xf32> to vector<8x128xf32>
      %223 = arith.mulf %221, %222 : vector<8x128xf32>
      %224 = vector.broadcast %203 : vector<1x128xf32> to vector<8x128xf32>
      %225 = arith.addf %223, %224 : vector<8x128xf32>
      %c0_101 = arith.constant 0 : index
      %c0_102 = arith.constant 0 : index
      %c0_103 = arith.constant 0 : index
      %226 = vector.load %arg19[%c0_101, %c0_102, %c0_103] : memref<1x8x128xf32, #tpu.memory_space<vmem>>, vector<1x8x128xf32>
      %227 = vector.shape_cast %226 : vector<1x8x128xf32> to vector<8x128xf32>
      %228 = vector.shape_cast %225 : vector<8x128xf32> to vector<1x8x128xf32>
      tpu.vector_store %arg19[%c0_101, %c0_102, %c0_103], %228 {strides = array<i32>} : memref<1x8x128xf32, #tpu.memory_space<vmem>>, vector<1x8x128xf32>,
    } else {
    }
    return
  }
  func.func @transform_0(%arg0: i32, %arg1: i32, %arg2: memref<2x8xi32, #tpu.memory_space<smem>>) -> (i32, i32) {
    %c0_i32 = arith.constant 0 : i32
    %c0_i32_0 = arith.constant 0 : i32
    %c0_i32_1 = arith.constant 0 : i32
    return %c0_i32, %c0_i32_0 : i32, i32
  }
  func.func @transform_1(%arg0: i32, %arg1: i32, %arg2: memref<2x8xi32, #tpu.memory_space<smem>>) -> (i32, i32) {
    %c0_i32 = arith.constant 0 : i32
    %c0_i32_0 = arith.constant 0 : i32
    %c0_i32_1 = arith.constant 0 : i32
    return %c0_i32, %c0_i32_0 : i32, i32
  }
  func.func @transform_2(%arg0: i32, %arg1: i32, %arg2: memref<2x8xi32, #tpu.memory_space<smem>>) -> (i32, i32, i32) {
    %c0_i32 = arith.constant 0 : i32
    %c0_i32_0 = arith.constant 0 : i32
    %c0_i32_1 = arith.constant 0 : i32
    return %arg1, %c0_i32, %c0_i32_0 : i32, i32, i32
  }
  func.func @transform_3(%arg0: i32, %arg1: i32, %arg2: memref<2x8xi32, #tpu.memory_space<smem>>) -> (i32, i32, i32) {
    %c0_i32 = arith.constant 0 : i32
    %c0_i32_0 = arith.constant 0 : i32
    %c0_i32_1 = arith.constant 0 : i32
    return %arg1, %c0_i32, %c0_i32_0 : i32, i32, i32
  }
  func.func @transform_4(%arg0: i32, %arg1: i32, %arg2: memref<2x8xi32, #tpu.memory_space<smem>>) -> (i32, i32, i32) {
    %c0_i32 = arith.constant 0 : i32
    %c0_i32_0 = arith.constant 0 : i32
    %c0_i32_1 = arith.constant 0 : i32
    return %arg1, %c0_i32, %c0_i32_0 : i32, i32, i32
  }
  func.func @transform_5(%arg0: i32, %arg1: i32, %arg2: memref<2x8xi32, #tpu.memory_space<smem>>) -> (i32, i32, i32) {
    %c0_i32 = arith.constant 0 : i32
    %c0_i32_0 = arith.constant 0 : i32
    %c0_i32_1 = arith.constant 0 : i32
    return %arg1, %c0_i32, %c0_i32_0 : i32, i32, i32
  }
  func.func @transform_6(%arg0: i32, %arg1: i32, %arg2: memref<2x8xi32, #tpu.memory_space<smem>>) -> (i32, i32, i32, i32) {
    %c0_i32 = arith.constant 0 : i32
    %c0_i32_0 = arith.constant 0 : i32
    %c0_i32_1 = arith.constant 0 : i32
    %c0_i32_2 = arith.constant 0 : i32
    return %arg1, %c0_i32, %c0_i32_0, %c0_i32_1 : i32, i32, i32, i32
  }
  func.func @transform_7(%arg0: i32, %arg1: i32, %arg2: memref<2x8xi32, #tpu.memory_space<smem>>) -> (i32, i32, i32) {
    %c0_i32 = arith.constant 0 : i32
    %c0_i32_0 = arith.constant 0 : i32
    %c0_i32_1 = arith.constant 0 : i32
    return %arg1, %c0_i32, %c0_i32_0 : i32, i32, i32
  }
  func.func @transform_8(%arg0: i32, %arg1: i32, %arg2: memref<2x8xi32, #tpu.memory_space<smem>>) -> (i32, i32, i32) {
    %c0_i32 = arith.constant 0 : i32
    %c0_i32_0 = arith.constant 0 : i32
    %c0_i32_1 = arith.constant 0 : i32
    return %arg1, %c0_i32, %c0_i32_0 : i32, i32, i32
  }
  func.func @transform_9(%arg0: i32, %arg1: i32, %arg2: memref<2x8xi32, #tpu.memory_space<smem>>) -> (i32, i32, i32) {
    %c0_i32 = arith.constant 0 : i32
    %c0_i32_0 = arith.constant 0 : i32
    %c0_i32_1 = arith.constant 0 : i32
    return %arg1, %c0_i32, %c0_i32_0 : i32, i32, i32
  }
  func.func @transform_10(%arg0: i32, %arg1: i32, %arg2: memref<2x8xi32, #tpu.memory_space<smem>>) -> (i32, i32, i32) {
    %c0_i32 = arith.constant 0 : i32
    %c0_i32_0 = arith.constant 0 : i32
    %c0_i32_1 = arith.constant 0 : i32
    return %arg1, %c0_i32, %c0_i32_0 : i32, i32, i32
  }
  func.func @transform_11(%arg0: i32, %arg1: i32, %arg2: memref<2x8xi32, #tpu.memory_space<smem>>) -> (i32, i32, i32) {
    %c0_i32 = arith.constant 0 : i32
    %c0_i32_0 = arith.constant 0 : i32
    %c0_i32_1 = arith.constant 0 : i32
    return %arg1, %c0_i32, %c0_i32_0 : i32, i32, i32
  }
  func.func @transform_12(%arg0: i32, %arg1: i32, %arg2: memref<2x8xi32, #tpu.memory_space<smem>>) -> (i32, i32, i32) {
    %c0_i32 = arith.constant 0 : i32
    %c0_i32_0 = arith.constant 0 : i32
    %c0_i32_1 = arith.constant 0 : i32
    return %arg1, %c0_i32, %c0_i32_0 : i32, i32, i32
  }
  func.func @transform_13(%arg0: i32, %arg1: i32, %arg2: memref<2x8xi32, #tpu.memory_space<smem>>) -> (i32, i32, i32) {
    %c0_i32 = arith.constant 0 : i32
    %c0_i32_0 = arith.constant 0 : i32
    %c0_i32_1 = arith.constant 0 : i32
    return %arg1, %c0_i32, %c0_i32_0 : i32, i32, i32
  }
  func.func @transform_14(%arg0: i32, %arg1: i32, %arg2: memref<2x8xi32, #tpu.memory_space<smem>>) -> (i32, i32) {
    %c0_i32 = arith.constant 0 : i32
    %c0_i32_0 = arith.constant 0 : i32
    %c0_i32_1 = arith.constant 0 : i32
    return %c0_i32, %c0_i32_0 : i32, i32
  }
  func.func @transform_15(%arg0: i32, %arg1: i32, %arg2: memref<2x8xi32, #tpu.memory_space<smem>>) -> (i32, i32) {
    %c0_i32 = arith.constant 0 : i32
    %c0_i32_0 = arith.constant 0 : i32
    %c0_i32_1 = arith.constant 0 : i32
    return %c0_i32, %c0_i32_0 : i32, i32
  }
  func.func @transform_16(%arg0: i32, %arg1: i32, %arg2: memref<2x8xi32, #tpu.memory_space<smem>>) -> (i32, i32, i32) {
    %c0_i32 = arith.constant 0 : i32
    %c0_i32_0 = arith.constant 0 : i32
    %c0_i32_1 = arith.constant 0 : i32
    return %arg0, %c0_i32, %c0_i32_0 : i32, i32, i32
  }
}

</mosaic_0001>

<llo_original>
// kernel: tpu_custom_call.1
$region0: #{tpu_custom_call.1}
  #allocation0 [shape = 'u32[]', space=smem, size = 0x4, offset = 0x4, fixed_abs, tag = 'smem constant byte address 0x4 - core index']
  #allocation1 [shape = 'u32[144,128]{1,0:T(1,128)}', space=vmem, size = 0x12000, scoped, tag = 'internal scratch']
  #allocation2 [shape = 'f32[8,128]{1,0:T(8,128)}', space=vmem, size = 0x1000, scoped, tag = 'scratch operand']
  #allocation3 [shape = 's32[1]{0}', space=sflag, size = 0x4, scoped, tag = 'scoped memory for tpu_custom_call.1']
  #allocation4 [shape = 'u8[1024]{0}', space=smem, size = 0x400, scoped, tag = 'prefetched SMEM operand 0']
  %s0 = inlined_call_operand.hbm [shape: s32[2,8], index: 0, kind: input, shape index: {}]
  %s1 = inlined_call_operand.hbm [shape: f32[512,128], index: 1, kind: input, shape index: {}]
  %s2 = inlined_call_operand.hbm [shape: f32[8,128], index: 2, kind: input, shape index: {}]
  %s3 = inlined_call_operand.hbm [shape: f32[3,1,128], index: 3, kind: input, shape index: {}]
  %s4 = inlined_call_operand.hbm [shape: f32[3,1,128], index: 4, kind: input, shape index: {}]
  %s5 = inlined_call_operand.hbm [shape: bf16[3,128,384], index: 5, kind: input, shape index: {}]
  %s6 = inlined_call_operand.vmem [shape: f32[3,1,384], index: 6, kind: input, shape index: {}]
  %s7 = inlined_call_operand.hbm [shape: bf16[3,4,32,128], index: 7, kind: input, shape index: {}]
  %s8 = inlined_call_operand.hbm [shape: f32[3,1,128], index: 8, kind: input, shape index: {}]
  %s9 = inlined_call_operand.hbm [shape: f32[3,1,128], index: 9, kind: input, shape index: {}]
  %s10 = inlined_call_operand.hbm [shape: f32[3,1,128], index: 10, kind: input, shape index: {}]
  %s11 = inlined_call_operand.hbm [shape: bf16[3,128,512], index: 11, kind: input, shape index: {}]
  %s12 = inlined_call_operand.vmem [shape: f32[3,1,512], index: 12, kind: input, shape index: {}]
  %s13 = inlined_call_operand.hbm [shape: bf16[3,512,128], index: 13, kind: input, shape index: {}]
  %s14 = inlined_call_operand.vmem [shape: f32[3,1,128], index: 14, kind: input, shape index: {}]
  %s15 = inlined_call_operand.vmem [shape: f32[1,128], index: 15, kind: input, shape index: {}]
  %s16 = inlined_call_operand.vmem [shape: f32[1,128], index: 16, kind: input, shape index: {}]
  %s17 = inlined_call_operand.hbm [shape: f32[2,8,128], index: 17, kind: output, shape index: {}]
  %s18 = sld [smem:[#allocation0]]
  $region149: #{tpu_custom_call.1} parent=0
    _
  %s20 = ssub.s32 1, %s18
  %s21 = scalar_select 0, %s20, %s18
  %23 = dma.hbm_to_smem %s0, 32, [#allocation4], [#allocation3]
  %24 = dma.done [#allocation3], 32
  %25 = sfence
  $region1: #{tpu_custom_call.1} parent=0
    #allocation5 [shape = 'u8[262144]{0}', space=vmem, size = 0x40000, scoped, tag = 'input window, operand 1, single buffered']
    #allocation6 [shape = 's32[2]{0}', space=sflag, size = 0x8, scoped, tag = 'scoped memory for tpu_custom_call.1']
    #allocation7 [shape = 's32[2]{0}', space=sflag, size = 0x8, scoped, tag = 'scoped memory for tpu_custom_call.1']
    #allocation8 [shape = 'u8[4096]{0}', space=vmem, size = 0x1000, scoped, tag = 'input window, operand 2, single buffered']
    #allocation9 [shape = 's32[1]{0}', space=sflag, size = 0x4, scoped, tag = 'scoped memory for tpu_custom_call.1']
    #allocation10 [shape = 'u8[1024]{0}', space=vmem, size = 0x400, scoped, tag = 'input window, operand 3']
    #allocation11 [shape = 'u8[1024]{0}', space=vmem, size = 0x400, scoped, tag = 'input window, operand 4']
    #allocation12 [shape = 'u8[196608]{0}', space=vmem, size = 0x30000, scoped, tag = 'input window, operand 5']
    #allocation13 [shape = 'u8[65536]{0}', space=vmem, size = 0x10000, scoped, tag = 'input window, operand 7']
    #allocation14 [shape = 'u8[1024]{0}', space=vmem, size = 0x400, scoped, tag = 'input window, operand 8']
    #allocation15 [shape = 'u8[1024]{0}', space=vmem, size = 0x400, scoped, tag = 'input window, operand 9']
    #allocation16 [shape = 'u8[1024]{0}', space=vmem, size = 0x400, scoped, tag = 'input window, operand 10']
    #allocation17 [shape = 'u8[262144]{0}', space=vmem, size = 0x40000, scoped, tag = 'input window, operand 11']
    #allocation18 [shape = 'u8[262144]{0}', space=vmem, size = 0x40000, scoped, tag = 'input window, operand 13']
    #allocation19 [shape = 'u8[8192]{0}', space=vmem, size = 0x2000, scoped, tag = 'output window, operand 0']
    %26 = vsyncpa [#allocation6], 0
    %27 = vsyncpa [#allocation9], 0
    %28 = vsyncpa [#allocation7], 0
    %s29 = scalar_lea.sflag [#allocation7], 1
    %30 = vsyncpa %s29, 0
    loop: start=0, step=1, limit=8
    $region2: #{tpu_custom_call.1} parent=1 // loop_pre_header
      _
    $region3: #{tpu_custom_call.1} parent=1 // loop_header
      %s32 = sphi 0, %s36
      %p33 = scmp.ge.s32.totalorder %s32, 8
      %s39 = sphi 0, %s51
      %s40 = sphi 0, %s47
      %s41 = sphi 0, %s39
      %s42 = sphi 0, %s40
      %s43 = sphi 0, %s41
      %s44 = sphi 0, %s42
      %s52 = sphi 0, %s52
      %s54 = sphi 0, %s52
      %s55 = sphi 0, %s54
      %s69 = sphi 0, %s55
      %s73 = sphi 0, %s73
      %s75 = sphi 0, %s73
      %s76 = sphi 0, %s75
      %s90 = sphi 0, %s76
      %s96 = sphi 0, %s98
      %s99 = sphi 0, %s96
      %s100 = sphi 0, %s99
      %s116 = sphi 0, %s100
      %s122 = sphi 0, %s124
      %s125 = sphi 0, %s122
      %s126 = sphi 0, %s125
      %s142 = sphi 0, %s126
      %s148 = sphi 0, %s150
      %s151 = sphi 0, %s148
      %s152 = sphi 0, %s151
      %s168 = sphi 0, %s152
      %s174 = sphi 0, %s176
      %s177 = sphi 0, %s174
      %s178 = sphi 0, %s177
      %s194 = sphi 0, %s178
      %s200 = sphi 0, %s202
      %s203 = sphi 0, %s200
      %s204 = sphi 0, %s203
      %s220 = sphi 0, %s204
      %s226 = sphi 0, %s228
      %s229 = sphi 0, %s226
      %s230 = sphi 0, %s229
      %s246 = sphi 0, %s230
      %s252 = sphi 0, %s254
      %s255 = sphi 0, %s252
      %s256 = sphi 0, %s255
      %s272 = sphi 0, %s256
      %s278 = sphi 0, %s280
      %s281 = sphi 0, %s278
      %s282 = sphi 0, %s281
      %s298 = sphi 0, %s282
      %s304 = sphi 0, %s306
      %s307 = sphi 0, %s304
      %s308 = sphi 0, %s307
      %s324 = sphi 0, %s308
      %s330 = sphi 0, %s332
      %s333 = sphi 0, %s330
      %s334 = sphi 0, %s333
      %s350 = sphi 0, %s334
      %s356 = sphi 0, %s358
      %s359 = sphi 0, %s356
      %s360 = sphi 0, %s359
      %s376 = sphi 0, %s360
      %s382 = sphi 0, %s384
      %s385 = sphi 0, %s382
      %s386 = sphi 0, %s385
      %s402 = sphi 0, %s386
      %s406 = sphi 0, %s406
      %s408 = sphi 0, %s406
      %s409 = sphi 0, %s408
      %s423 = sphi 0, %s409
      %s427 = sphi 0, %s427
      %s429 = sphi 0, %s427
      %s430 = sphi 0, %s429
      %s444 = sphi 0, %s430
      %s450 = sphi 0, %s452
      %s453 = sphi 0, %s450
      %s454 = sphi 0, %s453
      %s470 = sphi 0, %s454
    $region4: #{tpu_custom_call.1} parent=1 // loop_header_branch
      %35 = sbr.rel (%p33) target = $region8
    $region5: #{tpu_custom_call.1} parent=1 // loop_body
      %s37 = ssub.s32 %s32, 1
      %s38 = ssub.s32 %s32, 2
      %s45 = sadd.s32 1, %s40
      %p46 = scmp.ge.s32.totalorder %s45, 3
      %s47 = scalar_select %p46, 0, %s45
      %s48 = sadd.s32 1, %s39
      %s49 = scalar_select %p46, %s48, %s39
      %p50 = scmp.ge.s32.totalorder %s49, 2
      %s51 = scalar_select %p50, 0, %s49
      %s53 = sadd.s32 %s52, 1
      %p56 = scmp.eq.s32.totalorder %s32, 5
      %p57 = scmp.ne.s32.totalorder %s52, %s54
      %p58 = scmp.eq.s32.totalorder %s32, 0
      %p59 = por %p57, %p58
      %p60 = scmp.ne.s32.totalorder %s52, %s54
      %p61 = scmp.eq.s32.totalorder %s37, 5
      %p62 = por %p60, %p61
      %p63 = scmp.ne.s32.totalorder %s54, %s55
      %p64 = scmp.eq.s32.totalorder %s37, 0
      %p65 = por %p63, %p64
      %p66 = scmp.ne.s32.totalorder %s54, %s55
      %p67 = scmp.eq.s32.totalorder %s38, 5
      %p68 = por %p66, %p67
      %p70 = scmp.ne.s32.totalorder %s55, %s69
      %p71 = scmp.eq.s32.totalorder %s38, 0
      %p72 = por %p70, %p71
      %s74 = sadd.s32 %s73, 1
      %p77 = scmp.eq.s32.totalorder %s32, 5
      %p78 = scmp.ne.s32.totalorder %s73, %s75
      %p79 = scmp.eq.s32.totalorder %s32, 0
      %p80 = por %p78, %p79
      %p81 = scmp.ne.s32.totalorder %s73, %s75
      %p82 = scmp.eq.s32.totalorder %s37, 5
      %p83 = por %p81, %p82
      %p84 = scmp.ne.s32.totalorder %s75, %s76
      %p85 = scmp.eq.s32.totalorder %s37, 0
      %p86 = por %p84, %p85
      %p87 = scmp.ne.s32.totalorder %s75, %s76
      %p88 = scmp.eq.s32.totalorder %s38, 5
      %p89 = por %p87, %p88
      %p91 = scmp.ne.s32.totalorder %s76, %s90
      %p92 = scmp.eq.s32.totalorder %s38, 0
      %p93 = por %p91, %p92
      %s94 = ssub.s32 %s40, %s47
      %p95 = scmp.eq.s32.totalorder %s94, 0
      %s97 = sadd.s32 %s96, 1
      %s98 = scalar_select %p95, %s96, %s97
      %p101 = pneg %p95
      %p102 = scmp.eq.s32.totalorder %s32, 5
      %p103 = por %p101, %p102
      %p104 = scmp.ne.s32.totalorder %s96, %s99
      %p105 = scmp.eq.s32.totalorder %s32, 0
      %p106 = por %p104, %p105
      %p107 = scmp.ne.s32.totalorder %s96, %s99
      %p108 = scmp.eq.s32.totalorder %s37, 5
      %p109 = por %p107, %p108
      %p110 = scmp.ne.s32.totalorder %s99, %s100
      %p111 = scmp.eq.s32.totalorder %s37, 0
      %p112 = por %p110, %p111
      %p113 = scmp.ne.s32.totalorder %s99, %s100
      %p114 = scmp.eq.s32.totalorder %s38, 5
      %p115 = por %p113, %p114
      %p117 = scmp.ne.s32.totalorder %s100, %s116
      %p118 = scmp.eq.s32.totalorder %s38, 0
      %p119 = por %p117, %p118
      %s120 = ssub.s32 %s40, %s47
      %p121 = scmp.eq.s32.totalorder %s120, 0
      %s123 = sadd.s32 %s122, 1
      %s124 = scalar_select %p121, %s122, %s123
      %p127 = pneg %p121
      %p128 = scmp.eq.s32.totalorder %s32, 5
      %p129 = por %p127, %p128
      %p130 = scmp.ne.s32.totalorder %s122, %s125
      %p131 = scmp.eq.s32.totalorder %s32, 0
      %p132 = por %p130, %p131
      %p133 = scmp.ne.s32.totalorder %s122, %s125
      %p134 = scmp.eq.s32.totalorder %s37, 5
      %p135 = por %p133, %p134
      %p136 = scmp.ne.s32.totalorder %s125, %s126
      %p137 = scmp.eq.s32.totalorder %s37, 0
      %p138 = por %p136, %p137
      %p139 = scmp.ne.s32.totalorder %s125, %s126
      %p140 = scmp.eq.s32.totalorder %s38, 5
      %p141 = por %p139, %p140
      %p143 = scmp.ne.s32.totalorder %s126, %s142
      %p144 = scmp.eq.s32.totalorder %s38, 0
      %p145 = por %p143, %p144
      %s146 = ssub.s32 %s40, %s47
      %p147 = scmp.eq.s32.totalorder %s146, 0
      %s149 = sadd.s32 %s148, 1
      %s150 = scalar_select %p147, %s148, %s149
      %p153 = pneg %p147
      %p154 = scmp.eq.s32.totalorder %s32, 5
      %p155 = por %p153, %p154
      %p156 = scmp.ne.s32.totalorder %s148, %s151
      %p157 = scmp.eq.s32.totalorder %s32, 0
      %p158 = por %p156, %p157
      %p159 = scmp.ne.s32.totalorder %s148, %s151
      %p160 = scmp.eq.s32.totalorder %s37, 5
      %p161 = por %p159, %p160
      %p162 = scmp.ne.s32.totalorder %s151, %s152
      %p163 = scmp.eq.s32.totalorder %s37, 0
      %p164 = por %p162, %p163
      %p165 = scmp.ne.s32.totalorder %s151, %s152
      %p166 = scmp.eq.s32.totalorder %s38, 5
      %p167 = por %p165, %p166
      %p169 = scmp.ne.s32.totalorder %s152, %s168
      %p170 = scmp.eq.s32.totalorder %s38, 0
      %p171 = por %p169, %p170
      %s172 = ssub.s32 %s40, %s47
      %p173 = scmp.eq.s32.totalorder %s172, 0
      %s175 = sadd.s32 %s174, 1
      %s176 = scalar_select %p173, %s174, %s175
      %p179 = pneg %p173
      %p180 = scmp.eq.s32.totalorder %s32, 5
      %p181 = por %p179, %p180
      %p182 = scmp.ne.s32.totalorder %s174, %s177
      %p183 = scmp.eq.s32.totalorder %s32, 0
      %p184 = por %p182, %p183
      %p185 = scmp.ne.s32.totalorder %s174, %s177
      %p186 = scmp.eq.s32.totalorder %s37, 5
      %p187 = por %p185, %p186
      %p188 = scmp.ne.s32.totalorder %s177, %s178
      %p189 = scmp.eq.s32.totalorder %s37, 0
      %p190 = por %p188, %p189
      %p191 = scmp.ne.s32.totalorder %s177, %s178
      %p192 = scmp.eq.s32.totalorder %s38, 5
      %p193 = por %p191, %p192
      %p195 = scmp.ne.s32.totalorder %s178, %s194
      %p196 = scmp.eq.s32.totalorder %s38, 0
      %p197 = por %p195, %p196
      %s198 = ssub.s32 %s40, %s47
      %p199 = scmp.eq.s32.totalorder %s198, 0
      %s201 = sadd.s32 %s200, 1
      %s202 = scalar_select %p199, %s200, %s201
      %p205 = pneg %p199
      %p206 = scmp.eq.s32.totalorder %s32, 5
      %p207 = por %p205, %p206
      %p208 = scmp.ne.s32.totalorder %s200, %s203
      %p209 = scmp.eq.s32.totalorder %s32, 0
      %p210 = por %p208, %p209
      %p211 = scmp.ne.s32.totalorder %s200, %s203
      %p212 = scmp.eq.s32.totalorder %s37, 5
      %p213 = por %p211, %p212
      %p214 = scmp.ne.s32.totalorder %s203, %s204
      %p215 = scmp.eq.s32.totalorder %s37, 0
      %p216 = por %p214, %p215
      %p217 = scmp.ne.s32.totalorder %s203, %s204
      %p218 = scmp.eq.s32.totalorder %s38, 5
      %p219 = por %p217, %p218
      %p221 = scmp.ne.s32.totalorder %s204, %s220
      %p222 = scmp.eq.s32.totalorder %s38, 0
      %p223 = por %p221, %p222
      %s224 = ssub.s32 %s40, %s47
      %p225 = scmp.eq.s32.totalorder %s224, 0
      %s227 = sadd.s32 %s226, 1
      %s228 = scalar_select %p225, %s226, %s227
      %p231 = pneg %p225
      %p232 = scmp.eq.s32.totalorder %s32, 5
      %p233 = por %p231, %p232
      %p234 = scmp.ne.s32.totalorder %s226, %s229
      %p235 = scmp.eq.s32.totalorder %s32, 0
      %p236 = por %p234, %p235
      %p237 = scmp.ne.s32.totalorder %s226, %s229
      %p238 = scmp.eq.s32.totalorder %s37, 5
      %p239 = por %p237, %p238
      %p240 = scmp.ne.s32.totalorder %s229, %s230
      %p241 = scmp.eq.s32.totalorder %s37, 0
      %p242 = por %p240, %p241
      %p243 = scmp.ne.s32.totalorder %s229, %s230
      %p244 = scmp.eq.s32.totalorder %s38, 5
      %p245 = por %p243, %p244
      %p247 = scmp.ne.s32.totalorder %s230, %s246
      %p248 = scmp.eq.s32.totalorder %s38, 0
      %p249 = por %p247, %p248
      %s250 = ssub.s32 %s40, %s47
      %p251 = scmp.eq.s32.totalorder %s250, 0
      %s253 = sadd.s32 %s252, 1
      %s254 = scalar_select %p251, %s252, %s253
      %p257 = pneg %p251
      %p258 = scmp.eq.s32.totalorder %s32, 5
      %p259 = por %p257, %p258
      %p260 = scmp.ne.s32.totalorder %s252, %s255
      %p261 = scmp.eq.s32.totalorder %s32, 0
      %p262 = por %p260, %p261
      %p263 = scmp.ne.s32.totalorder %s252, %s255
      %p264 = scmp.eq.s32.totalorder %s37, 5
      %p265 = por %p263, %p264
      %p266 = scmp.ne.s32.totalorder %s255, %s256
      %p267 = scmp.eq.s32.totalorder %s37, 0
      %p268 = por %p266, %p267
      %p269 = scmp.ne.s32.totalorder %s255, %s256
      %p270 = scmp.eq.s32.totalorder %s38, 5
      %p271 = por %p269, %p270
      %p273 = scmp.ne.s32.totalorder %s256, %s272
      %p274 = scmp.eq.s32.totalorder %s38, 0
      %p275 = por %p273, %p274
      %s276 = ssub.s32 %s40, %s47
      %p277 = scmp.eq.s32.totalorder %s276, 0
      %s279 = sadd.s32 %s278, 1
      %s280 = scalar_select %p277, %s278, %s279
      %p283 = pneg %p277
      %p284 = scmp.eq.s32.totalorder %s32, 5
      %p285 = por %p283, %p284
      %p286 = scmp.ne.s32.totalorder %s278, %s281
      %p287 = scmp.eq.s32.totalorder %s32, 0
      %p288 = por %p286, %p287
      %p289 = scmp.ne.s32.totalorder %s278, %s281
      %p290 = scmp.eq.s32.totalorder %s37, 5
      %p291 = por %p289, %p290
      %p292 = scmp.ne.s32.totalorder %s281, %s282
      %p293 = scmp.eq.s32.totalorder %s37, 0
      %p294 = por %p292, %p293
      %p295 = scmp.ne.s32.totalorder %s281, %s282
      %p296 = scmp.eq.s32.totalorder %s38, 5
      %p297 = por %p295, %p296
      %p299 = scmp.ne.s32.totalorder %s282, %s298
      %p300 = scmp.eq.s32.totalorder %s38, 0
      %p301 = por %p299, %p300
      %s302 = ssub.s32 %s40, %s47
      %p303 = scmp.eq.s32.totalorder %s302, 0
      %s305 = sadd.s32 %s304, 1
      %s306 = scalar_select %p303, %s304, %s305
      %p309 = pneg %p303
      %p310 = scmp.eq.s32.totalorder %s32, 5
      %p311 = por %p309, %p310
      %p312 = scmp.ne.s32.totalorder %s304, %s307
      %p313 = scmp.eq.s32.totalorder %s32, 0
      %p314 = por %p312, %p313
      %p315 = scmp.ne.s32.totalorder %s304, %s307
      %p316 = scmp.eq.s32.totalorder %s37, 5
      %p317 = por %p315, %p316
      %p318 = scmp.ne.s32.totalorder %s307, %s308
      %p319 = scmp.eq.s32.totalorder %s37, 0
      %p320 = por %p318, %p319
      %p321 = scmp.ne.s32.totalorder %s307, %s308
      %p322 = scmp.eq.s32.totalorder %s38, 5
      %p323 = por %p321, %p322
      %p325 = scmp.ne.s32.totalorder %s308, %s324
      %p326 = scmp.eq.s32.totalorder %s38, 0
      %p327 = por %p325, %p326
      %s328 = ssub.s32 %s40, %s47
      %p329 = scmp.eq.s32.totalorder %s328, 0
      %s331 = sadd.s32 %s330, 1
      %s332 = scalar_select %p329, %s330, %s331
      %p335 = pneg %p329
      %p336 = scmp.eq.s32.totalorder %s32, 5
      %p337 = por %p335, %p336
      %p338 = scmp.ne.s32.totalorder %s330, %s333
      %p339 = scmp.eq.s32.totalorder %s32, 0
      %p340 = por %p338, %p339
      %p341 = scmp.ne.s32.totalorder %s330, %s333
      %p342 = scmp.eq.s32.totalorder %s37, 5
      %p343 = por %p341, %p342
      %p344 = scmp.ne.s32.totalorder %s333, %s334
      %p345 = scmp.eq.s32.totalorder %s37, 0
      %p346 = por %p344, %p345
      %p347 = scmp.ne.s32.totalorder %s333, %s334
      %p348 = scmp.eq.s32.totalorder %s38, 5
      %p349 = por %p347, %p348
      %p351 = scmp.ne.s32.totalorder %s334, %s350
      %p352 = scmp.eq.s32.totalorder %s38, 0
      %p353 = por %p351, %p352
      %s354 = ssub.s32 %s40, %s47
      %p355 = scmp.eq.s32.totalorder %s354, 0
      %s357 = sadd.s32 %s356, 1
      %s358 = scalar_select %p355, %s356, %s357
      %p361 = pneg %p355
      %p362 = scmp.eq.s32.totalorder %s32, 5
      %p363 = por %p361, %p362
      %p364 = scmp.ne.s32.totalorder %s356, %s359
      %p365 = scmp.eq.s32.totalorder %s32, 0
      %p366 = por %p364, %p365
      %p367 = scmp.ne.s32.totalorder %s356, %s359
      %p368 = scmp.eq.s32.totalorder %s37, 5
      %p369 = por %p367, %p368
      %p370 = scmp.ne.s32.totalorder %s359, %s360
      %p371 = scmp.eq.s32.totalorder %s37, 0
      %p372 = por %p370, %p371
      %p373 = scmp.ne.s32.totalorder %s359, %s360
      %p374 = scmp.eq.s32.totalorder %s38, 5
      %p375 = por %p373, %p374
      %p377 = scmp.ne.s32.totalorder %s360, %s376
      %p378 = scmp.eq.s32.totalorder %s38, 0
      %p379 = por %p377, %p378
      %s380 = ssub.s32 %s40, %s47
      %p381 = scmp.eq.s32.totalorder %s380, 0
      %s383 = sadd.s32 %s382, 1
      %s384 = scalar_select %p381, %s382, %s383
      %p387 = pneg %p381
      %p388 = scmp.eq.s32.totalorder %s32, 5
      %p389 = por %p387, %p388
      %p390 = scmp.ne.s32.totalorder %s382, %s385
      %p391 = scmp.eq.s32.totalorder %s32, 0
      %p392 = por %p390, %p391
      %p393 = scmp.ne.s32.totalorder %s382, %s385
      %p394 = scmp.eq.s32.totalorder %s37, 5
      %p395 = por %p393, %p394
      %p396 = scmp.ne.s32.totalorder %s385, %s386
      %p397 = scmp.eq.s32.totalorder %s37, 0
      %p398 = por %p396, %p397
      %p399 = scmp.ne.s32.totalorder %s385, %s386
      %p400 = scmp.eq.s32.totalorder %s38, 5
      %p401 = por %p399, %p400
      %p403 = scmp.ne.s32.totalorder %s386, %s402
      %p404 = scmp.eq.s32.totalorder %s38, 0
      %p405 = por %p403, %p404
      %s407 = sadd.s32 %s406, 1
      %p410 = scmp.eq.s32.totalorder %s32, 5
      %p411 = scmp.ne.s32.totalorder %s406, %s408
      %p412 = scmp.eq.s32.totalorder %s32, 0
      %p413 = por %p411, %p412
      %p414 = scmp.ne.s32.totalorder %s406, %s408
      %p415 = scmp.eq.s32.totalorder %s37, 5
      %p416 = por %p414, %p415
      %p417 = scmp.ne.s32.totalorder %s408, %s409
      %p418 = scmp.eq.s32.totalorder %s37, 0
      %p419 = por %p417, %p418
      %p420 = scmp.ne.s32.totalorder %s408, %s409
      %p421 = scmp.eq.s32.totalorder %s38, 5
      %p422 = por %p420, %p421
      %p424 = scmp.ne.s32.totalorder %s409, %s423
      %p425 = scmp.eq.s32.totalorder %s38, 0
      %p426 = por %p424, %p425
      %s428 = sadd.s32 %s427, 1
      %p431 = scmp.eq.s32.totalorder %s32, 5
      %p432 = scmp.ne.s32.totalorder %s427, %s429
      %p433 = scmp.eq.s32.totalorder %s32, 0
      %p434 = por %p432, %p433
      %p435 = scmp.ne.s32.totalorder %s427, %s429
      %p436 = scmp.eq.s32.totalorder %s37, 5
      %p437 = por %p435, %p436
      %p438 = scmp.ne.s32.totalorder %s429, %s430
      %p439 = scmp.eq.s32.totalorder %s37, 0
      %p440 = por %p438, %p439
      %p441 = scmp.ne.s32.totalorder %s429, %s430
      %p442 = scmp.eq.s32.totalorder %s38, 5
      %p443 = por %p441, %p442
      %p445 = scmp.ne.s32.totalorder %s430, %s444
      %p446 = scmp.eq.s32.totalorder %s38, 0
      %p447 = por %p445, %p446
      %s448 = ssub.s32 %s39, %s51
      %p449 = scmp.eq.s32.totalorder %s448, 0
      %s451 = sadd.s32 %s450, 1
      %s452 = scalar_select %p449, %s450, %s451
      %p455 = pneg %p449
      %p456 = scmp.eq.s32.totalorder %s32, 5
      %p457 = por %p455, %p456
      %p458 = scmp.ne.s32.totalorder %s450, %s453
      %p459 = scmp.eq.s32.totalorder %s32, 0
      %p460 = por %p458, %p459
      %p461 = scmp.ne.s32.totalorder %s450, %s453
      %p462 = scmp.eq.s32.totalorder %s37, 5
      %p463 = por %p461, %p462
      %p464 = scmp.ne.s32.totalorder %s453, %s454
      %p465 = scmp.eq.s32.totalorder %s37, 0
      %p466 = por %p464, %p465
      %p467 = scmp.ne.s32.totalorder %s453, %s454
      %p468 = scmp.eq.s32.totalorder %s38, 5
      %p469 = por %p467, %p468
      %p471 = scmp.ne.s32.totalorder %s454, %s470
      %p472 = scmp.eq.s32.totalorder %s38, 0
      %p473 = por %p471, %p472
      %p474 = scmp.le.s32.totalorder 1, %s32
      %p475 = scmp.lt.s32.totalorder %s32, 7
      %p476 = pnand %p474, %p475
      %p477 = pneg %p476
      // Predicated region
      $region9: #{tpu_custom_call.1} parent=5 // pred_check
        _
      $region10: #{tpu_custom_call.1} parent=5 // pred_check_branch
        %479 = sbr.rel (%p476) target = $region12
      $region11: #{tpu_custom_call.1} parent=5 // pred_region
        %s480 = ssub.s32 %s32, 1
        // Predicated region
        $region13: #{tpu_custom_call.1} parent=11 // pred_check
          %p481 = pneg %p65
        $region14: #{tpu_custom_call.1} parent=11 // pred_check_branch
          %483 = sbr.rel (%p481) target = $region16
        $region15: #{tpu_custom_call.1} parent=11 // pred_region
          %s485 = ssub.s32 8192, 8192
          %486 = vsyncadd [#allocation6], %s485
          %s487 = sshll.u32 [#allocation5], 4
          %s488 = int_to_ptr.vmem [resolvable:$true] %s487
          %493 = dma.hbm_to_vmem [thread:$0]  %s1, 8192, %s488, [#allocation6], 128, 128, 8
        $region16: #{tpu_custom_call.1} parent=11 // pred_fallthru
          _
        // Predicated region
        $region17: #{tpu_custom_call.1} parent=11 // pred_check
          %p494 = pneg %p86
        $region18: #{tpu_custom_call.1} parent=11 // pred_check_branch
          %496 = sbr.rel (%p494) target = $region20
        $region19: #{tpu_custom_call.1} parent=11 // pred_region
          %s498 = ssub.s32 128, 128
          %499 = vsyncadd [#allocation9], %s498
          %s501 = sshll.u32 [#allocation8], 4
          %s502 = int_to_ptr.vmem [resolvable:$true] %s501
          %504 = dma.hbm_to_vmem [thread:$0]  %s2, 128, %s502, [#allocation9]
        $region20: #{tpu_custom_call.1} parent=11 // pred_fallthru
          _
        // Predicated region
        $region21: #{tpu_custom_call.1} parent=11 // pred_check
          %p505 = pneg %p419
        $region22: #{tpu_custom_call.1} parent=11 // pred_check_branch
          %507 = sbr.rel (%p505) target = $region24
        $region23: #{tpu_custom_call.1} parent=11 // pred_region
          _
        $region24: #{tpu_custom_call.1} parent=11 // pred_fallthru
          _
        // Predicated region
        $region25: #{tpu_custom_call.1} parent=11 // pred_check
          %p508 = pneg %p440
        $region26: #{tpu_custom_call.1} parent=11 // pred_check_branch
          %510 = sbr.rel (%p508) target = $region28
        $region27: #{tpu_custom_call.1} parent=11 // pred_region
          _
        $region28: #{tpu_custom_call.1} parent=11 // pred_fallthru
          _
      $region12: #{tpu_custom_call.1} parent=5 // pred_fallthru
        _
      %p511 = scmp.lt.s32.totalorder %s32, 6
      // Predicated region
      $region29: #{tpu_custom_call.1} parent=5 // pred_check
        %p512 = pneg %p511
      $region30: #{tpu_custom_call.1} parent=5 // pred_check_branch
        %514 = sbr.rel (%p512) target = $region32
      $region31: #{tpu_custom_call.1} parent=5 // pred_region
        // Predicated region
        $region33: #{tpu_custom_call.1} parent=31 // pred_check
          %p515 = pneg %p106
        $region34: #{tpu_custom_call.1} parent=31 // pred_check_branch
          %517 = sbr.rel (%p515) target = $region36
        $region35: #{tpu_custom_call.1} parent=31 // pred_region
          %s518 = sand.u32 %s32, 1
          %s519 = scalar_lea.sflag [#allocation6], %s518
          %s520 = sand.u32 %s96, 1
          %s521 = scalar_lea.vmem [#allocation10], %s520
          %s523 = ssub.s32 16, 16
          %524 = vsyncadd %s519, %s523
          %s525 = smul.addr %s40, 16
          %s526 = scalar_lea.hbm %s3, %s525
          %s528 = sshll.u32 %s521, 4
          %s529 = int_to_ptr.vmem [resolvable:$true] %s528
          %531 = dma.hbm_to_vmem [thread:$0]  %s526, 16, %s529, %s519
        $region36: #{tpu_custom_call.1} parent=31 // pred_fallthru
          _
        // Predicated region
        $region37: #{tpu_custom_call.1} parent=31 // pred_check
          %p532 = pneg %p132
        $region38: #{tpu_custom_call.1} parent=31 // pred_check_branch
          %534 = sbr.rel (%p532) target = $region40
        $region39: #{tpu_custom_call.1} parent=31 // pred_region
          %s535 = sand.u32 %s32, 1
          %s536 = scalar_lea.sflag [#allocation6], %s535
          %s537 = sand.u32 %s122, 1
          %s538 = scalar_lea.vmem [#allocation11], %s537
          %s540 = ssub.s32 16, 16
          %541 = vsyncadd %s536, %s540
          %s542 = smul.addr %s40, 16
          %s543 = scalar_lea.hbm %s4, %s542
          %s545 = sshll.u32 %s538, 4
          %s546 = int_to_ptr.vmem [resolvable:$true] %s545
          %548 = dma.hbm_to_vmem [thread:$0]  %s543, 16, %s546, %s536
        $region40: #{tpu_custom_call.1} parent=31 // pred_fallthru
          _
        // Predicated region
        $region41: #{tpu_custom_call.1} parent=31 // pred_check
          %p549 = pneg %p158
        $region42: #{tpu_custom_call.1} parent=31 // pred_check_branch
          %551 = sbr.rel (%p549) target = $region44
        $region43: #{tpu_custom_call.1} parent=31 // pred_region
          %s552 = sand.u32 %s32, 1
          %s553 = scalar_lea.sflag [#allocation6], %s552
          %s554 = sand.u32 %s148, 1
          %s555 = smul.addr %s554, 192
          %s556 = scalar_lea.vmem [#allocation12], %s555
          %s558 = ssub.s32 3072, 3072
          %559 = vsyncadd %s553, %s558
          %s560 = smul.addr %s40, 48
          %s561 = smul.addr %s560, 64
          %s562 = scalar_lea.hbm %s5, %s561
          %s563 = sshll.u32 %s556, 4
          %s564 = int_to_ptr.vmem [resolvable:$true] %s563
          %569 = dma.hbm_to_vmem [thread:$0]  %s562, 3072, %s564, %s553, 192, 192, 12
        $region44: #{tpu_custom_call.1} parent=31 // pred_fallthru
          _
        // Predicated region
        $region45: #{tpu_custom_call.1} parent=31 // pred_check
          %p570 = pneg %p184
        $region46: #{tpu_custom_call.1} parent=31 // pred_check_branch
          %572 = sbr.rel (%p570) target = $region48
        $region47: #{tpu_custom_call.1} parent=31 // pred_region
          %p573 = scmp.lt.s32.totalorder %s40, 2
          %s574 = scalar_select %p573, %s40, 2
          %s575 = smul.addr %s574, 3
          %s576 = scalar_lea.vmem %s6, %s575
        $region48: #{tpu_custom_call.1} parent=31 // pred_fallthru
          _
        // Predicated region
        $region49: #{tpu_custom_call.1} parent=31 // pred_check
          %p577 = pneg %p210
        $region50: #{tpu_custom_call.1} parent=31 // pred_check_branch
          %579 = sbr.rel (%p577) target = $region52
        $region51: #{tpu_custom_call.1} parent=31 // pred_region
          %s580 = sand.u32 %s32, 1
          %s581 = scalar_lea.sflag [#allocation6], %s580
          %s582 = sand.u32 %s200, 1
          %s583 = smul.addr %s582, 64
          %s584 = scalar_lea.vmem [#allocation13], %s583
          %s586 = ssub.s32 1024, 1024
          %587 = vsyncadd %s581, %s586
          %s588 = smul.addr %s40, 16
          %s589 = smul.addr %s588, 64
          %s590 = scalar_lea.hbm %s7, %s589
          %s591 = sshll.u32 %s584, 4
          %s592 = int_to_ptr.vmem [resolvable:$true] %s591
          %597 = dma.hbm_to_vmem [thread:$0]  %s590, 1024, %s592, %s581, 64, 64, 4
        $region52: #{tpu_custom_call.1} parent=31 // pred_fallthru
          _
        // Predicated region
        $region53: #{tpu_custom_call.1} parent=31 // pred_check
          %p598 = pneg %p236
        $region54: #{tpu_custom_call.1} parent=31 // pred_check_branch
          %600 = sbr.rel (%p598) target = $region56
        $region55: #{tpu_custom_call.1} parent=31 // pred_region
          %s601 = sand.u32 %s32, 1
          %s602 = scalar_lea.sflag [#allocation6], %s601
          %s603 = sand.u32 %s226, 1
          %s604 = scalar_lea.vmem [#allocation14], %s603
          %s606 = ssub.s32 16, 16
          %607 = vsyncadd %s602, %s606
          %s608 = smul.addr %s40, 16
          %s609 = scalar_lea.hbm %s8, %s608
          %s611 = sshll.u32 %s604, 4
          %s612 = int_to_ptr.vmem [resolvable:$true] %s611
          %614 = dma.hbm_to_vmem [thread:$0]  %s609, 16, %s612, %s602
        $region56: #{tpu_custom_call.1} parent=31 // pred_fallthru
          _
        // Predicated region
        $region57: #{tpu_custom_call.1} parent=31 // pred_check
          %p615 = pneg %p262
        $region58: #{tpu_custom_call.1} parent=31 // pred_check_branch
          %617 = sbr.rel (%p615) target = $region60
        $region59: #{tpu_custom_call.1} parent=31 // pred_region
          %s618 = sand.u32 %s32, 1
          %s619 = scalar_lea.sflag [#allocation6], %s618
          %s620 = sand.u32 %s252, 1
          %s621 = scalar_lea.vmem [#allocation15], %s620
          %s623 = ssub.s32 16, 16
          %624 = vsyncadd %s619, %s623
          %s625 = smul.addr %s40, 16
          %s626 = scalar_lea.hbm %s9, %s625
          %s628 = sshll.u32 %s621, 4
          %s629 = int_to_ptr.vmem [resolvable:$true] %s628
          %631 = dma.hbm_to_vmem [thread:$0]  %s626, 16, %s629, %s619
        $region60: #{tpu_custom_call.1} parent=31 // pred_fallthru
          _
        // Predicated region
        $region61: #{tpu_custom_call.1} parent=31 // pred_check
          %p632 = pneg %p288
        $region62: #{tpu_custom_call.1} parent=31 // pred_check_branch
          %634 = sbr.rel (%p632) target = $region64
        $region63: #{tpu_custom_call.1} parent=31 // pred_region
          %s635 = sand.u32 %s32, 1
          %s636 = scalar_lea.sflag [#allocation6], %s635
          %s637 = sand.u32 %s278, 1
          %s638 = scalar_lea.vmem [#allocation16], %s637
          %s640 = ssub.s32 16, 16
          %641 = vsyncadd %s636, %s640
          %s642 = smul.addr %s40, 16
          %s643 = scalar_lea.hbm %s10, %s642
          %s645 = sshll.u32 %s638, 4
          %s646 = int_to_ptr.vmem [resolvable:$true] %s645
          %648 = dma.hbm_to_vmem [thread:$0]  %s643, 16, %s646, %s636
        $region64: #{tpu_custom_call.1} parent=31 // pred_fallthru
          _
        // Predicated region
        $region65: #{tpu_custom_call.1} parent=31 // pred_check
          %p649 = pneg %p314
        $region66: #{tpu_custom_call.1} parent=31 // pred_check_branch
          %651 = sbr.rel (%p649) target = $region68
        $region67: #{tpu_custom_call.1} parent=31 // pred_region
          %s652 = sand.u32 %s32, 1
          %s653 = scalar_lea.sflag [#allocation6], %s652
          %s654 = sand.u32 %s304, 1
          %s655 = smul.addr %s654, 256
          %s656 = scalar_lea.vmem [#allocation17], %s655
          %s658 = ssub.s32 4096, 4096
          %659 = vsyncadd %s653, %s658
          %s660 = smul.addr %s40, 64
          %s661 = smul.addr %s660, 64
          %s662 = scalar_lea.hbm %s11, %s661
          %s663 = sshll.u32 %s656, 4
          %s664 = int_to_ptr.vmem [resolvable:$true] %s663
          %669 = dma.hbm_to_vmem [thread:$0]  %s662, 4096, %s664, %s653, 256, 256, 16
        $region68: #{tpu_custom_call.1} parent=31 // pred_fallthru
          _
        // Predicated region
        $region69: #{tpu_custom_call.1} parent=31 // pred_check
          %p670 = pneg %p340
        $region70: #{tpu_custom_call.1} parent=31 // pred_check_branch
          %672 = sbr.rel (%p670) target = $region72
        $region71: #{tpu_custom_call.1} parent=31 // pred_region
          %p673 = scmp.lt.s32.totalorder %s40, 2
          %s674 = scalar_select %p673, %s40, 2
          %s675 = smul.addr %s674, 4
          %s676 = scalar_lea.vmem %s12, %s675
        $region72: #{tpu_custom_call.1} parent=31 // pred_fallthru
          _
        // Predicated region
        $region73: #{tpu_custom_call.1} parent=31 // pred_check
          %p677 = pneg %p366
        $region74: #{tpu_custom_call.1} parent=31 // pred_check_branch
          %679 = sbr.rel (%p677) target = $region76
        $region75: #{tpu_custom_call.1} parent=31 // pred_region
          %s680 = sand.u32 %s32, 1
          %s681 = scalar_lea.sflag [#allocation6], %s680
          %s682 = sand.u32 %s356, 1
          %s683 = smul.addr %s682, 256
          %s684 = scalar_lea.vmem [#allocation18], %s683
          %s686 = ssub.s32 4096, 4096
          %687 = vsyncadd %s681, %s686
          %s688 = smul.addr %s40, 64
          %s689 = smul.addr %s688, 64
          %s690 = scalar_lea.hbm %s13, %s689
          %s691 = sshll.u32 %s684, 4
          %s692 = int_to_ptr.vmem [resolvable:$true] %s691
          %697 = dma.hbm_to_vmem [thread:$0]  %s690, 4096, %s692, %s681, 64, 64, 4
        $region76: #{tpu_custom_call.1} parent=31 // pred_fallthru
          _
        // Predicated region
        $region77: #{tpu_custom_call.1} parent=31 // pred_check
          %p698 = pneg %p392
        $region78: #{tpu_custom_call.1} parent=31 // pred_check_branch
          %700 = sbr.rel (%p698) target = $region80
        $region79: #{tpu_custom_call.1} parent=31 // pred_region
          %p701 = scmp.lt.s32.totalorder %s40, 2
          %s702 = scalar_select %p701, %s40, 2
          %s703 = scalar_lea.vmem %s14, %s702
        $region80: #{tpu_custom_call.1} parent=31 // pred_fallthru
          _
      $region32: #{tpu_custom_call.1} parent=5 // pred_fallthru
        _
      %p704 = scmp.le.s32.totalorder 1, %s32
      %p705 = scmp.lt.s32.totalorder %s32, 7
      %p706 = pnand %p704, %p705
      %p707 = pneg %p706
      // Predicated region
      $region81: #{tpu_custom_call.1} parent=5 // pred_check
        _
      $region82: #{tpu_custom_call.1} parent=5 // pred_check_branch
        %709 = sbr.rel (%p706) target = $region84
      $region83: #{tpu_custom_call.1} parent=5 // pred_region
        %s710 = ssub.s32 %s32, 1
        // Predicated region
        $region85: #{tpu_custom_call.1} parent=83 // pred_check
          %p711 = pneg %p65
        $region86: #{tpu_custom_call.1} parent=83 // pred_check_branch
          %713 = sbr.rel (%p711) target = $region88
        $region87: #{tpu_custom_call.1} parent=83 // pred_region
          %714 = dma.done [#allocation6], 8192
        $region88: #{tpu_custom_call.1} parent=83 // pred_fallthru
          _
        // Predicated region
        $region89: #{tpu_custom_call.1} parent=83 // pred_check
          %p715 = pneg %p86
        $region90: #{tpu_custom_call.1} parent=83 // pred_check_branch
          %717 = sbr.rel (%p715) target = $region92
        $region91: #{tpu_custom_call.1} parent=83 // pred_region
          %718 = dma.done [#allocation9], 128
        $region92: #{tpu_custom_call.1} parent=83 // pred_fallthru
          _
        %s719 = sand.u32 %s37, 1
        %s720 = scalar_lea.sflag [#allocation6], %s719
        %s721 = sand.u32 %s99, 1
        %s722 = scalar_lea.vmem [#allocation10], %s721
        // Predicated region
        $region93: #{tpu_custom_call.1} parent=83 // pred_check
          %p723 = pneg %p112
        $region94: #{tpu_custom_call.1} parent=83 // pred_check_branch
          %725 = sbr.rel (%p723) target = $region96
        $region95: #{tpu_custom_call.1} parent=83 // pred_region
          %726 = dma.done %s720, 16
        $region96: #{tpu_custom_call.1} parent=83 // pred_fallthru
          _
        %s727 = sand.u32 %s37, 1
        %s728 = scalar_lea.sflag [#allocation6], %s727
        %s729 = sand.u32 %s125, 1
        %s730 = scalar_lea.vmem [#allocation11], %s729
        // Predicated region
        $region97: #{tpu_custom_call.1} parent=83 // pred_check
          %p731 = pneg %p138
        $region98: #{tpu_custom_call.1} parent=83 // pred_check_branch
          %733 = sbr.rel (%p731) target = $region100
        $region99: #{tpu_custom_call.1} parent=83 // pred_region
          %734 = dma.done %s728, 16
        $region100: #{tpu_custom_call.1} parent=83 // pred_fallthru
          _
        %s735 = sand.u32 %s37, 1
        %s736 = scalar_lea.sflag [#allocation6], %s735
        %s737 = sand.u32 %s151, 1
        %s738 = smul.addr %s737, 192
        %s739 = scalar_lea.vmem [#allocation12], %s738
        // Predicated region
        $region101: #{tpu_custom_call.1} parent=83 // pred_check
          %p740 = pneg %p164
        $region102: #{tpu_custom_call.1} parent=83 // pred_check_branch
          %742 = sbr.rel (%p740) target = $region104
        $region103: #{tpu_custom_call.1} parent=83 // pred_region
          %743 = dma.done %s736, 3072
        $region104: #{tpu_custom_call.1} parent=83 // pred_fallthru
          _
        %s744 = sand.u32 %s37, 1
        %s745 = scalar_lea.sflag [#allocation6], %s744
        %s746 = sand.u32 %s203, 1
        %s747 = smul.addr %s746, 64
        %s748 = scalar_lea.vmem [#allocation13], %s747
        // Predicated region
        $region105: #{tpu_custom_call.1} parent=83 // pred_check
          %p749 = pneg %p216
        $region106: #{tpu_custom_call.1} parent=83 // pred_check_branch
          %751 = sbr.rel (%p749) target = $region108
        $region107: #{tpu_custom_call.1} parent=83 // pred_region
          %752 = dma.done %s745, 1024
        $region108: #{tpu_custom_call.1} parent=83 // pred_fallthru
          _
        %s753 = sand.u32 %s37, 1
        %s754 = scalar_lea.sflag [#allocation6], %s753
        %s755 = sand.u32 %s229, 1
        %s756 = scalar_lea.vmem [#allocation14], %s755
        // Predicated region
        $region109: #{tpu_custom_call.1} parent=83 // pred_check
          %p757 = pneg %p242
        $region110: #{tpu_custom_call.1} parent=83 // pred_check_branch
          %759 = sbr.rel (%p757) target = $region112
        $region111: #{tpu_custom_call.1} parent=83 // pred_region
          %760 = dma.done %s754, 16
        $region112: #{tpu_custom_call.1} parent=83 // pred_fallthru
          _
        %s761 = sand.u32 %s37, 1
        %s762 = scalar_lea.sflag [#allocation6], %s761
        %s763 = sand.u32 %s255, 1
        %s764 = scalar_lea.vmem [#allocation15], %s763
        // Predicated region
        $region113: #{tpu_custom_call.1} parent=83 // pred_check
          %p765 = pneg %p268
        $region114: #{tpu_custom_call.1} parent=83 // pred_check_branch
          %767 = sbr.rel (%p765) target = $region116
        $region115: #{tpu_custom_call.1} parent=83 // pred_region
          %768 = dma.done %s762, 16
        $region116: #{tpu_custom_call.1} parent=83 // pred_fallthru
          _
        %s769 = sand.u32 %s37, 1
        %s770 = scalar_lea.sflag [#allocation6], %s769
        %s771 = sand.u32 %s281, 1
        %s772 = scalar_lea.vmem [#allocation16], %s771
        // Predicated region
        $region117: #{tpu_custom_call.1} parent=83 // pred_check
          %p773 = pneg %p294
        $region118: #{tpu_custom_call.1} parent=83 // pred_check_branch
          %775 = sbr.rel (%p773) target = $region120
        $region119: #{tpu_custom_call.1} parent=83 // pred_region
          %776 = dma.done %s770, 16
        $region120: #{tpu_custom_call.1} parent=83 // pred_fallthru
          _
        %s777 = sand.u32 %s37, 1
        %s778 = scalar_lea.sflag [#allocation6], %s777
        %s779 = sand.u32 %s307, 1
        %s780 = smul.addr %s779, 256
        %s781 = scalar_lea.vmem [#allocation17], %s780
        // Predicated region
        $region121: #{tpu_custom_call.1} parent=83 // pred_check
          %p782 = pneg %p320
        $region122: #{tpu_custom_call.1} parent=83 // pred_check_branch
          %784 = sbr.rel (%p782) target = $region124
        $region123: #{tpu_custom_call.1} parent=83 // pred_region
          %785 = dma.done %s778, 4096
        $region124: #{tpu_custom_call.1} parent=83 // pred_fallthru
          _
        %s786 = sand.u32 %s37, 1
        %s787 = scalar_lea.sflag [#allocation6], %s786
        %s788 = sand.u32 %s359, 1
        %s789 = smul.addr %s788, 256
        %s790 = scalar_lea.vmem [#allocation18], %s789
        // Predicated region
        $region125: #{tpu_custom_call.1} parent=83 // pred_check
          %p791 = pneg %p372
        $region126: #{tpu_custom_call.1} parent=83 // pred_check_branch
          %793 = sbr.rel (%p791) target = $region128
        $region127: #{tpu_custom_call.1} parent=83 // pred_region
          %794 = dma.done %s787, 4096
        $region128: #{tpu_custom_call.1} parent=83 // pred_fallthru
          _
        %p795 = pneg %p65
        %p796 = pneg %p62
        %p797 = pneg %p86
        %p798 = pneg %p83
        %s799 = sand.u32 %s37, 1
        %s800 = scalar_lea.sflag [#allocation6], %s799
        %s801 = sand.u32 %s99, 1
        %s802 = scalar_lea.vmem [#allocation10], %s801
        %p803 = pneg %p112
        %p804 = pneg %p109
        %s805 = sand.u32 %s37, 1
        %s806 = scalar_lea.sflag [#allocation6], %s805
        %s807 = sand.u32 %s125, 1
        %s808 = scalar_lea.vmem [#allocation11], %s807
        %p809 = pneg %p138
        %p810 = pneg %p135
        %s811 = sand.u32 %s37, 1
        %s812 = scalar_lea.sflag [#allocation6], %s811
        %s813 = sand.u32 %s151, 1
        %s814 = smul.addr %s813, 192
        %s815 = scalar_lea.vmem [#allocation12], %s814
        %p816 = pneg %p164
        %p817 = pneg %p161
        %p818 = scmp.lt.s32.totalorder %s42, 2
        %s819 = scalar_select %p818, %s42, 2
        %s820 = smul.addr %s819, 3
        %s821 = scalar_lea.vmem %s6, %s820
        %p822 = pneg %p190
        %p823 = pneg %p187
        %s824 = sand.u32 %s37, 1
        %s825 = scalar_lea.sflag [#allocation6], %s824
        %s826 = sand.u32 %s203, 1
        %s827 = smul.addr %s826, 64
        %s828 = scalar_lea.vmem [#allocation13], %s827
        %p829 = pneg %p216
        %p830 = pneg %p213
        %s831 = sand.u32 %s37, 1
        %s832 = scalar_lea.sflag [#allocation6], %s831
        %s833 = sand.u32 %s229, 1
        %s834 = scalar_lea.vmem [#allocation14], %s833
        %p835 = pneg %p242
        %p836 = pneg %p239
        %s837 = sand.u32 %s37, 1
        %s838 = scalar_lea.sflag [#allocation6], %s837
        %s839 = sand.u32 %s255, 1
        %s840 = scalar_lea.vmem [#allocation15], %s839
        %p841 = pneg %p268
        %p842 = pneg %p265
        %s843 = sand.u32 %s37, 1
        %s844 = scalar_lea.sflag [#allocation6], %s843
        %s845 = sand.u32 %s281, 1
        %s846 = scalar_lea.vmem [#allocation16], %s845
        %p847 = pneg %p294
        %p848 = pneg %p291
        %s849 = sand.u32 %s37, 1
        %s850 = scalar_lea.sflag [#allocation6], %s849
        %s851 = sand.u32 %s307, 1
        %s852 = smul.addr %s851, 256
        %s853 = scalar_lea.vmem [#allocation17], %s852
        %p854 = pneg %p320
        %p855 = pneg %p317
        %p856 = scmp.lt.s32.totalorder %s42, 2
        %s857 = scalar_select %p856, %s42, 2
        %s858 = smul.addr %s857, 4
        %s859 = scalar_lea.vmem %s12, %s858
        %p860 = pneg %p346
        %p861 = pneg %p343
        %s862 = sand.u32 %s37, 1
        %s863 = scalar_lea.sflag [#allocation6], %s862
        %s864 = sand.u32 %s359, 1
        %s865 = smul.addr %s864, 256
        %s866 = scalar_lea.vmem [#allocation18], %s865
        %p867 = pneg %p372
        %p868 = pneg %p369
        %p869 = scmp.lt.s32.totalorder %s42, 2
        %s870 = scalar_select %p869, %s42, 2
        %s871 = scalar_lea.vmem %s14, %s870
        %p872 = pneg %p398
        %p873 = pneg %p395
        %p874 = pneg %p419
        %p875 = pneg %p416
        %p876 = pneg %p440
        %p877 = pneg %p437
        %p878 = pneg %p466
        %p879 = pneg %p463
        %s880 = sand.u32 %s453, 1
        %s881 = scalar_lea.sflag [#allocation7], %s880
        %s882 = sand.u32 %s453, 1
        %s883 = smul.addr %s882, 8
        %s884 = scalar_lea.vmem [#allocation19], %s883
        %p885 = scmp.lt.s32.totalorder %s42, 2
        %s886 = scalar_select %p885, %s42, 2
        %s887 = smul.addr %s886, 3
        %s888 = scalar_lea.vmem %s6, %s887
        %p889 = scmp.lt.s32.totalorder %s42, 2
        %s890 = scalar_select %p889, %s42, 2
        %s891 = smul.addr %s890, 4
        %s892 = scalar_lea.vmem %s12, %s891
        %p893 = scmp.lt.s32.totalorder %s42, 2
        %s894 = scalar_select %p893, %s42, 2
        %s895 = scalar_lea.vmem %s14, %s894
        %p897 = scmp.eq.s32.totalorder %s42, 0
        // Predicated region
        $region129: #{tpu_custom_call.1} parent=83 // pred_check
          %p898 = pneg %p897
        $region130: #{tpu_custom_call.1} parent=83 // pred_check_branch
          %900 = sbr.rel (%p898) target = $region132
        $region131: #{tpu_custom_call.1} parent=83 // pred_region
          %s901 = smul.u32 %s41, 128
          %s902 = sld [smem:[#allocation4 + %s901]]
          %s903 = scalar_lea.vmem [#allocation5], %s902
          %v904 = vld [vmem:[%s903] sm:$0x1]
          %v905 = vld [vmem:[#allocation8] sm:$0x1]
          %v906 = vadd.f32 %v904, %v905
          %907 = vst [vmem:[#allocation2] sm:$0x1] %v906
          %s908 = sadd.s32 %s901, 1
          %s909 = sld [smem:[#allocation4 + %s908]]
          %s910 = scalar_lea.vmem [#allocation5], %s909
          %v911 = vld [vmem:[%s910] sm:$0x1]
          %v912 = vld [vmem:[#allocation8 + $0x1] sm:$0x1]
          %v913 = vadd.f32 %v911, %v912
          %914 = vst [vmem:[#allocation2 + $0x1] sm:$0x1] %v913
          %s915 = sadd.s32 %s901, 2
          %s916 = sld [smem:[#allocation4 + %s915]]
          %s917 = scalar_lea.vmem [#allocation5], %s916
          %v918 = vld [vmem:[%s917] sm:$0x1]
          %v919 = vld [vmem:[#allocation8 + $0x2] sm:$0x1]
          %v920 = vadd.f32 %v918, %v919
          %921 = vst [vmem:[#allocation2 + $0x2] sm:$0x1] %v920
          %s922 = sadd.s32 %s901, 3
          %s923 = sld [smem:[#allocation4 + %s922]]
          %s924 = scalar_lea.vmem [#allocation5], %s923
          %v925 = vld [vmem:[%s924] sm:$0x1]
          %v926 = vld [vmem:[#allocation8 + $0x3] sm:$0x1]
          %v927 = vadd.f32 %v925, %v926
          %928 = vst [vmem:[#allocation2 + $0x3] sm:$0x1] %v927
          %s929 = sadd.s32 %s901, 4
          %s930 = sld [smem:[#allocation4 + %s929]]
          %s931 = scalar_lea.vmem [#allocation5], %s930
          %v932 = vld [vmem:[%s931] sm:$0x1]
          %v933 = vld [vmem:[#allocation8 + $0x4] sm:$0x1]
          %v934 = vadd.f32 %v932, %v933
          %935 = vst [vmem:[#allocation2 + $0x4] sm:$0x1] %v934
          %s936 = sadd.s32 %s901, 5
          %s937 = sld [smem:[#allocation4 + %s936]]
          %s938 = scalar_lea.vmem [#allocation5], %s937
          %v939 = vld [vmem:[%s938] sm:$0x1]
          %v940 = vld [vmem:[#allocation8 + $0x5] sm:$0x1]
          %v941 = vadd.f32 %v939, %v940
          %942 = vst [vmem:[#allocation2 + $0x5] sm:$0x1] %v941
          %s943 = sadd.s32 %s901, 6
          %s944 = sld [smem:[#allocation4 + %s943]]
          %s945 = scalar_lea.vmem [#allocation5], %s944
          %v946 = vld [vmem:[%s945] sm:$0x1]
          %v947 = vld [vmem:[#allocation8 + $0x6] sm:$0x1]
          %v948 = vadd.f32 %v946, %v947
          %949 = vst [vmem:[#allocation2 + $0x6] sm:$0x1] %v948
          %s950 = sadd.s32 %s901, 7
          %s951 = sld [smem:[#allocation4 + %s950]]
          %s952 = scalar_lea.vmem [#allocation5], %s951
          %v953 = vld [vmem:[%s952] sm:$0x1]
          %v954 = vld [vmem:[#allocation8 + $0x7] sm:$0x1]
          %v955 = vadd.f32 %v953, %v954
          %956 = vst [vmem:[#allocation2 + $0x7] sm:$0x1] %v955
        $region132: #{tpu_custom_call.1} parent=83 // pred_fallthru
          _
        %v957 = vld [vmem:[#allocation2] sm:$0xff]
        %v958 = vlaneseq
        %v959 = vshrl.u32 %v958, 7
        %v960 = vlaneseq
        %v961 = vand.u32 %v960, 127
        %vm962 = vcmp.gt.s32.totalorder %v961, %v959
        %v963 = vsel %vm962, -1e+30, 0.0
        %v964 = vld [vmem:[%s722] sm:$0x1]
        %v965 = vld [vmem:[%s730] sm:$0x1]
        %966 = vadd.xlane.f32.xlu0 %v957
        %v967 = vpop.xlane.xlu0 %966
        %v968 = vrcp.pop 128.0
        %v969 = vmul.f32 %v967, %v968
        %v970 = vsub.f32 %v957, %v969
        %v971 = vmul.f32 %v970, %v970
        %972 = vadd.xlane.f32.xlu0 %v971
        %v973 = vpop.xlane.xlu0 %972
        %v974 = vmul.f32 %v973, %v968
        %v975 = vadd.f32 %v974, 1e-05
        %v976 = vrsqrt.pop %v975
        %v977 = vmul.f32 %v970, %v976
        %v979 = vlaneseq
        %v980 = vshrl.u32 %v979, 7
        %v981 = vsub.s32 0, %v980
        %v982 = vrot.slane %v964, %v981
        %v984 = vmul.f32 %v977, %v982
        %v986 = vlaneseq
        %v987 = vshrl.u32 %v986, 7
        %v988 = vsub.s32 0, %v987
        %v989 = vrot.slane %v965, %v988
        %v991 = vadd.f32 %v984, %v989
        %v992 = vpack.c.bf16 %v991, %v991
        %v993 = vld [vmem:[%s739] sm:$0xff]
        %v994 = vld [vmem:[%s739 + $0x8] sm:$0xf]
        %v995 = vld [vmem:[%s739 + $0xc] sm:$0xff]
        %v996 = vld [vmem:[%s739 + $0x14] sm:$0xf]
        %v997 = vld [vmem:[%s739 + $0x18] sm:$0xff]
        %v998 = vld [vmem:[%s739 + $0x20] sm:$0xf]
        %v999 = vld [vmem:[%s739 + $0x24] sm:$0xff]
        %v1000 = vld [vmem:[%s739 + $0x2c] sm:$0xf]
        %v1001 = vld [vmem:[%s739 + $0x30] sm:$0xff]
        %v1002 = vld [vmem:[%s739 + $0x38] sm:$0xf]
        %v1003 = vld [vmem:[%s739 + $0x3c] sm:$0xff]
        %v1004 = vld [vmem:[%s739 + $0x44] sm:$0xf]
        %v1005 = vld [vmem:[%s739 + $0x48] sm:$0xff]
        %v1006 = vld [vmem:[%s739 + $0x50] sm:$0xf]
        %v1007 = vld [vmem:[%s739 + $0x54] sm:$0xff]
        %v1008 = vld [vmem:[%s739 + $0x5c] sm:$0xf]
        %v1009 = vld [vmem:[%s739 + $0x60] sm:$0xff]
        %v1010 = vld [vmem:[%s739 + $0x68] sm:$0xf]
        %v1011 = vld [vmem:[%s739 + $0x6c] sm:$0xff]
        %v1012 = vld [vmem:[%s739 + $0x74] sm:$0xf]
        %v1013 = vld [vmem:[%s739 + $0x78] sm:$0xff]
        %v1014 = vld [vmem:[%s739 + $0x80] sm:$0xf]
        %v1015 = vld [vmem:[%s739 + $0x84] sm:$0xff]
        %v1016 = vld [vmem:[%s739 + $0x8c] sm:$0xf]
        %v1017 = vld [vmem:[%s739 + $0x90] sm:$0xff]
        %v1018 = vld [vmem:[%s739 + $0x98] sm:$0xf]
        %v1019 = vld [vmem:[%s739 + $0x9c] sm:$0xff]
        %v1020 = vld [vmem:[%s739 + $0xa4] sm:$0xf]
        %v1021 = vld [vmem:[%s739 + $0xa8] sm:$0xff]
        %v1022 = vld [vmem:[%s739 + $0xb0] sm:$0xf]
        %v1023 = vld [vmem:[%s739 + $0xb4] sm:$0xff]
        %v1024 = vld [vmem:[%s739 + $0xbc] sm:$0xf]
        %v1025 = vld [vmem:[%s888] sm:$0x7]
        %v1027 = vlaneseq
        %v1028 = vshrl.u32 %v1027, 7
        %v1029 = vsub.s32 0, %v1028
        %v1030 = vrot.slane %v1025, %v1029
        %v1031 = vlaneseq
        %v1032 = vshrl.u32 %v1031, 7
        %v1033 = vsub.s32 1, %v1032
        %v1034 = vrot.slane %v1025, %v1033
        %v1035 = vlaneseq
        %v1036 = vshrl.u32 %v1035, 7
        %v1037 = vsub.s32 2, %v1036
        %v1038 = vrot.slane %v1025, %v1037
        %v1074 = vunpack.c.l.b16 %v993
        %v1075 = vunpack.c.h.b16 %v993
        %v1076 = vunpack.c.l.b16 %v994
        %v1077 = vunpack.c.l.b16 %v995
        %v1078 = vunpack.c.h.b16 %v995
        %v1079 = vunpack.c.l.b16 %v996
        %v1080 = vunpack.c.l.b16 %v997
        %v1081 = vunpack.c.h.b16 %v997
        %v1082 = vunpack.c.l.b16 %v998
        %v1083 = vunpack.c.l.b16 %v999
        %v1084 = vunpack.c.h.b16 %v999
        %v1085 = vunpack.c.l.b16 %v1000
        %v1086 = vunpack.c.l.b16 %v1001
        %v1087 = vunpack.c.h.b16 %v1001
        %v1088 = vunpack.c.l.b16 %v1002
        %v1089 = vunpack.c.l.b16 %v1003
        %v1090 = vunpack.c.h.b16 %v1003
        %v1091 = vunpack.c.l.b16 %v1004
        %v1092 = vunpack.c.l.b16 %v1005
        %v1093 = vunpack.c.h.b16 %v1005
        %v1094 = vunpack.c.l.b16 %v1006
        %v1095 = vunpack.c.l.b16 %v1007
        %v1096 = vunpack.c.h.b16 %v1007
        %v1097 = vunpack.c.l.b16 %v1008
        %v1098 = vunpack.c.l.b16 %v1009
        %v1099 = vunpack.c.h.b16 %v1009
        %v1100 = vunpack.c.l.b16 %v1010
        %v1101 = vunpack.c.l.b16 %v1011
        %v1102 = vunpack.c.h.b16 %v1011
        %v1103 = vunpack.c.l.b16 %v1012
        %v1104 = vunpack.c.l.b16 %v1013
        %v1105 = vunpack.c.h.b16 %v1013
        %v1106 = vunpack.c.l.b16 %v1014
        %v1107 = vunpack.c.l.b16 %v1015
        %v1108 = vunpack.c.h.b16 %v1015
        %v1109 = vunpack.c.l.b16 %v1016
        %v1110 = vunpack.c.l.b16 %v1017
        %v1111 = vunpack.c.h.b16 %v1017
        %v1112 = vunpack.c.l.b16 %v1018
        %v1113 = vunpack.c.l.b16 %v1019
        %v1114 = vunpack.c.h.b16 %v1019
        %v1115 = vunpack.c.l.b16 %v1020
        %v1116 = vunpack.c.l.b16 %v1021
        %v1117 = vunpack.c.h.b16 %v1021
        %v1118 = vunpack.c.l.b16 %v1022
        %v1119 = vunpack.c.l.b16 %v1023
        %v1120 = vunpack.c.h.b16 %v1023
        %v1121 = vunpack.c.l.b16 %v1024
        %v1122 = vpack.c.b16 %v1077, %v1074
        %v1123 = vpack.c.b16 %v1078, %v1075
        %v1124 = vpack.c.b16 %v1079, %v1076
        %v1125 = vpack.c.b16 %v1083, %v1080
        %v1126 = vpack.c.b16 %v1084, %v1081
        %v1127 = vpack.c.b16 %v1085, %v1082
        %v1128 = vpack.c.b16 %v1089, %v1086
        %v1129 = vpack.c.b16 %v1090, %v1087
        %v1130 = vpack.c.b16 %v1091, %v1088
        %v1131 = vpack.c.b16 %v1095, %v1092
        %v1132 = vpack.c.b16 %v1096, %v1093
        %v1133 = vpack.c.b16 %v1097, %v1094
        %v1134 = vpack.c.b16 %v1101, %v1098
        %v1135 = vpack.c.b16 %v1102, %v1099
        %v1136 = vpack.c.b16 %v1103, %v1100
        %v1137 = vpack.c.b16 %v1107, %v1104
        %v1138 = vpack.c.b16 %v1108, %v1105
        %v1139 = vpack.c.b16 %v1109, %v1106
        %v1140 = vpack.c.b16 %v1113, %v1110
        %v1141 = vpack.c.b16 %v1114, %v1111
        %v1142 = vpack.c.b16 %v1115, %v1112
        %v1143 = vpack.c.b16 %v1119, %v1116
        %v1144 = vpack.c.b16 %v1120, %v1117
        %v1145 = vpack.c.b16 %v1121, %v1118
        %1170 = vmatprep.subr.bf16.mxu0 %v1144
        %1171 = vmatpush1.bf16.msra.mxu0 %v1143
        %1172 = vmatprep.subr.bf16.mxu0 %v1141
        %1173 = vmatpush1.bf16.msra.mxu0 %v1140
        %1174 = vmatprep.subr.bf16.mxu0 %v1138
        %1175 = vmatpush1.bf16.msra.mxu0 %v1137
        %1176 = vmatprep.subr.bf16.mxu0 %v1135
        %1177 = vmatpush1.bf16.msra.mxu0 %v1134
        %1178 = vmatprep.subr.bf16.mxu0 %v1132
        %1179 = vmatpush1.bf16.msra.mxu0 %v1131
        %1180 = vmatprep.subr.bf16.mxu0 %v1129
        %1181 = vmatpush1.bf16.msra.mxu0 %v1128
        %1182 = vmatprep.subr.bf16.mxu0 %v1126
        %1183 = vmatpush1.bf16.msra.mxu0 %v1125
        %1184 = vmatprep.subr.bf16.mxu0 %v1123
        %1185 = vmatpush1.bf16.msra.mxu0 %v1122
        %1186 = vmatprep.subr.bf16.mxu0 0
        %1187 = vmatpush2.bf16.msra.mxu0 0
        %1188 = vmatprep.subr.bf16.mxu0 0
        %1189 = vmatpush2.bf16.msra.mxu0 0
        %1190 = vmatprep.subr.bf16.mxu0 0
        %1191 = vmatpush2.bf16.msra.mxu0 0
        %1192 = vmatprep.subr.bf16.mxu0 0
        %1193 = vmatpush2.bf16.msra.mxu0 0
        %1194 = vmatprep.subr.bf16.mxu0 0
        %1195 = vmatpush2.bf16.msra.mxu0 0
        %1196 = vmatprep.subr.bf16.mxu0 0
        %1197 = vmatpush2.bf16.msra.mxu0 0
        %1198 = vmatprep.subr.bf16.mxu0 0
        %1199 = vmatpush2.bf16.msra.mxu0 0
        %1200 = vmatprep.subr.bf16.mxu0 0
        %1201 = vmatpush2.bf16.msra.mxu0 0
        %1202 = vmatprep.mubr.bf16.mxu0 0
        %1203 = vmatmul.mubr.bf16.gmra.mxu0 %v992
        %v1204 = vpop.f32.mrf.mxu0
        %v1205 = vadd.f32 %v1030, %v1204
        %v1206 = vpop.f32.mrf.mxu0
        %v1207 = vadd.f32 %v1034, %v1206
        %v1208 = vpop.f32.mrf.mxu0
        %v1209 = vpop.f32.mrf.mxu0
        %1210 = vdwg.mxu0
        %1211 = vmatprep.subr.bf16.mxu0 0
        %1212 = vmatpush1.bf16.msra.mxu0 %v1145
        %1213 = vmatprep.subr.bf16.mxu0 0
        %1214 = vmatpush1.bf16.msra.mxu0 %v1142
        %1215 = vmatprep.subr.bf16.mxu0 0
        %1216 = vmatpush1.bf16.msra.mxu0 %v1139
        %1217 = vmatprep.subr.bf16.mxu0 0
        %1218 = vmatpush1.bf16.msra.mxu0 %v1136
        %1219 = vmatprep.subr.bf16.mxu0 0
        %1220 = vmatpush1.bf16.msra.mxu0 %v1133
        %1221 = vmatprep.subr.bf16.mxu0 0
        %1222 = vmatpush1.bf16.msra.mxu0 %v1130
        %1223 = vmatprep.subr.bf16.mxu0 0
        %1224 = vmatpush1.bf16.msra.mxu0 %v1127
        %1225 = vmatprep.subr.bf16.mxu0 0
        %1226 = vmatpush1.bf16.msra.mxu0 %v1124
        %1227 = vmatprep.subr.bf16.mxu0 0
        %1228 = vmatpush2.bf16.msra.mxu0 0
        %1229 = vmatprep.subr.bf16.mxu0 0
        %1230 = vmatpush2.bf16.msra.mxu0 0
        %1231 = vmatprep.subr.bf16.mxu0 0
        %1232 = vmatpush2.bf16.msra.mxu0 0
        %1233 = vmatprep.subr.bf16.mxu0 0
        %1234 = vmatpush2.bf16.msra.mxu0 0
        %1235 = vmatprep.subr.bf16.mxu0 0
        %1236 = vmatpush2.bf16.msra.mxu0 0
        %1237 = vmatprep.subr.bf16.mxu0 0
        %1238 = vmatpush2.bf16.msra.mxu0 0
        %1239 = vmatprep.subr.bf16.mxu0 0
        %1240 = vmatpush2.bf16.msra.mxu0 0
        %1241 = vmatprep.subr.bf16.mxu0 0
        %1242 = vmatpush2.bf16.msra.mxu0 0
        %1243 = vmatprep.mubr.bf16.mxu0 0
        %1244 = vmatmul.mubr.bf16.gmra.mxu0 %v992
        %v1245 = vpop.f32.mrf.mxu0
        %v1246 = vadd.f32 %v1038, %v1245
        %v1247 = vpop.f32.mrf.mxu0
        %v1248 = vpop.f32.mrf.mxu0
        %v1249 = vpop.f32.mrf.mxu0
        %1250 = vdwg.mxu0
        %v1251 = vpack.c.bf16 %v1205, %v1205
        %v1252 = vpack.c.bf16 %v1207, %v1207
        %v1253 = vpack.c.bf16 %v1246, %v1246
        %vm1254 = vcmask 261120
        %v1256 = vsel %vm1254, %v1251, 0
        %v1259 = vsel %vm1254, %v1252, 0
        %1261 = vmatprep.subr.bf16.mxu0 0
        %1262 = vmatpush1.bf16.xpose.msra.mxu0 0
        %1263 = vmatprep.subr.bf16.mxu0 0
        %1264 = vmatpush1.bf16.xpose.msra.mxu0 0
        %1265 = vmatprep.subr.bf16.mxu0 0
        %1266 = vmatpush1.bf16.xpose.msra.mxu0 0
        %1267 = vmatprep.subr.bf16.mxu0 0
        %1268 = vmatpush1.bf16.xpose.msra.mxu0 0
        %1269 = vmatprep.subr.bf16.mxu0 0
        %1270 = vmatpush1.bf16.xpose.msra.mxu0 0
        %1271 = vmatprep.subr.bf16.mxu0 0
        %1272 = vmatpush1.bf16.xpose.msra.mxu0 0
        %1273 = vmatprep.subr.bf16.mxu0 0
        %1274 = vmatpush1.bf16.xpose.msra.mxu0 0
        %1275 = vmatprep.subr.bf16.mxu0 0
        %1276 = vmatpush1.bf16.xpose.msra.mxu0 %v1259
        %1277 = vmatprep.subr.bf16.mxu0 0
        %1278 = vmatpush2.bf16.xpose.msra.mxu0 0
        %1279 = vmatprep.subr.bf16.mxu0 0
        %1280 = vmatpush2.bf16.xpose.msra.mxu0 0
        %1281 = vmatprep.subr.bf16.mxu0 0
        %1282 = vmatpush2.bf16.xpose.msra.mxu0 0
        %1283 = vmatprep.subr.bf16.mxu0 0
        %1284 = vmatpush2.bf16.xpose.msra.mxu0 0
        %1285 = vmatprep.subr.bf16.mxu0 0
        %1286 = vmatpush2.bf16.xpose.msra.mxu0 0
        %1287 = vmatprep.subr.bf16.mxu0 0
        %1288 = vmatpush2.bf16.xpose.msra.mxu0 0
        %1289 = vmatprep.subr.bf16.mxu0 0
        %1290 = vmatpush2.bf16.xpose.msra.mxu0 0
        %1291 = vmatprep.subr.bf16.mxu0 0
        %1292 = vmatpush2.bf16.xpose.msra.mxu0 0
        %1293 = vmatprep.mubr.bf16.mxu0 0
        %1294 = vmatmul.mubr.bf16.gmra.mxu0 %v1256
        %v1295 = vpop.f32.mrf.mxu0
        %v1296 = vadd.f32 0.0, %v1295
        %v1297 = vpop.f32.mrf.mxu0
        %v1298 = vpop.f32.mrf.mxu0
        %v1299 = vpop.f32.mrf.mxu0
        %1300 = vdwg.mxu0
        %v1301 = vmul.f32 %v1296, 0.17677669
        %v1302 = vadd.f32 %v1301, %v963
        %vm1303 = vcmask 64512
        %v1304 = vsel %vm1303, %v1302, -inf
        %1305 = vmax.xlane.f32.xlu0 %v1304
        %v1306 = vpop.xlane.xlu0 %1305
        %v1307 = vsub.f32 %v1302, %v1306
        %v1308 = vmul.f32 %v1307, 1.442695
        %v1309 = vpow.pop %v1308
        %v1310 = vsel %vm1303, %v1309, 0.0
        %1311 = vadd.xlane.f32.xlu0 %v1310
        %v1312 = vpop.xlane.xlu0 %1311
        %v1313 = vrcp.pop %v1312
        %v1314 = vmul.f32 %v1309, %v1313
        %v1315 = vpack.c.bf16 %v1314, %v1314
        %v1317 = vsel %vm1303, %v1315, 0
        %vm1319 = vcmask 1043456
        %v1321 = vsel %vm1319, %v1253, 0
        %1323 = vmatprep.subr.bf16.mxu0 0
        %1324 = vmatpush1.bf16.msra.mxu0 0
        %1325 = vmatprep.subr.bf16.mxu0 0
        %1326 = vmatpush1.bf16.msra.mxu0 0
        %1327 = vmatprep.subr.bf16.mxu0 0
        %1328 = vmatpush1.bf16.msra.mxu0 0
        %1329 = vmatprep.subr.bf16.mxu0 0
        %1330 = vmatpush1.bf16.msra.mxu0 0
        %1331 = vmatprep.subr.bf16.mxu0 0
        %1332 = vmatpush1.bf16.msra.mxu0 0
        %1333 = vmatprep.subr.bf16.mxu0 0
        %1334 = vmatpush1.bf16.msra.mxu0 0
        %1335 = vmatprep.subr.bf16.mxu0 0
        %1336 = vmatpush1.bf16.msra.mxu0 0
        %1337 = vmatprep.subr.bf16.mxu0 0
        %1338 = vmatpush1.bf16.msra.mxu0 %v1321
        %1339 = vmatprep.subr.bf16.mxu0 0
        %1340 = vmatpush2.bf16.msra.mxu0 0
        %1341 = vmatprep.subr.bf16.mxu0 0
        %1342 = vmatpush2.bf16.msra.mxu0 0
        %1343 = vmatprep.subr.bf16.mxu0 0
        %1344 = vmatpush2.bf16.msra.mxu0 0
        %1345 = vmatprep.subr.bf16.mxu0 0
        %1346 = vmatpush2.bf16.msra.mxu0 0
        %1347 = vmatprep.subr.bf16.mxu0 0
        %1348 = vmatpush2.bf16.msra.mxu0 0
        %1349 = vmatprep.subr.bf16.mxu0 0
        %1350 = vmatpush2.bf16.msra.mxu0 0
        %1351 = vmatprep.subr.bf16.mxu0 0
        %1352 = vmatpush2.bf16.msra.mxu0 0
        %1353 = vmatprep.subr.bf16.mxu0 0
        %1354 = vmatpush2.bf16.msra.mxu0 0
        %1355 = vmatprep.mubr.bf16.mxu0 0
        %1356 = vmatmul.mubr.bf16.gmra.mxu0 %v1317
        %v1357 = vpop.f32.mrf.mxu0
        %v1358 = vadd.f32 0.0, %v1357
        %v1359 = vpop.f32.mrf.mxu0
        %v1360 = vpop.f32.mrf.mxu0
        %v1361 = vpop.f32.mrf.mxu0
        %1362 = vdwg.mxu0
        %v1363 = vpack.c.bf16 %v1358, %v1358
        %v1364 = vld [vmem:[%s748] sm:$0xf]
        %v1365 = vld [vmem:[%s748 + $0x4] sm:$0xf]
        %v1366 = vld [vmem:[%s748 + $0x8] sm:$0xf]
        %v1367 = vld [vmem:[%s748 + $0xc] sm:$0xf]
        %1369 = vrot.lane.b32.xlu0 %v1251, 96
        %v1370 = vpop.permute.xlu0 %1369
        %1372 = vrot.lane.b32.xlu0 %v1252, 96
        %v1373 = vpop.permute.xlu0 %1372
        %v1375 = vsel %vm1254, %v1370, 0
        %v1378 = vsel %vm1254, %v1373, 0
        %1380 = vmatprep.subr.bf16.mxu0 0
        %1381 = vmatpush1.bf16.xpose.msra.mxu0 0
        %1382 = vmatprep.subr.bf16.mxu0 0
        %1383 = vmatpush1.bf16.xpose.msra.mxu0 0
        %1384 = vmatprep.subr.bf16.mxu0 0
        %1385 = vmatpush1.bf16.xpose.msra.mxu0 0
        %1386 = vmatprep.subr.bf16.mxu0 0
        %1387 = vmatpush1.bf16.xpose.msra.mxu0 0
        %1388 = vmatprep.subr.bf16.mxu0 0
        %1389 = vmatpush1.bf16.xpose.msra.mxu0 0
        %1390 = vmatprep.subr.bf16.mxu0 0
        %1391 = vmatpush1.bf16.xpose.msra.mxu0 0
        %1392 = vmatprep.subr.bf16.mxu0 0
        %1393 = vmatpush1.bf16.xpose.msra.mxu0 0
        %1394 = vmatprep.subr.bf16.mxu0 0
        %1395 = vmatpush1.bf16.xpose.msra.mxu0 %v1378
        %1396 = vmatprep.subr.bf16.mxu0 0
        %1397 = vmatpush2.bf16.xpose.msra.mxu0 0
        %1398 = vmatprep.subr.bf16.mxu0 0
        %1399 = vmatpush2.bf16.xpose.msra.mxu0 0
        %1400 = vmatprep.subr.bf16.mxu0 0
        %1401 = vmatpush2.bf16.xpose.msra.mxu0 0
        %1402 = vmatprep.subr.bf16.mxu0 0
        %1403 = vmatpush2.bf16.xpose.msra.mxu0 0
        %1404 = vmatprep.subr.bf16.mxu0 0
        %1405 = vmatpush2.bf16.xpose.msra.mxu0 0
        %1406 = vmatprep.subr.bf16.mxu0 0
        %1407 = vmatpush2.bf16.xpose.msra.mxu0 0
        %1408 = vmatprep.subr.bf16.mxu0 0
        %1409 = vmatpush2.bf16.xpose.msra.mxu0 0
        %1410 = vmatprep.subr.bf16.mxu0 0
        %1411 = vmatpush2.bf16.xpose.msra.mxu0 0
        %1412 = vmatprep.mubr.bf16.mxu0 0
        %1413 = vmatmul.mubr.bf16.gmra.mxu0 %v1375
        %v1414 = vpop.f32.mrf.mxu0
        %v1415 = vadd.f32 0.0, %v1414
        %v1416 = vpop.f32.mrf.mxu0
        %v1417 = vpop.f32.mrf.mxu0
        %v1418 = vpop.f32.mrf.mxu0
        %1419 = vdwg.mxu0
        %v1420 = vmul.f32 %v1415, 0.17677669
        %v1421 = vadd.f32 %v1420, %v963
        %v1422 = vsel %vm1303, %v1421, -inf
        %1423 = vmax.xlane.f32.xlu0 %v1422
        %v1424 = vpop.xlane.xlu0 %1423
        %v1425 = vsub.f32 %v1421, %v1424
        %v1426 = vmul.f32 %v1425, 1.442695
        %v1427 = vpow.pop %v1426
        %v1428 = vsel %vm1303, %v1427, 0.0
        %1429 = vadd.xlane.f32.xlu0 %v1428
        %v1430 = vpop.xlane.xlu0 %1429
        %v1431 = vrcp.pop %v1430
        %v1432 = vmul.f32 %v1427, %v1431
        %v1433 = vpack.c.bf16 %v1432, %v1432
        %1435 = vrot.lane.b32.xlu0 %v1253, 96
        %v1436 = vpop.permute.xlu0 %1435
        %v1438 = vsel %vm1303, %v1433, 0
        %v1441 = vsel %vm1319, %v1436, 0
        %1443 = vmatprep.subr.bf16.mxu0 0
        %1444 = vmatpush1.bf16.msra.mxu0 0
        %1445 = vmatprep.subr.bf16.mxu0 0
        %1446 = vmatpush1.bf16.msra.mxu0 0
        %1447 = vmatprep.subr.bf16.mxu0 0
        %1448 = vmatpush1.bf16.msra.mxu0 0
        %1449 = vmatprep.subr.bf16.mxu0 0
        %1450 = vmatpush1.bf16.msra.mxu0 0
        %1451 = vmatprep.subr.bf16.mxu0 0
        %1452 = vmatpush1.bf16.msra.mxu0 0
        %1453 = vmatprep.subr.bf16.mxu0 0
        %1454 = vmatpush1.bf16.msra.mxu0 0
        %1455 = vmatprep.subr.bf16.mxu0 0
        %1456 = vmatpush1.bf16.msra.mxu0 0
        %1457 = vmatprep.subr.bf16.mxu0 0
        %1458 = vmatpush1.bf16.msra.mxu0 %v1441
        %1459 = vmatprep.subr.bf16.mxu0 0
        %1460 = vmatpush2.bf16.msra.mxu0 0
        %1461 = vmatprep.subr.bf16.mxu0 0
        %1462 = vmatpush2.bf16.msra.mxu0 0
        %1463 = vmatprep.subr.bf16.mxu0 0
        %1464 = vmatpush2.bf16.msra.mxu0 0
        %1465 = vmatprep.subr.bf16.mxu0 0
        %1466 = vmatpush2.bf16.msra.mxu0 0
        %1467 = vmatprep.subr.bf16.mxu0 0
        %1468 = vmatpush2.bf16.msra.mxu0 0
        %1469 = vmatprep.subr.bf16.mxu0 0
        %1470 = vmatpush2.bf16.msra.mxu0 0
        %1471 = vmatprep.subr.bf16.mxu0 0
        %1472 = vmatpush2.bf16.msra.mxu0 0
        %1473 = vmatprep.subr.bf16.mxu0 0
        %1474 = vmatpush2.bf16.msra.mxu0 0
        %1475 = vmatprep.mubr.bf16.mxu0 0
        %1476 = vmatmul.mubr.bf16.gmra.mxu0 %v1438
        %v1477 = vpop.f32.mrf.mxu0
        %v1478 = vadd.f32 0.0, %v1477
        %v1479 = vpop.f32.mrf.mxu0
        %v1480 = vpop.f32.mrf.mxu0
        %v1481 = vpop.f32.mrf.mxu0
        %1482 = vdwg.mxu0
        %v1483 = vpack.c.bf16 %v1478, %v1478
        %s1484 = scalar_lea.vmem %s748, 16 [#allocation13]
        %v1485 = vld [vmem:[%s1484] sm:$0xf]
        %v1486 = vld [vmem:[%s1484 + $0x4] sm:$0xf]
        %v1487 = vld [vmem:[%s1484 + $0x8] sm:$0xf]
        %v1488 = vld [vmem:[%s1484 + $0xc] sm:$0xf]
        %v1493 = vunpack.c.l.b16 %v1485
        %v1494 = vunpack.c.l.b16 %v1486
        %v1495 = vunpack.c.l.b16 %v1487
        %v1496 = vunpack.c.l.b16 %v1488
        %v1497 = vpack.c.b16 %v1494, %v1493
        %v1498 = vpack.c.b16 %v1496, %v1495
        %v1502 = vsel %vm1254, %v1483, 0
        %1504 = vmatprep.subr.bf16.mxu0 0
        %1505 = vmatpush1.bf16.msra.mxu0 0
        %1506 = vmatprep.subr.bf16.mxu0 0
        %1507 = vmatpush1.bf16.msra.mxu0 0
        %1508 = vmatprep.subr.bf16.mxu0 0
        %1509 = vmatpush1.bf16.msra.mxu0 0
        %1510 = vmatprep.subr.bf16.mxu0 0
        %1511 = vmatpush1.bf16.msra.mxu0 0
        %1512 = vmatprep.subr.bf16.mxu0 0
        %1513 = vmatpush1.bf16.msra.mxu0 0
        %1514 = vmatprep.subr.bf16.mxu0 0
        %1515 = vmatpush1.bf16.msra.mxu0 0
        %1516 = vmatprep.subr.bf16.mxu0 0
        %1517 = vmatpush1.bf16.msra.mxu0 %v1498
        %1518 = vmatprep.subr.bf16.mxu0 0
        %1519 = vmatpush1.bf16.msra.mxu0 %v1497
        %1520 = vmatprep.subr.bf16.mxu0 0
        %1521 = vmatpush2.bf16.msra.mxu0 0
        %1522 = vmatprep.subr.bf16.mxu0 0
        %1523 = vmatpush2.bf16.msra.mxu0 0
        %1524 = vmatprep.subr.bf16.mxu0 0
        %1525 = vmatpush2.bf16.msra.mxu0 0
        %1526 = vmatprep.subr.bf16.mxu0 0
        %1527 = vmatpush2.bf16.msra.mxu0 0
        %1528 = vmatprep.subr.bf16.mxu0 0
        %1529 = vmatpush2.bf16.msra.mxu0 0
        %1530 = vmatprep.subr.bf16.mxu0 0
        %1531 = vmatpush2.bf16.msra.mxu0 0
        %1532 = vmatprep.subr.bf16.mxu0 0
        %1533 = vmatpush2.bf16.msra.mxu0 0
        %1534 = vmatprep.subr.bf16.mxu0 0
        %1535 = vmatpush2.bf16.msra.mxu0 0
        %1536 = vmatprep.mubr.bf16.mxu0 0
        %1537 = vmatmul.mubr.bf16.gmra.mxu0 %v1502
        %v1538 = vpop.f32.mrf.mxu0
        %v1539 = vadd.f32 0.0, %v1538
        %v1540 = vpop.f32.mrf.mxu0
        %v1541 = vpop.f32.mrf.mxu0
        %v1542 = vpop.f32.mrf.mxu0
        %1543 = vdwg.mxu0
        %v1548 = vunpack.c.l.b16 %v1364
        %v1549 = vunpack.c.l.b16 %v1365
        %v1550 = vunpack.c.l.b16 %v1366
        %v1551 = vunpack.c.l.b16 %v1367
        %v1552 = vpack.c.b16 %v1549, %v1548
        %v1553 = vpack.c.b16 %v1551, %v1550
        %v1557 = vsel %vm1254, %v1363, 0
        %1559 = vmatprep.subr.bf16.mxu0 0
        %1560 = vmatpush1.bf16.msra.mxu0 0
        %1561 = vmatprep.subr.bf16.mxu0 0
        %1562 = vmatpush1.bf16.msra.mxu0 0
        %1563 = vmatprep.subr.bf16.mxu0 0
        %1564 = vmatpush1.bf16.msra.mxu0 0
        %1565 = vmatprep.subr.bf16.mxu0 0
        %1566 = vmatpush1.bf16.msra.mxu0 0
        %1567 = vmatprep.subr.bf16.mxu0 0
        %1568 = vmatpush1.bf16.msra.mxu0 0
        %1569 = vmatprep.subr.bf16.mxu0 0
        %1570 = vmatpush1.bf16.msra.mxu0 0
        %1571 = vmatprep.subr.bf16.mxu0 0
        %1572 = vmatpush1.bf16.msra.mxu0 %v1553
        %1573 = vmatprep.subr.bf16.mxu0 0
        %1574 = vmatpush1.bf16.msra.mxu0 %v1552
        %1575 = vmatprep.subr.bf16.mxu0 0
        %1576 = vmatpush2.bf16.msra.mxu0 0
        %1577 = vmatprep.subr.bf16.mxu0 0
        %1578 = vmatpush2.bf16.msra.mxu0 0
        %1579 = vmatprep.subr.bf16.mxu0 0
        %1580 = vmatpush2.bf16.msra.mxu0 0
        %1581 = vmatprep.subr.bf16.mxu0 0
        %1582 = vmatpush2.bf16.msra.mxu0 0
        %1583 = vmatprep.subr.bf16.mxu0 0
        %1584 = vmatpush2.bf16.msra.mxu0 0
        %1585 = vmatprep.subr.bf16.mxu0 0
        %1586 = vmatpush2.bf16.msra.mxu0 0
        %1587 = vmatprep.subr.bf16.mxu0 0
        %1588 = vmatpush2.bf16.msra.mxu0 0
        %1589 = vmatprep.subr.bf16.mxu0 0
        %1590 = vmatpush2.bf16.msra.mxu0 0
        %1591 = vmatprep.mubr.bf16.mxu0 0
        %1592 = vmatmul.mubr.bf16.gmra.mxu0 %v1557
        %v1593 = vpop.f32.mrf.mxu0
        %v1594 = vadd.f32 %v1539, %v1593
        %v1595 = vpop.f32.mrf.mxu0
        %v1596 = vpop.f32.mrf.mxu0
        %v1597 = vpop.f32.mrf.mxu0
        %1598 = vdwg.mxu0
        %1599 = vrot.lane.b32.xlu0 %v1251, 64
        %v1600 = vpop.permute.xlu0 %1599
        %1601 = vrot.lane.b32.xlu0 %v1252, 64
        %v1602 = vpop.permute.xlu0 %1601
        %v1604 = vsel %vm1254, %v1600, 0
        %v1607 = vsel %vm1254, %v1602, 0
        %1609 = vmatprep.subr.bf16.mxu0 0
        %1610 = vmatpush1.bf16.xpose.msra.mxu0 0
        %1611 = vmatprep.subr.bf16.mxu0 0
        %1612 = vmatpush1.bf16.xpose.msra.mxu0 0
        %1613 = vmatprep.subr.bf16.mxu0 0
        %1614 = vmatpush1.bf16.xpose.msra.mxu0 0
        %1615 = vmatprep.subr.bf16.mxu0 0
        %1616 = vmatpush1.bf16.xpose.msra.mxu0 0
        %1617 = vmatprep.subr.bf16.mxu0 0
        %1618 = vmatpush1.bf16.xpose.msra.mxu0 0
        %1619 = vmatprep.subr.bf16.mxu0 0
        %1620 = vmatpush1.bf16.xpose.msra.mxu0 0
        %1621 = vmatprep.subr.bf16.mxu0 0
        %1622 = vmatpush1.bf16.xpose.msra.mxu0 0
        %1623 = vmatprep.subr.bf16.mxu0 0
        %1624 = vmatpush1.bf16.xpose.msra.mxu0 %v1607
        %1625 = vmatprep.subr.bf16.mxu0 0
        %1626 = vmatpush2.bf16.xpose.msra.mxu0 0
        %1627 = vmatprep.subr.bf16.mxu0 0
        %1628 = vmatpush2.bf16.xpose.msra.mxu0 0
        %1629 = vmatprep.subr.bf16.mxu0 0
        %1630 = vmatpush2.bf16.xpose.msra.mxu0 0
        %1631 = vmatprep.subr.bf16.mxu0 0
        %1632 = vmatpush2.bf16.xpose.msra.mxu0 0
        %1633 = vmatprep.subr.bf16.mxu0 0
        %1634 = vmatpush2.bf16.xpose.msra.mxu0 0
        %1635 = vmatprep.subr.bf16.mxu0 0
        %1636 = vmatpush2.bf16.xpose.msra.mxu0 0
        %1637 = vmatprep.subr.bf16.mxu0 0
        %1638 = vmatpush2.bf16.xpose.msra.mxu0 0
        %1639 = vmatprep.subr.bf16.mxu0 0
        %1640 = vmatpush2.bf16.xpose.msra.mxu0 0
        %1641 = vmatprep.mubr.bf16.mxu0 0
        %1642 = vmatmul.mubr.bf16.gmra.mxu0 %v1604
        %v1643 = vpop.f32.mrf.mxu0
        %v1644 = vadd.f32 0.0, %v1643
        %v1645 = vpop.f32.mrf.mxu0
        %v1646 = vpop.f32.mrf.mxu0
        %v1647 = vpop.f32.mrf.mxu0
        %1648 = vdwg.mxu0
        %v1649 = vmul.f32 %v1644, 0.17677669
        %v1650 = vadd.f32 %v1649, %v963
        %v1651 = vsel %vm1303, %v1650, -inf
        %1652 = vmax.xlane.f32.xlu0 %v1651
        %v1653 = vpop.xlane.xlu0 %1652
        %v1654 = vsub.f32 %v1650, %v1653
        %v1655 = vmul.f32 %v1654, 1.442695
        %v1656 = vpow.pop %v1655
        %v1657 = vsel %vm1303, %v1656, 0.0
        %1658 = vadd.xlane.f32.xlu0 %v1657
        %v1659 = vpop.xlane.xlu0 %1658
        %v1660 = vrcp.pop %v1659
        %v1661 = vmul.f32 %v1656, %v1660
        %v1662 = vpack.c.bf16 %v1661, %v1661
        %1663 = vrot.lane.b32.xlu0 %v1253, 64
        %v1664 = vpop.permute.xlu0 %1663
        %v1666 = vsel %vm1303, %v1662, 0
        %v1669 = vsel %vm1319, %v1664, 0
        %1671 = vmatprep.subr.bf16.mxu0 0
        %1672 = vmatpush1.bf16.msra.mxu0 0
        %1673 = vmatprep.subr.bf16.mxu0 0
        %1674 = vmatpush1.bf16.msra.mxu0 0
        %1675 = vmatprep.subr.bf16.mxu0 0
        %1676 = vmatpush1.bf16.msra.mxu0 0
        %1677 = vmatprep.subr.bf16.mxu0 0
        %1678 = vmatpush1.bf16.msra.mxu0 0
        %1679 = vmatprep.subr.bf16.mxu0 0
        %1680 = vmatpush1.bf16.msra.mxu0 0
        %1681 = vmatprep.subr.bf16.mxu0 0
        %1682 = vmatpush1.bf16.msra.mxu0 0
        %1683 = vmatprep.subr.bf16.mxu0 0
        %1684 = vmatpush1.bf16.msra.mxu0 0
        %1685 = vmatprep.subr.bf16.mxu0 0
        %1686 = vmatpush1.bf16.msra.mxu0 %v1669
        %1687 = vmatprep.subr.bf16.mxu0 0
        %1688 = vmatpush2.bf16.msra.mxu0 0
        %1689 = vmatprep.subr.bf16.mxu0 0
        %1690 = vmatpush2.bf16.msra.mxu0 0
        %1691 = vmatprep.subr.bf16.mxu0 0
        %1692 = vmatpush2.bf16.msra.mxu0 0
        %1693 = vmatprep.subr.bf16.mxu0 0
        %1694 = vmatpush2.bf16.msra.mxu0 0
        %1695 = vmatprep.subr.bf16.mxu0 0
        %1696 = vmatpush2.bf16.msra.mxu0 0
        %1697 = vmatprep.subr.bf16.mxu0 0
        %1698 = vmatpush2.bf16.msra.mxu0 0
        %1699 = vmatprep.subr.bf16.mxu0 0
        %1700 = vmatpush2.bf16.msra.mxu0 0
        %1701 = vmatprep.subr.bf16.mxu0 0
        %1702 = vmatpush2.bf16.msra.mxu0 0
        %1703 = vmatprep.mubr.bf16.mxu0 0
        %1704 = vmatmul.mubr.bf16.gmra.mxu0 %v1666
        %v1705 = vpop.f32.mrf.mxu0
        %v1706 = vadd.f32 0.0, %v1705
        %v1707 = vpop.f32.mrf.mxu0
        %v1708 = vpop.f32.mrf.mxu0
        %v1709 = vpop.f32.mrf.mxu0
        %1710 = vdwg.mxu0
        %v1711 = vpack.c.bf16 %v1706, %v1706
        %s1712 = scalar_lea.vmem %s748, 32 [#allocation13]
        %v1713 = vld [vmem:[%s1712] sm:$0xf]
        %v1714 = vld [vmem:[%s1712 + $0x4] sm:$0xf]
        %v1715 = vld [vmem:[%s1712 + $0x8] sm:$0xf]
        %v1716 = vld [vmem:[%s1712 + $0xc] sm:$0xf]
        %v1721 = vunpack.c.l.b16 %v1713
        %v1722 = vunpack.c.l.b16 %v1714
        %v1723 = vunpack.c.l.b16 %v1715
        %v1724 = vunpack.c.l.b16 %v1716
        %v1725 = vpack.c.b16 %v1722, %v1721
        %v1726 = vpack.c.b16 %v1724, %v1723
        %v1730 = vsel %vm1254, %v1711, 0
        %1732 = vmatprep.subr.bf16.mxu0 0
        %1733 = vmatpush1.bf16.msra.mxu0 0
        %1734 = vmatprep.subr.bf16.mxu0 0
        %1735 = vmatpush1.bf16.msra.mxu0 0
        %1736 = vmatprep.subr.bf16.mxu0 0
        %1737 = vmatpush1.bf16.msra.mxu0 0
        %1738 = vmatprep.subr.bf16.mxu0 0
        %1739 = vmatpush1.bf16.msra.mxu0 0
        %1740 = vmatprep.subr.bf16.mxu0 0
        %1741 = vmatpush1.bf16.msra.mxu0 0
        %1742 = vmatprep.subr.bf16.mxu0 0
        %1743 = vmatpush1.bf16.msra.mxu0 0
        %1744 = vmatprep.subr.bf16.mxu0 0
        %1745 = vmatpush1.bf16.msra.mxu0 %v1726
        %1746 = vmatprep.subr.bf16.mxu0 0
        %1747 = vmatpush1.bf16.msra.mxu0 %v1725
        %1748 = vmatprep.subr.bf16.mxu0 0
        %1749 = vmatpush2.bf16.msra.mxu0 0
        %1750 = vmatprep.subr.bf16.mxu0 0
        %1751 = vmatpush2.bf16.msra.mxu0 0
        %1752 = vmatprep.subr.bf16.mxu0 0
        %1753 = vmatpush2.bf16.msra.mxu0 0
        %1754 = vmatprep.subr.bf16.mxu0 0
        %1755 = vmatpush2.bf16.msra.mxu0 0
        %1756 = vmatprep.subr.bf16.mxu0 0
        %1757 = vmatpush2.bf16.msra.mxu0 0
        %1758 = vmatprep.subr.bf16.mxu0 0
        %1759 = vmatpush2.bf16.msra.mxu0 0
        %1760 = vmatprep.subr.bf16.mxu0 0
        %1761 = vmatpush2.bf16.msra.mxu0 0
        %1762 = vmatprep.subr.bf16.mxu0 0
        %1763 = vmatpush2.bf16.msra.mxu0 0
        %1764 = vmatprep.mubr.bf16.mxu0 0
        %1765 = vmatmul.mubr.bf16.gmra.mxu0 %v1730
        %v1766 = vpop.f32.mrf.mxu0
        %v1767 = vadd.f32 0.0, %v1766
        %v1768 = vpop.f32.mrf.mxu0
        %v1769 = vpop.f32.mrf.mxu0
        %v1770 = vpop.f32.mrf.mxu0
        %1771 = vdwg.mxu0
        %v1772 = vadd.f32 %v1594, %v1767
        %1773 = vrot.lane.b32.xlu0 %v1251, 32
        %v1774 = vpop.permute.xlu0 %1773
        %1775 = vrot.lane.b32.xlu0 %v1252, 32
        %v1776 = vpop.permute.xlu0 %1775
        %v1778 = vsel %vm1254, %v1774, 0
        %v1781 = vsel %vm1254, %v1776, 0
        %1783 = vmatprep.subr.bf16.mxu0 0
        %1784 = vmatpush1.bf16.xpose.msra.mxu0 0
        %1785 = vmatprep.subr.bf16.mxu0 0
        %1786 = vmatpush1.bf16.xpose.msra.mxu0 0
        %1787 = vmatprep.subr.bf16.mxu0 0
        %1788 = vmatpush1.bf16.xpose.msra.mxu0 0
        %1789 = vmatprep.subr.bf16.mxu0 0
        %1790 = vmatpush1.bf16.xpose.msra.mxu0 0
        %1791 = vmatprep.subr.bf16.mxu0 0
        %1792 = vmatpush1.bf16.xpose.msra.mxu0 0
        %1793 = vmatprep.subr.bf16.mxu0 0
        %1794 = vmatpush1.bf16.xpose.msra.mxu0 0
        %1795 = vmatprep.subr.bf16.mxu0 0
        %1796 = vmatpush1.bf16.xpose.msra.mxu0 0
        %1797 = vmatprep.subr.bf16.mxu0 0
        %1798 = vmatpush1.bf16.xpose.msra.mxu0 %v1781
        %1799 = vmatprep.subr.bf16.mxu0 0
        %1800 = vmatpush2.bf16.xpose.msra.mxu0 0
        %1801 = vmatprep.subr.bf16.mxu0 0
        %1802 = vmatpush2.bf16.xpose.msra.mxu0 0
        %1803 = vmatprep.subr.bf16.mxu0 0
        %1804 = vmatpush2.bf16.xpose.msra.mxu0 0
        %1805 = vmatprep.subr.bf16.mxu0 0
        %1806 = vmatpush2.bf16.xpose.msra.mxu0 0
        %1807 = vmatprep.subr.bf16.mxu0 0
        %1808 = vmatpush2.bf16.xpose.msra.mxu0 0
        %1809 = vmatprep.subr.bf16.mxu0 0
        %1810 = vmatpush2.bf16.xpose.msra.mxu0 0
        %1811 = vmatprep.subr.bf16.mxu0 0
        %1812 = vmatpush2.bf16.xpose.msra.mxu0 0
        %1813 = vmatprep.subr.bf16.mxu0 0
        %1814 = vmatpush2.bf16.xpose.msra.mxu0 0
        %1815 = vmatprep.mubr.bf16.mxu0 0
        %1816 = vmatmul.mubr.bf16.gmra.mxu0 %v1778
        %v1817 = vpop.f32.mrf.mxu0
        %v1818 = vadd.f32 0.0, %v1817
        %v1819 = vpop.f32.mrf.mxu0
        %v1820 = vpop.f32.mrf.mxu0
        %v1821 = vpop.f32.mrf.mxu0
        %1822 = vdwg.mxu0
        %v1823 = vmul.f32 %v1818, 0.17677669
        %v1824 = vadd.f32 %v1823, %v963
        %v1825 = vsel %vm1303, %v1824, -inf
        %1826 = vmax.xlane.f32.xlu0 %v1825
        %v1827 = vpop.xlane.xlu0 %1826
        %v1828 = vsub.f32 %v1824, %v1827
        %v1829 = vmul.f32 %v1828, 1.442695
        %v1830 = vpow.pop %v1829
        %v1831 = vsel %vm1303, %v1830, 0.0
        %1832 = vadd.xlane.f32.xlu0 %v1831
        %v1833 = vpop.xlane.xlu0 %1832
        %v1834 = vrcp.pop %v1833
        %v1835 = vmul.f32 %v1830, %v1834
        %v1836 = vpack.c.bf16 %v1835, %v1835
        %1837 = vrot.lane.b32.xlu0 %v1253, 32
        %v1838 = vpop.permute.xlu0 %1837
        %v1840 = vsel %vm1303, %v1836, 0
        %v1843 = vsel %vm1319, %v1838, 0
        %1845 = vmatprep.subr.bf16.mxu0 0
        %1846 = vmatpush1.bf16.msra.mxu0 0
        %1847 = vmatprep.subr.bf16.mxu0 0
        %1848 = vmatpush1.bf16.msra.mxu0 0
        %1849 = vmatprep.subr.bf16.mxu0 0
        %1850 = vmatpush1.bf16.msra.mxu0 0
        %1851 = vmatprep.subr.bf16.mxu0 0
        %1852 = vmatpush1.bf16.msra.mxu0 0
        %1853 = vmatprep.subr.bf16.mxu0 0
        %1854 = vmatpush1.bf16.msra.mxu0 0
        %1855 = vmatprep.subr.bf16.mxu0 0
        %1856 = vmatpush1.bf16.msra.mxu0 0
        %1857 = vmatprep.subr.bf16.mxu0 0
        %1858 = vmatpush1.bf16.msra.mxu0 0
        %1859 = vmatprep.subr.bf16.mxu0 0
        %1860 = vmatpush1.bf16.msra.mxu0 %v1843
        %1861 = vmatprep.subr.bf16.mxu0 0
        %1862 = vmatpush2.bf16.msra.mxu0 0
        %1863 = vmatprep.subr.bf16.mxu0 0
        %1864 = vmatpush2.bf16.msra.mxu0 0
        %1865 = vmatprep.subr.bf16.mxu0 0
        %1866 = vmatpush2.bf16.msra.mxu0 0
        %1867 = vmatprep.subr.bf16.mxu0 0
        %1868 = vmatpush2.bf16.msra.mxu0 0
        %1869 = vmatprep.subr.bf16.mxu0 0
        %1870 = vmatpush2.bf16.msra.mxu0 0
        %1871 = vmatprep.subr.bf16.mxu0 0
        %1872 = vmatpush2.bf16.msra.mxu0 0
        %1873 = vmatprep.subr.bf16.mxu0 0
        %1874 = vmatpush2.bf16.msra.mxu0 0
        %1875 = vmatprep.subr.bf16.mxu0 0
        %1876 = vmatpush2.bf16.msra.mxu0 0
        %1877 = vmatprep.mubr.bf16.mxu0 0
        %1878 = vmatmul.mubr.bf16.gmra.mxu0 %v1840
        %v1879 = vpop.f32.mrf.mxu0
        %v1880 = vadd.f32 0.0, %v1879
        %v1881 = vpop.f32.mrf.mxu0
        %v1882 = vpop.f32.mrf.mxu0
        %v1883 = vpop.f32.mrf.mxu0
        %1884 = vdwg.mxu0
        %v1885 = vpack.c.bf16 %v1880, %v1880
        %s1886 = scalar_lea.vmem %s748, 48 [#allocation13]
        %v1887 = vld [vmem:[%s1886] sm:$0xf]
        %v1888 = vld [vmem:[%s1886 + $0x4] sm:$0xf]
        %v1889 = vld [vmem:[%s1886 + $0x8] sm:$0xf]
        %v1890 = vld [vmem:[%s1886 + $0xc] sm:$0xf]
        %v1895 = vunpack.c.l.b16 %v1887
        %v1896 = vunpack.c.l.b16 %v1888
        %v1897 = vunpack.c.l.b16 %v1889
        %v1898 = vunpack.c.l.b16 %v1890
        %v1899 = vpack.c.b16 %v1896, %v1895
        %v1900 = vpack.c.b16 %v1898, %v1897
        %v1904 = vsel %vm1254, %v1885, 0
        %1906 = vmatprep.subr.bf16.mxu0 0
        %1907 = vmatpush1.bf16.msra.mxu0 0
        %1908 = vmatprep.subr.bf16.mxu0 0
        %1909 = vmatpush1.bf16.msra.mxu0 0
        %1910 = vmatprep.subr.bf16.mxu0 0
        %1911 = vmatpush1.bf16.msra.mxu0 0
        %1912 = vmatprep.subr.bf16.mxu0 0
        %1913 = vmatpush1.bf16.msra.mxu0 0
        %1914 = vmatprep.subr.bf16.mxu0 0
        %1915 = vmatpush1.bf16.msra.mxu0 0
        %1916 = vmatprep.subr.bf16.mxu0 0
        %1917 = vmatpush1.bf16.msra.mxu0 0
        %1918 = vmatprep.subr.bf16.mxu0 0
        %1919 = vmatpush1.bf16.msra.mxu0 %v1900
        %1920 = vmatprep.subr.bf16.mxu0 0
        %1921 = vmatpush1.bf16.msra.mxu0 %v1899
        %1922 = vmatprep.subr.bf16.mxu0 0
        %1923 = vmatpush2.bf16.msra.mxu0 0
        %1924 = vmatprep.subr.bf16.mxu0 0
        %1925 = vmatpush2.bf16.msra.mxu0 0
        %1926 = vmatprep.subr.bf16.mxu0 0
        %1927 = vmatpush2.bf16.msra.mxu0 0
        %1928 = vmatprep.subr.bf16.mxu0 0
        %1929 = vmatpush2.bf16.msra.mxu0 0
        %1930 = vmatprep.subr.bf16.mxu0 0
        %1931 = vmatpush2.bf16.msra.mxu0 0
        %1932 = vmatprep.subr.bf16.mxu0 0
        %1933 = vmatpush2.bf16.msra.mxu0 0
        %1934 = vmatprep.subr.bf16.mxu0 0
        %1935 = vmatpush2.bf16.msra.mxu0 0
        %1936 = vmatprep.subr.bf16.mxu0 0
        %1937 = vmatpush2.bf16.msra.mxu0 0
        %1938 = vmatprep.mubr.bf16.mxu0 0
        %1939 = vmatmul.mubr.bf16.gmra.mxu0 %v1904
        %v1940 = vpop.f32.mrf.mxu0
        %v1941 = vadd.f32 0.0, %v1940
        %v1942 = vpop.f32.mrf.mxu0
        %v1943 = vpop.f32.mrf.mxu0
        %v1944 = vpop.f32.mrf.mxu0
        %1945 = vdwg.mxu0
        %v1946 = vadd.f32 %v1772, %v1941
        %v1947 = vld [vmem:[%s756] sm:$0x1]
        %v1949 = vlaneseq
        %v1950 = vshrl.u32 %v1949, 7
        %v1951 = vsub.s32 0, %v1950
        %v1952 = vrot.slane %v1947, %v1951
        %v1954 = vadd.f32 %v1946, %v1952
        %v1955 = vadd.f32 %v957, %v1954
        %v1956 = vld [vmem:[%s764] sm:$0x1]
        %v1957 = vld [vmem:[%s772] sm:$0x1]
        %1958 = vadd.xlane.f32.xlu0 %v1955
        %v1959 = vpop.xlane.xlu0 %1958
        %v1960 = vmul.f32 %v1959, %v968
        %v1961 = vsub.f32 %v1955, %v1960
        %v1962 = vmul.f32 %v1961, %v1961
        %1963 = vadd.xlane.f32.xlu0 %v1962
        %v1964 = vpop.xlane.xlu0 %1963
        %v1965 = vmul.f32 %v1964, %v968
        %v1966 = vadd.f32 %v1965, 1e-05
        %v1967 = vrsqrt.pop %v1966
        %v1968 = vmul.f32 %v1961, %v1967
        %v1970 = vlaneseq
        %v1971 = vshrl.u32 %v1970, 7
        %v1972 = vsub.s32 0, %v1971
        %v1973 = vrot.slane %v1956, %v1972
        %v1975 = vmul.f32 %v1968, %v1973
        %v1977 = vlaneseq
        %v1978 = vshrl.u32 %v1977, 7
        %v1979 = vsub.s32 0, %v1978
        %v1980 = vrot.slane %v1957, %v1979
        %v1982 = vadd.f32 %v1975, %v1980
        %v1983 = vpack.c.bf16 %v1982, %v1982
        %v1984 = vld [vmem:[%s781] sm:$0xff]
        %v1985 = vld [vmem:[%s781 + $0x8] sm:$0xff]
        %v1986 = vld [vmem:[%s781 + $0x10] sm:$0xff]
        %v1987 = vld [vmem:[%s781 + $0x18] sm:$0xff]
        %v1988 = vld [vmem:[%s781 + $0x20] sm:$0xff]
        %v1989 = vld [vmem:[%s781 + $0x28] sm:$0xff]
        %v1990 = vld [vmem:[%s781 + $0x30] sm:$0xff]
        %v1991 = vld [vmem:[%s781 + $0x38] sm:$0xff]
        %v1992 = vld [vmem:[%s781 + $0x40] sm:$0xff]
        %v1993 = vld [vmem:[%s781 + $0x48] sm:$0xff]
        %v1994 = vld [vmem:[%s781 + $0x50] sm:$0xff]
        %v1995 = vld [vmem:[%s781 + $0x58] sm:$0xff]
        %v1996 = vld [vmem:[%s781 + $0x60] sm:$0xff]
        %v1997 = vld [vmem:[%s781 + $0x68] sm:$0xff]
        %v1998 = vld [vmem:[%s781 + $0x70] sm:$0xff]
        %v1999 = vld [vmem:[%s781 + $0x78] sm:$0xff]
        %v2000 = vld [vmem:[%s781 + $0x80] sm:$0xff]
        %v2001 = vld [vmem:[%s781 + $0x88] sm:$0xff]
        %v2002 = vld [vmem:[%s781 + $0x90] sm:$0xff]
        %v2003 = vld [vmem:[%s781 + $0x98] sm:$0xff]
        %v2004 = vld [vmem:[%s781 + $0xa0] sm:$0xff]
        %v2005 = vld [vmem:[%s781 + $0xa8] sm:$0xff]
        %v2006 = vld [vmem:[%s781 + $0xb0] sm:$0xff]
        %v2007 = vld [vmem:[%s781 + $0xb8] sm:$0xff]
        %v2008 = vld [vmem:[%s781 + $0xc0] sm:$0xff]
        %v2009 = vld [vmem:[%s781 + $0xc8] sm:$0xff]
        %v2010 = vld [vmem:[%s781 + $0xd0] sm:$0xff]
        %v2011 = vld [vmem:[%s781 + $0xd8] sm:$0xff]
        %v2012 = vld [vmem:[%s781 + $0xe0] sm:$0xff]
        %v2013 = vld [vmem:[%s781 + $0xe8] sm:$0xff]
        %v2014 = vld [vmem:[%s781 + $0xf0] sm:$0xff]
        %v2015 = vld [vmem:[%s781 + $0xf8] sm:$0xff]
        %v2016 = vld [vmem:[%s892] sm:$0xf]
        %v2018 = vlaneseq
        %v2019 = vshrl.u32 %v2018, 7
        %v2020 = vsub.s32 0, %v2019
        %v2021 = vrot.slane %v2016, %v2020
        %v2022 = vlaneseq
        %v2023 = vshrl.u32 %v2022, 7
        %v2024 = vsub.s32 1, %v2023
        %v2025 = vrot.slane %v2016, %v2024
        %v2026 = vlaneseq
        %v2027 = vshrl.u32 %v2026, 7
        %v2028 = vsub.s32 2, %v2027
        %v2029 = vrot.slane %v2016, %v2028
        %v2030 = vlaneseq
        %v2031 = vshrl.u32 %v2030, 7
        %v2032 = vsub.s32 3, %v2031
        %v2033 = vrot.slane %v2016, %v2032
        %v2070 = vunpack.c.l.b16 %v1984
        %v2071 = vunpack.c.h.b16 %v1984
        %v2072 = vunpack.c.l.b16 %v1985
        %v2073 = vunpack.c.h.b16 %v1985
        %v2074 = vunpack.c.l.b16 %v1986
        %v2075 = vunpack.c.h.b16 %v1986
        %v2076 = vunpack.c.l.b16 %v1987
        %v2077 = vunpack.c.h.b16 %v1987
        %v2078 = vunpack.c.l.b16 %v1988
        %v2079 = vunpack.c.h.b16 %v1988
        %v2080 = vunpack.c.l.b16 %v1989
        %v2081 = vunpack.c.h.b16 %v1989
        %v2082 = vunpack.c.l.b16 %v1990
        %v2083 = vunpack.c.h.b16 %v1990
        %v2084 = vunpack.c.l.b16 %v1991
        %v2085 = vunpack.c.h.b16 %v1991
        %v2086 = vunpack.c.l.b16 %v1992
        %v2087 = vunpack.c.h.b16 %v1992
        %v2088 = vunpack.c.l.b16 %v1993
        %v2089 = vunpack.c.h.b16 %v1993
        %v2090 = vunpack.c.l.b16 %v1994
        %v2091 = vunpack.c.h.b16 %v1994
        %v2092 = vunpack.c.l.b16 %v1995
        %v2093 = vunpack.c.h.b16 %v1995
        %v2094 = vunpack.c.l.b16 %v1996
        %v2095 = vunpack.c.h.b16 %v1996
        %v2096 = vunpack.c.l.b16 %v1997
        %v2097 = vunpack.c.h.b16 %v1997
        %v2098 = vunpack.c.l.b16 %v1998
        %v2099 = vunpack.c.h.b16 %v1998
        %v2100 = vunpack.c.l.b16 %v1999
        %v2101 = vunpack.c.h.b16 %v1999
        %v2102 = vunpack.c.l.b16 %v2000
        %v2103 = vunpack.c.h.b16 %v2000
        %v2104 = vunpack.c.l.b16 %v2001
        %v2105 = vunpack.c.h.b16 %v2001
        %v2106 = vunpack.c.l.b16 %v2002
        %v2107 = vunpack.c.h.b16 %v2002
        %v2108 = vunpack.c.l.b16 %v2003
        %v2109 = vunpack.c.h.b16 %v2003
        %v2110 = vunpack.c.l.b16 %v2004
        %v2111 = vunpack.c.h.b16 %v2004
        %v2112 = vunpack.c.l.b16 %v2005
        %v2113 = vunpack.c.h.b16 %v2005
        %v2114 = vunpack.c.l.b16 %v2006
        %v2115 = vunpack.c.h.b16 %v2006
        %v2116 = vunpack.c.l.b16 %v2007
        %v2117 = vunpack.c.h.b16 %v2007
        %v2118 = vunpack.c.l.b16 %v2008
        %v2119 = vunpack.c.h.b16 %v2008
        %v2120 = vunpack.c.l.b16 %v2009
        %v2121 = vunpack.c.h.b16 %v2009
        %v2122 = vunpack.c.l.b16 %v2010
        %v2123 = vunpack.c.h.b16 %v2010
        %v2124 = vunpack.c.l.b16 %v2011
        %v2125 = vunpack.c.h.b16 %v2011
        %v2126 = vunpack.c.l.b16 %v2012
        %v2127 = vunpack.c.h.b16 %v2012
        %v2128 = vunpack.c.l.b16 %v2013
        %v2129 = vunpack.c.h.b16 %v2013
        %v2130 = vunpack.c.l.b16 %v2014
        %v2131 = vunpack.c.h.b16 %v2014
        %v2132 = vunpack.c.l.b16 %v2015
        %v2133 = vunpack.c.h.b16 %v2015
        %v2134 = vpack.c.b16 %v2074, %v2070
        %v2135 = vpack.c.b16 %v2075, %v2071
        %v2136 = vpack.c.b16 %v2076, %v2072
        %v2137 = vpack.c.b16 %v2077, %v2073
        %v2138 = vpack.c.b16 %v2082, %v2078
        %v2139 = vpack.c.b16 %v2083, %v2079
        %v2140 = vpack.c.b16 %v2084, %v2080
        %v2141 = vpack.c.b16 %v2085, %v2081
        %v2142 = vpack.c.b16 %v2090, %v2086
        %v2143 = vpack.c.b16 %v2091, %v2087
        %v2144 = vpack.c.b16 %v2092, %v2088
        %v2145 = vpack.c.b16 %v2093, %v2089
        %v2146 = vpack.c.b16 %v2098, %v2094
        %v2147 = vpack.c.b16 %v2099, %v2095
        %v2148 = vpack.c.b16 %v2100, %v2096
        %v2149 = vpack.c.b16 %v2101, %v2097
        %v2150 = vpack.c.b16 %v2106, %v2102
        %v2151 = vpack.c.b16 %v2107, %v2103
        %v2152 = vpack.c.b16 %v2108, %v2104
        %v2153 = vpack.c.b16 %v2109, %v2105
        %v2154 = vpack.c.b16 %v2114, %v2110
        %v2155 = vpack.c.b16 %v2115, %v2111
        %v2156 = vpack.c.b16 %v2116, %v2112
        %v2157 = vpack.c.b16 %v2117, %v2113
        %v2158 = vpack.c.b16 %v2122, %v2118
        %v2159 = vpack.c.b16 %v2123, %v2119
        %v2160 = vpack.c.b16 %v2124, %v2120
        %v2161 = vpack.c.b16 %v2125, %v2121
        %v2162 = vpack.c.b16 %v2130, %v2126
        %v2163 = vpack.c.b16 %v2131, %v2127
        %v2164 = vpack.c.b16 %v2132, %v2128
        %v2165 = vpack.c.b16 %v2133, %v2129
        %2198 = vmatprep.subr.bf16.mxu0 %v2163
        %2199 = vmatpush1.bf16.msra.mxu0 %v2162
        %2200 = vmatprep.subr.bf16.mxu0 %v2159
        %2201 = vmatpush1.bf16.msra.mxu0 %v2158
        %2202 = vmatprep.subr.bf16.mxu0 %v2155
        %2203 = vmatpush1.bf16.msra.mxu0 %v2154
        %2204 = vmatprep.subr.bf16.mxu0 %v2151
        %2205 = vmatpush1.bf16.msra.mxu0 %v2150
        %2206 = vmatprep.subr.bf16.mxu0 %v2147
        %2207 = vmatpush1.bf16.msra.mxu0 %v2146
        %2208 = vmatprep.subr.bf16.mxu0 %v2143
        %2209 = vmatpush1.bf16.msra.mxu0 %v2142
        %2210 = vmatprep.subr.bf16.mxu0 %v2139
        %2211 = vmatpush1.bf16.msra.mxu0 %v2138
        %2212 = vmatprep.subr.bf16.mxu0 %v2135
        %2213 = vmatpush1.bf16.msra.mxu0 %v2134
        %2214 = vmatprep.subr.bf16.mxu0 0
        %2215 = vmatpush2.bf16.msra.mxu0 0
        %2216 = vmatprep.subr.bf16.mxu0 0
        %2217 = vmatpush2.bf16.msra.mxu0 0
        %2218 = vmatprep.subr.bf16.mxu0 0
        %2219 = vmatpush2.bf16.msra.mxu0 0
        %2220 = vmatprep.subr.bf16.mxu0 0
        %2221 = vmatpush2.bf16.msra.mxu0 0
        %2222 = vmatprep.subr.bf16.mxu0 0
        %2223 = vmatpush2.bf16.msra.mxu0 0
        %2224 = vmatprep.subr.bf16.mxu0 0
        %2225 = vmatpush2.bf16.msra.mxu0 0
        %2226 = vmatprep.subr.bf16.mxu0 0
        %2227 = vmatpush2.bf16.msra.mxu0 0
        %2228 = vmatprep.subr.bf16.mxu0 0
        %2229 = vmatpush2.bf16.msra.mxu0 0
        %2230 = vmatprep.mubr.bf16.mxu0 0
        %2231 = vmatmul.mubr.bf16.gmra.mxu0 %v1983
        %v2232 = vpop.f32.mrf.mxu0
        %v2233 = vadd.f32 %v2021, %v2232
        %v2234 = vpop.f32.mrf.mxu0
        %v2235 = vadd.f32 %v2025, %v2234
        %v2236 = vpop.f32.mrf.mxu0
        %v2237 = vpop.f32.mrf.mxu0
        %2238 = vdwg.mxu0
        %2239 = vmatprep.subr.bf16.mxu0 %v2165
        %2240 = vmatpush1.bf16.msra.mxu0 %v2164
        %2241 = vmatprep.subr.bf16.mxu0 %v2161
        %2242 = vmatpush1.bf16.msra.mxu0 %v2160
        %2243 = vmatprep.subr.bf16.mxu0 %v2157
        %2244 = vmatpush1.bf16.msra.mxu0 %v2156
        %2245 = vmatprep.subr.bf16.mxu0 %v2153
        %2246 = vmatpush1.bf16.msra.mxu0 %v2152
        %2247 = vmatprep.subr.bf16.mxu0 %v2149
        %2248 = vmatpush1.bf16.msra.mxu0 %v2148
        %2249 = vmatprep.subr.bf16.mxu0 %v2145
        %2250 = vmatpush1.bf16.msra.mxu0 %v2144
        %2251 = vmatprep.subr.bf16.mxu0 %v2141
        %2252 = vmatpush1.bf16.msra.mxu0 %v2140
        %2253 = vmatprep.subr.bf16.mxu0 %v2137
        %2254 = vmatpush1.bf16.msra.mxu0 %v2136
        %2255 = vmatprep.subr.bf16.mxu0 0
        %2256 = vmatpush2.bf16.msra.mxu0 0
        %2257 = vmatprep.subr.bf16.mxu0 0
        %2258 = vmatpush2.bf16.msra.mxu0 0
        %2259 = vmatprep.subr.bf16.mxu0 0
        %2260 = vmatpush2.bf16.msra.mxu0 0
        %2261 = vmatprep.subr.bf16.mxu0 0
        %2262 = vmatpush2.bf16.msra.mxu0 0
        %2263 = vmatprep.subr.bf16.mxu0 0
        %2264 = vmatpush2.bf16.msra.mxu0 0
        %2265 = vmatprep.subr.bf16.mxu0 0
        %2266 = vmatpush2.bf16.msra.mxu0 0
        %2267 = vmatprep.subr.bf16.mxu0 0
        %2268 = vmatpush2.bf16.msra.mxu0 0
        %2269 = vmatprep.subr.bf16.mxu0 0
        %2270 = vmatpush2.bf16.msra.mxu0 0
        %2271 = vmatprep.mubr.bf16.mxu0 0
        %2272 = vmatmul.mubr.bf16.gmra.mxu0 %v1983
        %v2273 = vpop.f32.mrf.mxu0
        %v2274 = vadd.f32 %v2029, %v2273
        %v2275 = vpop.f32.mrf.mxu0
        %v2276 = vadd.f32 %v2033, %v2275
        %v2277 = vpop.f32.mrf.mxu0
        %v2278 = vpop.f32.mrf.mxu0
        %2279 = vdwg.mxu0
        %v2280 = vmul.f32 %v2233, 1.702
        %v2281 = vmul.f32 %v2235, 1.702
        %v2282 = vmul.f32 %v2274, 1.702
        %v2283 = vmul.f32 %v2276, 1.702
        %v2284 = vxor.u32 %v2280, 2147483648
        %v2285 = vxor.u32 %v2281, 2147483648
        %v2286 = vxor.u32 %v2282, 2147483648
        %v2287 = vxor.u32 %v2283, 2147483648
        %v2288 = vmul.f32 %v2284, 1.442695
        %v2289 = vpow.pop %v2288
        %v2290 = vmul.f32 %v2285, 1.442695
        %v2291 = vpow.pop %v2290
        %v2292 = vmul.f32 %v2286, 1.442695
        %v2293 = vpow.pop %v2292
        %v2294 = vmul.f32 %v2287, 1.442695
        %v2295 = vpow.pop %v2294
        %v2296 = vadd.f32 %v2289, 1.0
        %v2297 = vadd.f32 %v2291, 1.0
        %v2298 = vadd.f32 %v2293, 1.0
        %v2299 = vadd.f32 %v2295, 1.0
        %v2300 = vrcp.pop %v2296
        %v2301 = vmul.f32 1.0, %v2300
        %v2302 = vrcp.pop %v2297
        %v2303 = vmul.f32 1.0, %v2302
        %v2304 = vrcp.pop %v2298
        %v2305 = vmul.f32 1.0, %v2304
        %v2306 = vrcp.pop %v2299
        %v2307 = vmul.f32 1.0, %v2306
        %v2308 = vmul.f32 %v2233, %v2301
        %v2309 = vmul.f32 %v2235, %v2303
        %v2310 = vmul.f32 %v2274, %v2305
        %v2311 = vmul.f32 %v2276, %v2307
        %v2312 = vpack.c.bf16 %v2308, %v2308
        %v2313 = vpack.c.bf16 %v2309, %v2309
        %v2314 = vpack.c.bf16 %v2310, %v2310
        %v2315 = vpack.c.bf16 %v2311, %v2311
        %v2316 = vld [vmem:[%s790] sm:$0xf]
        %v2317 = vld [vmem:[%s790 + $0x4] sm:$0xf]
        %v2318 = vld [vmem:[%s790 + $0x8] sm:$0xf]
        %v2319 = vld [vmem:[%s790 + $0xc] sm:$0xf]
        %v2320 = vld [vmem:[%s790 + $0x10] sm:$0xf]
        %v2321 = vld [vmem:[%s790 + $0x14] sm:$0xf]
        %v2322 = vld [vmem:[%s790 + $0x18] sm:$0xf]
        %v2323 = vld [vmem:[%s790 + $0x1c] sm:$0xf]
        %v2324 = vld [vmem:[%s790 + $0x20] sm:$0xf]
        %v2325 = vld [vmem:[%s790 + $0x24] sm:$0xf]
        %v2326 = vld [vmem:[%s790 + $0x28] sm:$0xf]
        %v2327 = vld [vmem:[%s790 + $0x2c] sm:$0xf]
        %v2328 = vld [vmem:[%s790 + $0x30] sm:$0xf]
        %v2329 = vld [vmem:[%s790 + $0x34] sm:$0xf]
        %v2330 = vld [vmem:[%s790 + $0x38] sm:$0xf]
        %v2331 = vld [vmem:[%s790 + $0x3c] sm:$0xf]
        %v2332 = vld [vmem:[%s790 + $0x40] sm:$0xf]
        %v2333 = vld [vmem:[%s790 + $0x44] sm:$0xf]
        %v2334 = vld [vmem:[%s790 + $0x48] sm:$0xf]
        %v2335 = vld [vmem:[%s790 + $0x4c] sm:$0xf]
        %v2336 = vld [vmem:[%s790 + $0x50] sm:$0xf]
        %v2337 = vld [vmem:[%s790 + $0x54] sm:$0xf]
        %v2338 = vld [vmem:[%s790 + $0x58] sm:$0xf]
        %v2339 = vld [vmem:[%s790 + $0x5c] sm:$0xf]
        %v2340 = vld [vmem:[%s790 + $0x60] sm:$0xf]
        %v2341 = vld [vmem:[%s790 + $0x64] sm:$0xf]
        %v2342 = vld [vmem:[%s790 + $0x68] sm:$0xf]
        %v2343 = vld [vmem:[%s790 + $0x6c] sm:$0xf]
        %v2344 = vld [vmem:[%s790 + $0x70] sm:$0xf]
        %v2345 = vld [vmem:[%s790 + $0x74] sm:$0xf]
        %v2346 = vld [vmem:[%s790 + $0x78] sm:$0xf]
        %v2347 = vld [vmem:[%s790 + $0x7c] sm:$0xf]
        %v2348 = vld [vmem:[%s790 + $0x80] sm:$0xf]
        %v2349 = vld [vmem:[%s790 + $0x84] sm:$0xf]
        %v2350 = vld [vmem:[%s790 + $0x88] sm:$0xf]
        %v2351 = vld [vmem:[%s790 + $0x8c] sm:$0xf]
        %v2352 = vld [vmem:[%s790 + $0x90] sm:$0xf]
        %v2353 = vld [vmem:[%s790 + $0x94] sm:$0xf]
        %v2354 = vld [vmem:[%s790 + $0x98] sm:$0xf]
        %v2355 = vld [vmem:[%s790 + $0x9c] sm:$0xf]
        %v2356 = vld [vmem:[%s790 + $0xa0] sm:$0xf]
        %v2357 = vld [vmem:[%s790 + $0xa4] sm:$0xf]
        %v2358 = vld [vmem:[%s790 + $0xa8] sm:$0xf]
        %v2359 = vld [vmem:[%s790 + $0xac] sm:$0xf]
        %v2360 = vld [vmem:[%s790 + $0xb0] sm:$0xf]
        %v2361 = vld [vmem:[%s790 + $0xb4] sm:$0xf]
        %v2362 = vld [vmem:[%s790 + $0xb8] sm:$0xf]
        %v2363 = vld [vmem:[%s790 + $0xbc] sm:$0xf]
        %v2364 = vld [vmem:[%s790 + $0xc0] sm:$0xf]
        %v2365 = vld [vmem:[%s790 + $0xc4] sm:$0xf]
        %v2366 = vld [vmem:[%s790 + $0xc8] sm:$0xf]
        %v2367 = vld [vmem:[%s790 + $0xcc] sm:$0xf]
        %v2368 = vld [vmem:[%s790 + $0xd0] sm:$0xf]
        %v2369 = vld [vmem:[%s790 + $0xd4] sm:$0xf]
        %v2370 = vld [vmem:[%s790 + $0xd8] sm:$0xf]
        %v2371 = vld [vmem:[%s790 + $0xdc] sm:$0xf]
        %v2372 = vld [vmem:[%s790 + $0xe0] sm:$0xf]
        %v2373 = vld [vmem:[%s790 + $0xe4] sm:$0xf]
        %v2374 = vld [vmem:[%s790 + $0xe8] sm:$0xf]
        %v2375 = vld [vmem:[%s790 + $0xec] sm:$0xf]
        %v2376 = vld [vmem:[%s790 + $0xf0] sm:$0xf]
        %v2377 = vld [vmem:[%s790 + $0xf4] sm:$0xf]
        %v2378 = vld [vmem:[%s790 + $0xf8] sm:$0xf]
        %v2379 = vld [vmem:[%s790 + $0xfc] sm:$0xf]
        %v2380 = vld [vmem:[%s895] sm:$0x1]
        %v2382 = vlaneseq
        %v2383 = vshrl.u32 %v2382, 7
        %v2384 = vsub.s32 0, %v2383
        %v2385 = vrot.slane %v2380, %v2384
        %v2451 = vunpack.c.l.b16 %v2316
        %v2452 = vunpack.c.l.b16 %v2317
        %v2453 = vunpack.c.l.b16 %v2318
        %v2454 = vunpack.c.l.b16 %v2319
        %v2455 = vunpack.c.l.b16 %v2320
        %v2456 = vunpack.c.l.b16 %v2321
        %v2457 = vunpack.c.l.b16 %v2322
        %v2458 = vunpack.c.l.b16 %v2323
        %v2459 = vunpack.c.l.b16 %v2324
        %v2460 = vunpack.c.l.b16 %v2325
        %v2461 = vunpack.c.l.b16 %v2326
        %v2462 = vunpack.c.l.b16 %v2327
        %v2463 = vunpack.c.l.b16 %v2328
        %v2464 = vunpack.c.l.b16 %v2329
        %v2465 = vunpack.c.l.b16 %v2330
        %v2466 = vunpack.c.l.b16 %v2331
        %v2467 = vunpack.c.l.b16 %v2332
        %v2468 = vunpack.c.l.b16 %v2333
        %v2469 = vunpack.c.l.b16 %v2334
        %v2470 = vunpack.c.l.b16 %v2335
        %v2471 = vunpack.c.l.b16 %v2336
        %v2472 = vunpack.c.l.b16 %v2337
        %v2473 = vunpack.c.l.b16 %v2338
        %v2474 = vunpack.c.l.b16 %v2339
        %v2475 = vunpack.c.l.b16 %v2340
        %v2476 = vunpack.c.l.b16 %v2341
        %v2477 = vunpack.c.l.b16 %v2342
        %v2478 = vunpack.c.l.b16 %v2343
        %v2479 = vunpack.c.l.b16 %v2344
        %v2480 = vunpack.c.l.b16 %v2345
        %v2481 = vunpack.c.l.b16 %v2346
        %v2482 = vunpack.c.l.b16 %v2347
        %v2483 = vunpack.c.l.b16 %v2348
        %v2484 = vunpack.c.l.b16 %v2349
        %v2485 = vunpack.c.l.b16 %v2350
        %v2486 = vunpack.c.l.b16 %v2351
        %v2487 = vunpack.c.l.b16 %v2352
        %v2488 = vunpack.c.l.b16 %v2353
        %v2489 = vunpack.c.l.b16 %v2354
        %v2490 = vunpack.c.l.b16 %v2355
        %v2491 = vunpack.c.l.b16 %v2356
        %v2492 = vunpack.c.l.b16 %v2357
        %v2493 = vunpack.c.l.b16 %v2358
        %v2494 = vunpack.c.l.b16 %v2359
        %v2495 = vunpack.c.l.b16 %v2360
        %v2496 = vunpack.c.l.b16 %v2361
        %v2497 = vunpack.c.l.b16 %v2362
        %v2498 = vunpack.c.l.b16 %v2363
        %v2499 = vunpack.c.l.b16 %v2364
        %v2500 = vunpack.c.l.b16 %v2365
        %v2501 = vunpack.c.l.b16 %v2366
        %v2502 = vunpack.c.l.b16 %v2367
        %v2503 = vunpack.c.l.b16 %v2368
        %v2504 = vunpack.c.l.b16 %v2369
        %v2505 = vunpack.c.l.b16 %v2370
        %v2506 = vunpack.c.l.b16 %v2371
        %v2507 = vunpack.c.l.b16 %v2372
        %v2508 = vunpack.c.l.b16 %v2373
        %v2509 = vunpack.c.l.b16 %v2374
        %v2510 = vunpack.c.l.b16 %v2375
        %v2511 = vunpack.c.l.b16 %v2376
        %v2512 = vunpack.c.l.b16 %v2377
        %v2513 = vunpack.c.l.b16 %v2378
        %v2514 = vunpack.c.l.b16 %v2379
        %v2515 = vpack.c.b16 %v2452, %v2451
        %v2516 = vpack.c.b16 %v2454, %v2453
        %v2517 = vpack.c.b16 %v2456, %v2455
        %v2518 = vpack.c.b16 %v2458, %v2457
        %v2519 = vpack.c.b16 %v2460, %v2459
        %v2520 = vpack.c.b16 %v2462, %v2461
        %v2521 = vpack.c.b16 %v2464, %v2463
        %v2522 = vpack.c.b16 %v2466, %v2465
        %v2523 = vpack.c.b16 %v2468, %v2467
        %v2524 = vpack.c.b16 %v2470, %v2469
        %v2525 = vpack.c.b16 %v2472, %v2471
        %v2526 = vpack.c.b16 %v2474, %v2473
        %v2527 = vpack.c.b16 %v2476, %v2475
        %v2528 = vpack.c.b16 %v2478, %v2477
        %v2529 = vpack.c.b16 %v2480, %v2479
        %v2530 = vpack.c.b16 %v2482, %v2481
        %v2531 = vpack.c.b16 %v2484, %v2483
        %v2532 = vpack.c.b16 %v2486, %v2485
        %v2533 = vpack.c.b16 %v2488, %v2487
        %v2534 = vpack.c.b16 %v2490, %v2489
        %v2535 = vpack.c.b16 %v2492, %v2491
        %v2536 = vpack.c.b16 %v2494, %v2493
        %v2537 = vpack.c.b16 %v2496, %v2495
        %v2538 = vpack.c.b16 %v2498, %v2497
        %v2539 = vpack.c.b16 %v2500, %v2499
        %v2540 = vpack.c.b16 %v2502, %v2501
        %v2541 = vpack.c.b16 %v2504, %v2503
        %v2542 = vpack.c.b16 %v2506, %v2505
        %v2543 = vpack.c.b16 %v2508, %v2507
        %v2544 = vpack.c.b16 %v2510, %v2509
        %v2545 = vpack.c.b16 %v2512, %v2511
        %v2546 = vpack.c.b16 %v2514, %v2513
        %2579 = vmatprep.subr.bf16.mxu0 0
        %2580 = vmatpush1.bf16.msra.mxu0 %v2522
        %2581 = vmatprep.subr.bf16.mxu0 0
        %2582 = vmatpush1.bf16.msra.mxu0 %v2521
        %2583 = vmatprep.subr.bf16.mxu0 0
        %2584 = vmatpush1.bf16.msra.mxu0 %v2520
        %2585 = vmatprep.subr.bf16.mxu0 0
        %2586 = vmatpush1.bf16.msra.mxu0 %v2519
        %2587 = vmatprep.subr.bf16.mxu0 0
        %2588 = vmatpush1.bf16.msra.mxu0 %v2518
        %2589 = vmatprep.subr.bf16.mxu0 0
        %2590 = vmatpush1.bf16.msra.mxu0 %v2517
        %2591 = vmatprep.subr.bf16.mxu0 0
        %2592 = vmatpush1.bf16.msra.mxu0 %v2516
        %2593 = vmatprep.subr.bf16.mxu0 0
        %2594 = vmatpush1.bf16.msra.mxu0 %v2515
        %2595 = vmatprep.subr.bf16.mxu0 0
        %2596 = vmatpush2.bf16.msra.mxu0 %v2530
        %2597 = vmatprep.subr.bf16.mxu0 0
        %2598 = vmatpush2.bf16.msra.mxu0 %v2529
        %2599 = vmatprep.subr.bf16.mxu0 0
        %2600 = vmatpush2.bf16.msra.mxu0 %v2528
        %2601 = vmatprep.subr.bf16.mxu0 0
        %2602 = vmatpush2.bf16.msra.mxu0 %v2527
        %2603 = vmatprep.subr.bf16.mxu0 0
        %2604 = vmatpush2.bf16.msra.mxu0 %v2526
        %2605 = vmatprep.subr.bf16.mxu0 0
        %2606 = vmatpush2.bf16.msra.mxu0 %v2525
        %2607 = vmatprep.subr.bf16.mxu0 0
        %2608 = vmatpush2.bf16.msra.mxu0 %v2524
        %2609 = vmatprep.subr.bf16.mxu0 0
        %2610 = vmatpush2.bf16.msra.mxu0 %v2523
        %2611 = vmatprep.mubr.bf16.mxu0 %v2313
        %2612 = vmatmul.mubr.bf16.gmra.mxu0 %v2312
        %v2613 = vpop.f32.mrf.mxu0
        %v2614 = vadd.f32 %v2385, %v2613
        %v2615 = vpop.f32.mrf.mxu0
        %v2616 = vpop.f32.mrf.mxu0
        %v2617 = vpop.f32.mrf.mxu0
        %2618 = vdwg.mxu0
        %2619 = vmatprep.subr.bf16.mxu0 0
        %2620 = vmatpush1.bf16.msra.mxu0 %v2538
        %2621 = vmatprep.subr.bf16.mxu0 0
        %2622 = vmatpush1.bf16.msra.mxu0 %v2537
        %2623 = vmatprep.subr.bf16.mxu0 0
        %2624 = vmatpush1.bf16.msra.mxu0 %v2536
        %2625 = vmatprep.subr.bf16.mxu0 0
        %2626 = vmatpush1.bf16.msra.mxu0 %v2535
        %2627 = vmatprep.subr.bf16.mxu0 0
        %2628 = vmatpush1.bf16.msra.mxu0 %v2534
        %2629 = vmatprep.subr.bf16.mxu0 0
        %2630 = vmatpush1.bf16.msra.mxu0 %v2533
        %2631 = vmatprep.subr.bf16.mxu0 0
        %2632 = vmatpush1.bf16.msra.mxu0 %v2532
        %2633 = vmatprep.subr.bf16.mxu0 0
        %2634 = vmatpush1.bf16.msra.mxu0 %v2531
        %2635 = vmatprep.subr.bf16.mxu0 0
        %2636 = vmatpush2.bf16.msra.mxu0 %v2546
        %2637 = vmatprep.subr.bf16.mxu0 0
        %2638 = vmatpush2.bf16.msra.mxu0 %v2545
        %2639 = vmatprep.subr.bf16.mxu0 0
        %2640 = vmatpush2.bf16.msra.mxu0 %v2544
        %2641 = vmatprep.subr.bf16.mxu0 0
        %2642 = vmatpush2.bf16.msra.mxu0 %v2543
        %2643 = vmatprep.subr.bf16.mxu0 0
        %2644 = vmatpush2.bf16.msra.mxu0 %v2542
        %2645 = vmatprep.subr.bf16.mxu0 0
        %2646 = vmatpush2.bf16.msra.mxu0 %v2541
        %2647 = vmatprep.subr.bf16.mxu0 0
        %2648 = vmatpush2.bf16.msra.mxu0 %v2540
        %2649 = vmatprep.subr.bf16.mxu0 0
        %2650 = vmatpush2.bf16.msra.mxu0 %v2539
        %2651 = vmatprep.mubr.bf16.mxu0 %v2315
        %2652 = vmatmul.mubr.bf16.gmra.mxu0 %v2314
        %v2653 = vpop.f32.mrf.mxu0
        %v2654 = vadd.f32 %v2614, %v2653
        %v2655 = vpop.f32.mrf.mxu0
        %v2656 = vpop.f32.mrf.mxu0
        %v2657 = vpop.f32.mrf.mxu0
        %2658 = vdwg.mxu0
        %v2659 = vadd.f32 %v1955, %v2654
        %2660 = vst [vmem:[#allocation2] sm:$0xff] %v2659
        %p2661 = scmp.eq.s32.totalorder %s42, 2
        // Predicated region
        $region133: #{tpu_custom_call.1} parent=83 // pred_check
          %p2662 = pneg %p2661
        $region134: #{tpu_custom_call.1} parent=83 // pred_check_branch
          %2664 = sbr.rel (%p2662) target = $region136
        $region135: #{tpu_custom_call.1} parent=83 // pred_region
          %v2665 = vld [vmem:[%s15] sm:$0x1]
          %v2666 = vld [vmem:[%s16] sm:$0x1]
          %2667 = vadd.xlane.f32.xlu0 %v2659
          %v2668 = vpop.xlane.xlu0 %2667
          %v2669 = vmul.f32 %v2668, %v968
          %v2670 = vsub.f32 %v2659, %v2669
          %v2671 = vmul.f32 %v2670, %v2670
          %2672 = vadd.xlane.f32.xlu0 %v2671
          %v2673 = vpop.xlane.xlu0 %2672
          %v2674 = vmul.f32 %v2673, %v968
          %v2675 = vadd.f32 %v2674, 1e-05
          %v2676 = vrsqrt.pop %v2675
          %v2677 = vmul.f32 %v2670, %v2676
          %v2679 = vlaneseq
          %v2680 = vshrl.u32 %v2679, 7
          %v2681 = vsub.s32 0, %v2680
          %v2682 = vrot.slane %v2665, %v2681
          %v2684 = vmul.f32 %v2677, %v2682
          %v2686 = vlaneseq
          %v2687 = vshrl.u32 %v2686, 7
          %v2688 = vsub.s32 0, %v2687
          %v2689 = vrot.slane %v2666, %v2688
          %v2691 = vadd.f32 %v2684, %v2689
          %2692 = vst [vmem:[%s884] sm:$0xff] %v2691
        $region136: #{tpu_custom_call.1} parent=83 // pred_fallthru
          _
        %s2693 = sand.u32 %s453, 1
        %s2694 = scalar_lea.sflag [#allocation7], %s2693
        %s2695 = sand.u32 %s453, 1
        %s2696 = smul.addr %s2695, 8
        %s2697 = scalar_lea.vmem [#allocation19], %s2696
        // Predicated region
        $region137: #{tpu_custom_call.1} parent=83 // pred_check
          %p2698 = pneg %p463
        $region138: #{tpu_custom_call.1} parent=83 // pred_check_branch
          %2700 = sbr.rel (%p2698) target = $region140
        $region139: #{tpu_custom_call.1} parent=83 // pred_region
          %s2702 = ssub.s32 128, 128
          %2703 = vsyncadd %s2694, %s2702
          %s2704 = smul.addr %s41, 128
          %s2705 = scalar_lea.hbm %s17, %s2704
          %s2707 = sshll.u32 %s2697, 4
          %s2708 = int_to_ptr.vmem [resolvable:$true] %s2707
          %2710 = dma.vmem_to_hbm [thread:$0]  %s2708, 128, %s2705, %s2694
        $region140: #{tpu_custom_call.1} parent=83 // pred_fallthru
          _
      $region84: #{tpu_custom_call.1} parent=5 // pred_fallthru
        _
      %p2711 = scmp.le.s32.totalorder 2, %s32
      // Predicated region
      $region141: #{tpu_custom_call.1} parent=5 // pred_check
        %p2712 = pneg %p2711
      $region142: #{tpu_custom_call.1} parent=5 // pred_check_branch
        %2714 = sbr.rel (%p2712) target = $region144
      $region143: #{tpu_custom_call.1} parent=5 // pred_region
        %s2715 = ssub.s32 %s32, 2
        // Predicated region
        $region145: #{tpu_custom_call.1} parent=143 // pred_check
          %p2716 = pneg %p469
        $region146: #{tpu_custom_call.1} parent=143 // pred_check_branch
          %2718 = sbr.rel (%p2716) target = $region148
        $region147: #{tpu_custom_call.1} parent=143 // pred_region
          %s2719 = sand.u32 %s454, 1
          %s2720 = scalar_lea.sflag [#allocation7], %s2719
          %s2721 = sand.u32 %s454, 1
          %s2722 = smul.addr %s2721, 8
          %s2723 = scalar_lea.vmem [#allocation19], %s2722
          %2724 = dma.done %s2720, 128
        $region148: #{tpu_custom_call.1} parent=143 // pred_fallthru
          _
      $region144: #{tpu_custom_call.1} parent=5 // pred_fallthru
        _
    $region6: #{tpu_custom_call.1} parent=1 // loop_footer
      %s36 = sadd.s32 1, %s32
    $region7: #{tpu_custom_call.1} parent=1 // loop_footer_branch
      %31 = sbr.rel target = $region3
    $region8: #{tpu_custom_call.1} parent=1 // loop_exit
      _
    %2725 = vsyncpa [#allocation6], 1
    %s2726 = scalar_lea.sflag [#allocation6], 1
    %2727 = vsyncpa %s2726, 1
    %2728 = vsyncpa [#allocation9], 1
    %2729 = vsyncpa [#allocation7], 1
    %s2730 = scalar_lea.sflag [#allocation7], 1
    %2731 = vsyncpa %s2730, 1

</llo_original>
